<compile_context>
chip_gen: v6e
topology: v6e:2x2x1
jax: 0.10.0
libtpu: 0.0.40
codegen_flags: <defaults>
</compile_context>

<pallas_src>
import functools

import jax
import jax.numpy as jnp
from jax import lax
from jax.experimental import pallas as pl
from jax.experimental.pallas import tpu as pltpu


def _dilated_conv_kernel(x_ref, w_ref, o_ref, col_ref, *, dilation, KH, KW, H_out, W_out):
    # x_ref  : (N, C_in, H_pad, W_pad)      zero-padded NCHW activations (whole batch)
    # w_ref  : (C_out, KH*KW*C_in)          lane-dense pre-flattened weights
    # o_ref  : (N, C_out, H_out*W_out)      lane-dense output slab
    # col_ref: (KH*KW*C_in, H_out*W_out)    VMEM im2col scratch, reused per image
    N = x_ref.shape[0]
    C_in = x_ref.shape[1]
    HW = H_out * W_out

    w = w_ref[...]                          # (C_out, KH*KW*C_in) -- loaded once

    for n in range(N):                      # tiny static batch: fully unrolled
        # --- im2col assembly: 9 static slice-stores into the scratch.  The unavoidable
        #     (C_in, H_out, W_out)->(C_in, HW) relayouts feed the scratch instead of
        #     gating individual MXU pushes.
        for kh in range(KH):
            for kw in range(KW):
                tap = kh * KW + kw
                patch = x_ref[n, :,
                              kh * dilation: kh * dilation + H_out,
                              kw * dilation: kw * dilation + W_out]   # (C_in, H_out, W_out)
                col_ref[tap * C_in:(tap + 1) * C_in, :] = patch.reshape(C_in, HW)

        # --- single fused GEMM per image: (C_out, 36) @ (36, 256), f32 accumulate.
        o_ref[n] = jnp.dot(w, col_ref[...],
                           preferred_element_type=jnp.float32).astype(o_ref.dtype)


def dilation_conv2d(x_nchw, weight_oihw, *, dilation=2, padding=2, stride=1):
    """Forward pass of DilationConv2d (stride is always 1 in the module, no bias)."""
    assert stride == 1
    N, C_in, H, W = x_nchw.shape
    C_out, C_in_w, KH, KW = weight_oihw.shape
    assert C_in == C_in_w

    # Zero-pad H/W only; activation stays NCHW (no layout transposes in the wrapper).
    x_pad = jnp.pad(x_nchw, ((0, 0), (0, 0), (padding, padding), (padding, padding)))
    H_pad, W_pad = H + 2 * padding, W + 2 * padding
    H_out = H + 2 * padding - dilation * (KH - 1)
    W_out = W + 2 * padding - dilation * (KW - 1)
    HW = H_out * W_out
    K_red = KH * KW * C_in

    # (C_out, KH*KW*C_in): lane-dense GEMM LHS.  Row order (kh, kw, c_in) matches the
    # im2col scratch rows built in the kernel.  Tiny tensor, negligible wrapper cost.
    w_flat = jnp.transpose(weight_oihw, (0, 2, 3, 1)).reshape(C_out, K_red)

    kernel = functools.partial(_dilated_conv_kernel, dilation=dilation,
                               KH=KH, KW=KW, H_out=H_out, W_out=W_out)

    out_flat = pl.pallas_call(
        kernel,
        out_shape=jax.ShapeDtypeStruct((N, C_out, HW), x_nchw.dtype),
        grid=(1,),                      # batch folded: single step, no per-step overhead
        in_specs=[
            pl.BlockSpec((N, C_in, H_pad, W_pad), lambda i: (0, 0, 0, 0)),
            pl.BlockSpec((C_out, K_red), lambda i: (0, 0)),
        ],
        out_specs=pl.BlockSpec((N, C_out, HW), lambda i: (0, 0, 0)),
        scratch_shapes=[pltpu.VMEM((K_red, HW), jnp.float32)],
        compiler_params=pltpu.CompilerParams(dimension_semantics=("arbitrary",)),
    )(x_pad, w_flat)

    # Contiguous reshape (no transpose) back to NCHW.
    return out_flat.reshape(N, C_out, H_out, W_out)


if __name__ == "__main__":
    # Module config: in_channels=4, out_channels=8, kernel_size=3, dilation=2, padding=2, no bias.
    N, C_in, H, W = 2, 4, 16, 16
    C_out, K = 8, 3

    key = jax.random.PRNGKey(0)
    kx, kw = jax.random.split(key)
    x = jax.random.normal(kx, (N, C_in, H, W), dtype=jnp.float32)
    # Deterministic Conv2d-style init: U(-b, b), b = 1/sqrt(fan_in)
    fan_in = C_in * K * K
    bound = 1.0 / jnp.sqrt(jnp.float32(fan_in))
    weight = jax.random.uniform(kw, (C_out, C_in, K, K), dtype=jnp.float32,
                                minval=-bound, maxval=bound)

    out = dilation_conv2d(x, weight, dilation=2, padding=2)
    out = jax.block_until_ready(out)

    # Reference check against XLA's dilated conv (same semantics as nn.Conv2d).
    ref = lax.conv_general_dilated(
        x, weight, window_strides=(1, 1), padding=((2, 2), (2, 2)),
        rhs_dilation=(2, 2), dimension_numbers=("NCHW", "OIHW", "NCHW"))
    assert out.shape == ref.shape == (N, C_out, H, W)
    assert jnp.allclose(out, ref, atol=1e-5, rtol=1e-5), "Pallas conv mismatch vs reference"

    print("KERNEL_OK")
</pallas_src>

<mosaic_0001>
module attributes {stable_mosaic.version = 11 : i64} {
  func.func @_dilated_conv_kernel(%arg0: i32, %arg1: memref<2x4x20x20xf32, #tpu.memory_space<vmem>>, %arg2: memref<8x36xf32, #tpu.memory_space<vmem>>, %arg3: memref<2x8x256xf32, #tpu.memory_space<vmem>>, %arg4: memref<36x256xf32, #tpu.memory_space<vmem>>) attributes {dimension_semantics = [#tpu.dimension_semantics<arbitrary>], iteration_bounds = array<i64: 1>, scalar_prefetch = 0 : i64, scratch_operands = 1 : i64, tpu.core_type = #tpu.core_type<tc>, window_params = [{pipeline_mode = #tpu.pipeline_mode<synchronous>, transform_indices = @transform_0, window_bounds = array<i64: 2, 4, 20, 20>}, {pipeline_mode = #tpu.pipeline_mode<synchronous>, transform_indices = @transform_1, window_bounds = array<i64: 8, 36>}, {pipeline_mode = #tpu.pipeline_mode<synchronous>, transform_indices = @transform_2, window_bounds = array<i64: 2, 8, 256>}]} {
    %c0 = arith.constant 0 : index
    %c0_0 = arith.constant 0 : index
    %0 = vector.load %arg2[%c0, %c0_0] : memref<8x36xf32, #tpu.memory_space<vmem>>, vector<8x36xf32>
    %c0_1 = arith.constant 0 : index
    %c0_2 = arith.constant 0 : index
    %c0_3 = arith.constant 0 : index
    %c0_4 = arith.constant 0 : index
    %1 = vector.load %arg1[%c0_1, %c0_2, %c0_3, %c0_4] : memref<2x4x20x20xf32, #tpu.memory_space<vmem>>, vector<1x4x16x16xf32>
    %2 = vector.shape_cast %1 : vector<1x4x16x16xf32> to vector<4x16x16xf32>
    %3 = vector.shape_cast %2 : vector<4x16x16xf32> to vector<4x256xf32>
    %c0_5 = arith.constant 0 : index
    %c0_6 = arith.constant 0 : index
    %4 = vector.load %arg4[%c0_5, %c0_6] : memref<36x256xf32, #tpu.memory_space<vmem>>, vector<4x256xf32>
    tpu.vector_store %arg4[%c0_5, %c0_6], %3 {strides = array<i32>} : memref<36x256xf32, #tpu.memory_space<vmem>>, vector<4x256xf32>,
    %c0_7 = arith.constant 0 : index
    %c0_8 = arith.constant 0 : index
    %c0_9 = arith.constant 0 : index
    %c2 = arith.constant 2 : index
    %5 = vector.load %arg1[%c0_7, %c0_8, %c0_9, %c2] : memref<2x4x20x20xf32, #tpu.memory_space<vmem>>, vector<1x4x16x16xf32>
    %6 = vector.shape_cast %5 : vector<1x4x16x16xf32> to vector<4x16x16xf32>
    %7 = vector.shape_cast %6 : vector<4x16x16xf32> to vector<4x256xf32>
    %c4 = arith.constant 4 : index
    %c0_10 = arith.constant 0 : index
    %8 = vector.load %arg4[%c4, %c0_10] : memref<36x256xf32, #tpu.memory_space<vmem>>, vector<4x256xf32>
    tpu.vector_store %arg4[%c4, %c0_10], %7 {strides = array<i32>} : memref<36x256xf32, #tpu.memory_space<vmem>>, vector<4x256xf32>,
    %c0_11 = arith.constant 0 : index
    %c0_12 = arith.constant 0 : index
    %c0_13 = arith.constant 0 : index
    %c4_14 = arith.constant 4 : index
    %9 = vector.load %arg1[%c0_11, %c0_12, %c0_13, %c4_14] : memref<2x4x20x20xf32, #tpu.memory_space<vmem>>, vector<1x4x16x16xf32>
    %10 = vector.shape_cast %9 : vector<1x4x16x16xf32> to vector<4x16x16xf32>
    %11 = vector.shape_cast %10 : vector<4x16x16xf32> to vector<4x256xf32>
    %c8 = arith.constant 8 : index
    %c0_15 = arith.constant 0 : index
    %12 = vector.load %arg4[%c8, %c0_15] : memref<36x256xf32, #tpu.memory_space<vmem>>, vector<4x256xf32>
    tpu.vector_store %arg4[%c8, %c0_15], %11 {strides = array<i32>} : memref<36x256xf32, #tpu.memory_space<vmem>>, vector<4x256xf32>,
    %c0_16 = arith.constant 0 : index
    %c0_17 = arith.constant 0 : index
    %c2_18 = arith.constant 2 : index
    %c0_19 = arith.constant 0 : index
    %13 = vector.load %arg1[%c0_16, %c0_17, %c2_18, %c0_19] : memref<2x4x20x20xf32, #tpu.memory_space<vmem>>, vector<1x4x16x16xf32>
    %14 = vector.shape_cast %13 : vector<1x4x16x16xf32> to vector<4x16x16xf32>
    %15 = vector.shape_cast %14 : vector<4x16x16xf32> to vector<4x256xf32>
    %c12 = arith.constant 12 : index
    %c0_20 = arith.constant 0 : index
    %16 = vector.load %arg4[%c12, %c0_20] : memref<36x256xf32, #tpu.memory_space<vmem>>, vector<4x256xf32>
    tpu.vector_store %arg4[%c12, %c0_20], %15 {strides = array<i32>} : memref<36x256xf32, #tpu.memory_space<vmem>>, vector<4x256xf32>,
    %c0_21 = arith.constant 0 : index
    %c0_22 = arith.constant 0 : index
    %c2_23 = arith.constant 2 : index
    %c2_24 = arith.constant 2 : index
    %17 = vector.load %arg1[%c0_21, %c0_22, %c2_23, %c2_24] : memref<2x4x20x20xf32, #tpu.memory_space<vmem>>, vector<1x4x16x16xf32>
    %18 = vector.shape_cast %17 : vector<1x4x16x16xf32> to vector<4x16x16xf32>
    %19 = vector.shape_cast %18 : vector<4x16x16xf32> to vector<4x256xf32>
    %c16 = arith.constant 16 : index
    %c0_25 = arith.constant 0 : index
    %20 = vector.load %arg4[%c16, %c0_25] : memref<36x256xf32, #tpu.memory_space<vmem>>, vector<4x256xf32>
    tpu.vector_store %arg4[%c16, %c0_25], %19 {strides = array<i32>} : memref<36x256xf32, #tpu.memory_space<vmem>>, vector<4x256xf32>,
    %c0_26 = arith.constant 0 : index
    %c0_27 = arith.constant 0 : index
    %c2_28 = arith.constant 2 : index
    %c4_29 = arith.constant 4 : index
    %21 = vector.load %arg1[%c0_26, %c0_27, %c2_28, %c4_29] : memref<2x4x20x20xf32, #tpu.memory_space<vmem>>, vector<1x4x16x16xf32>
    %22 = vector.shape_cast %21 : vector<1x4x16x16xf32> to vector<4x16x16xf32>
    %23 = vector.shape_cast %22 : vector<4x16x16xf32> to vector<4x256xf32>
    %c20 = arith.constant 20 : index
    %c0_30 = arith.constant 0 : index
    %24 = vector.load %arg4[%c20, %c0_30] : memref<36x256xf32, #tpu.memory_space<vmem>>, vector<4x256xf32>
    tpu.vector_store %arg4[%c20, %c0_30], %23 {strides = array<i32>} : memref<36x256xf32, #tpu.memory_space<vmem>>, vector<4x256xf32>,
    %c0_31 = arith.constant 0 : index
    %c0_32 = arith.constant 0 : index
    %c4_33 = arith.constant 4 : index
    %c0_34 = arith.constant 0 : index
    %25 = vector.load %arg1[%c0_31, %c0_32, %c4_33, %c0_34] : memref<2x4x20x20xf32, #tpu.memory_space<vmem>>, vector<1x4x16x16xf32>
    %26 = vector.shape_cast %25 : vector<1x4x16x16xf32> to vector<4x16x16xf32>
    %27 = vector.shape_cast %26 : vector<4x16x16xf32> to vector<4x256xf32>
    %c24 = arith.constant 24 : index
    %c0_35 = arith.constant 0 : index
    %28 = vector.load %arg4[%c24, %c0_35] : memref<36x256xf32, #tpu.memory_space<vmem>>, vector<4x256xf32>
    tpu.vector_store %arg4[%c24, %c0_35], %27 {strides = array<i32>} : memref<36x256xf32, #tpu.memory_space<vmem>>, vector<4x256xf32>,
    %c0_36 = arith.constant 0 : index
    %c0_37 = arith.constant 0 : index
    %c4_38 = arith.constant 4 : index
    %c2_39 = arith.constant 2 : index
    %29 = vector.load %arg1[%c0_36, %c0_37, %c4_38, %c2_39] : memref<2x4x20x20xf32, #tpu.memory_space<vmem>>, vector<1x4x16x16xf32>
    %30 = vector.shape_cast %29 : vector<1x4x16x16xf32> to vector<4x16x16xf32>
    %31 = vector.shape_cast %30 : vector<4x16x16xf32> to vector<4x256xf32>
    %c28 = arith.constant 28 : index
    %c0_40 = arith.constant 0 : index
    %32 = vector.load %arg4[%c28, %c0_40] : memref<36x256xf32, #tpu.memory_space<vmem>>, vector<4x256xf32>
    tpu.vector_store %arg4[%c28, %c0_40], %31 {strides = array<i32>} : memref<36x256xf32, #tpu.memory_space<vmem>>, vector<4x256xf32>,
    %c0_41 = arith.constant 0 : index
    %c0_42 = arith.constant 0 : index
    %c4_43 = arith.constant 4 : index
    %c4_44 = arith.constant 4 : index
    %33 = vector.load %arg1[%c0_41, %c0_42, %c4_43, %c4_44] : memref<2x4x20x20xf32, #tpu.memory_space<vmem>>, vector<1x4x16x16xf32>
    %34 = vector.shape_cast %33 : vector<1x4x16x16xf32> to vector<4x16x16xf32>
    %35 = vector.shape_cast %34 : vector<4x16x16xf32> to vector<4x256xf32>
    %c32 = arith.constant 32 : index
    %c0_45 = arith.constant 0 : index
    %36 = vector.load %arg4[%c32, %c0_45] : memref<36x256xf32, #tpu.memory_space<vmem>>, vector<4x256xf32>
    tpu.vector_store %arg4[%c32, %c0_45], %35 {strides = array<i32>} : memref<36x256xf32, #tpu.memory_space<vmem>>, vector<4x256xf32>,
    %c0_46 = arith.constant 0 : index
    %c0_47 = arith.constant 0 : index
    %37 = vector.load %arg4[%c0_46, %c0_47] : memref<36x256xf32, #tpu.memory_space<vmem>>, vector<36x256xf32>
    %cst = arith.constant dense<0.000000e+00> : vector<8x256xf32>
    %38 = tpu.matmul %0, %37, %cst {dimension_numbers = #tpu.dot_dimension_numbers<[1], [0], [0], [1], [0, 0, 1, 1], [], []>} : vector<8x36xf32>, vector<36x256xf32>, vector<8x256xf32> -> vector<8x256xf32>
    %c0_48 = arith.constant 0 : index
    %c0_49 = arith.constant 0 : index
    %c0_50 = arith.constant 0 : index
    %39 = vector.load %arg3[%c0_48, %c0_49, %c0_50] : memref<2x8x256xf32, #tpu.memory_space<vmem>>, vector<1x8x256xf32>
    %40 = vector.shape_cast %39 : vector<1x8x256xf32> to vector<8x256xf32>
    %41 = vector.shape_cast %38 : vector<8x256xf32> to vector<1x8x256xf32>
    tpu.vector_store %arg3[%c0_48, %c0_49, %c0_50], %41 {strides = array<i32>} : memref<2x8x256xf32, #tpu.memory_space<vmem>>, vector<1x8x256xf32>,
    %c1 = arith.constant 1 : index
    %c0_51 = arith.constant 0 : index
    %c0_52 = arith.constant 0 : index
    %c0_53 = arith.constant 0 : index
    %42 = vector.load %arg1[%c1, %c0_51, %c0_52, %c0_53] : memref<2x4x20x20xf32, #tpu.memory_space<vmem>>, vector<1x4x16x16xf32>
    %43 = vector.shape_cast %42 : vector<1x4x16x16xf32> to vector<4x16x16xf32>
    %44 = vector.shape_cast %43 : vector<4x16x16xf32> to vector<4x256xf32>
    %c0_54 = arith.constant 0 : index
    %c0_55 = arith.constant 0 : index
    %45 = vector.load %arg4[%c0_54, %c0_55] : memref<36x256xf32, #tpu.memory_space<vmem>>, vector<4x256xf32>
    tpu.vector_store %arg4[%c0_54, %c0_55], %44 {strides = array<i32>} : memref<36x256xf32, #tpu.memory_space<vmem>>, vector<4x256xf32>,
    %c1_56 = arith.constant 1 : index
    %c0_57 = arith.constant 0 : index
    %c0_58 = arith.constant 0 : index
    %c2_59 = arith.constant 2 : index
    %46 = vector.load %arg1[%c1_56, %c0_57, %c0_58, %c2_59] : memref<2x4x20x20xf32, #tpu.memory_space<vmem>>, vector<1x4x16x16xf32>
    %47 = vector.shape_cast %46 : vector<1x4x16x16xf32> to vector<4x16x16xf32>
    %48 = vector.shape_cast %47 : vector<4x16x16xf32> to vector<4x256xf32>
    %c4_60 = arith.constant 4 : index
    %c0_61 = arith.constant 0 : index
    %49 = vector.load %arg4[%c4_60, %c0_61] : memref<36x256xf32, #tpu.memory_space<vmem>>, vector<4x256xf32>
    tpu.vector_store %arg4[%c4_60, %c0_61], %48 {strides = array<i32>} : memref<36x256xf32, #tpu.memory_space<vmem>>, vector<4x256xf32>,
    %c1_62 = arith.constant 1 : index
    %c0_63 = arith.constant 0 : index
    %c0_64 = arith.constant 0 : index
    %c4_65 = arith.constant 4 : index
    %50 = vector.load %arg1[%c1_62, %c0_63, %c0_64, %c4_65] : memref<2x4x20x20xf32, #tpu.memory_space<vmem>>, vector<1x4x16x16xf32>
    %51 = vector.shape_cast %50 : vector<1x4x16x16xf32> to vector<4x16x16xf32>
    %52 = vector.shape_cast %51 : vector<4x16x16xf32> to vector<4x256xf32>
    %c8_66 = arith.constant 8 : index
    %c0_67 = arith.constant 0 : index
    %53 = vector.load %arg4[%c8_66, %c0_67] : memref<36x256xf32, #tpu.memory_space<vmem>>, vector<4x256xf32>
    tpu.vector_store %arg4[%c8_66, %c0_67], %52 {strides = array<i32>} : memref<36x256xf32, #tpu.memory_space<vmem>>, vector<4x256xf32>,
    %c1_68 = arith.constant 1 : index
    %c0_69 = arith.constant 0 : index
    %c2_70 = arith.constant 2 : index
    %c0_71 = arith.constant 0 : index
    %54 = vector.load %arg1[%c1_68, %c0_69, %c2_70, %c0_71] : memref<2x4x20x20xf32, #tpu.memory_space<vmem>>, vector<1x4x16x16xf32>
    %55 = vector.shape_cast %54 : vector<1x4x16x16xf32> to vector<4x16x16xf32>
    %56 = vector.shape_cast %55 : vector<4x16x16xf32> to vector<4x256xf32>
    %c12_72 = arith.constant 12 : index
    %c0_73 = arith.constant 0 : index
    %57 = vector.load %arg4[%c12_72, %c0_73] : memref<36x256xf32, #tpu.memory_space<vmem>>, vector<4x256xf32>
    tpu.vector_store %arg4[%c12_72, %c0_73], %56 {strides = array<i32>} : memref<36x256xf32, #tpu.memory_space<vmem>>, vector<4x256xf32>,
    %c1_74 = arith.constant 1 : index
    %c0_75 = arith.constant 0 : index
    %c2_76 = arith.constant 2 : index
    %c2_77 = arith.constant 2 : index
    %58 = vector.load %arg1[%c1_74, %c0_75, %c2_76, %c2_77] : memref<2x4x20x20xf32, #tpu.memory_space<vmem>>, vector<1x4x16x16xf32>
    %59 = vector.shape_cast %58 : vector<1x4x16x16xf32> to vector<4x16x16xf32>
    %60 = vector.shape_cast %59 : vector<4x16x16xf32> to vector<4x256xf32>
    %c16_78 = arith.constant 16 : index
    %c0_79 = arith.constant 0 : index
    %61 = vector.load %arg4[%c16_78, %c0_79] : memref<36x256xf32, #tpu.memory_space<vmem>>, vector<4x256xf32>
    tpu.vector_store %arg4[%c16_78, %c0_79], %60 {strides = array<i32>} : memref<36x256xf32, #tpu.memory_space<vmem>>, vector<4x256xf32>,
    %c1_80 = arith.constant 1 : index
    %c0_81 = arith.constant 0 : index
    %c2_82 = arith.constant 2 : index
    %c4_83 = arith.constant 4 : index
    %62 = vector.load %arg1[%c1_80, %c0_81, %c2_82, %c4_83] : memref<2x4x20x20xf32, #tpu.memory_space<vmem>>, vector<1x4x16x16xf32>
    %63 = vector.shape_cast %62 : vector<1x4x16x16xf32> to vector<4x16x16xf32>
    %64 = vector.shape_cast %63 : vector<4x16x16xf32> to vector<4x256xf32>
    %c20_84 = arith.constant 20 : index
    %c0_85 = arith.constant 0 : index
    %65 = vector.load %arg4[%c20_84, %c0_85] : memref<36x256xf32, #tpu.memory_space<vmem>>, vector<4x256xf32>
    tpu.vector_store %arg4[%c20_84, %c0_85], %64 {strides = array<i32>} : memref<36x256xf32, #tpu.memory_space<vmem>>, vector<4x256xf32>,
    %c1_86 = arith.constant 1 : index
    %c0_87 = arith.constant 0 : index
    %c4_88 = arith.constant 4 : index
    %c0_89 = arith.constant 0 : index
    %66 = vector.load %arg1[%c1_86, %c0_87, %c4_88, %c0_89] : memref<2x4x20x20xf32, #tpu.memory_space<vmem>>, vector<1x4x16x16xf32>
    %67 = vector.shape_cast %66 : vector<1x4x16x16xf32> to vector<4x16x16xf32>
    %68 = vector.shape_cast %67 : vector<4x16x16xf32> to vector<4x256xf32>
    %c24_90 = arith.constant 24 : index
    %c0_91 = arith.constant 0 : index
    %69 = vector.load %arg4[%c24_90, %c0_91] : memref<36x256xf32, #tpu.memory_space<vmem>>, vector<4x256xf32>
    tpu.vector_store %arg4[%c24_90, %c0_91], %68 {strides = array<i32>} : memref<36x256xf32, #tpu.memory_space<vmem>>, vector<4x256xf32>,
    %c1_92 = arith.constant 1 : index
    %c0_93 = arith.constant 0 : index
    %c4_94 = arith.constant 4 : index
    %c2_95 = arith.constant 2 : index
    %70 = vector.load %arg1[%c1_92, %c0_93, %c4_94, %c2_95] : memref<2x4x20x20xf32, #tpu.memory_space<vmem>>, vector<1x4x16x16xf32>
    %71 = vector.shape_cast %70 : vector<1x4x16x16xf32> to vector<4x16x16xf32>
    %72 = vector.shape_cast %71 : vector<4x16x16xf32> to vector<4x256xf32>
    %c28_96 = arith.constant 28 : index
    %c0_97 = arith.constant 0 : index
    %73 = vector.load %arg4[%c28_96, %c0_97] : memref<36x256xf32, #tpu.memory_space<vmem>>, vector<4x256xf32>
    tpu.vector_store %arg4[%c28_96, %c0_97], %72 {strides = array<i32>} : memref<36x256xf32, #tpu.memory_space<vmem>>, vector<4x256xf32>,
    %c1_98 = arith.constant 1 : index
    %c0_99 = arith.constant 0 : index
    %c4_100 = arith.constant 4 : index
    %c4_101 = arith.constant 4 : index
    %74 = vector.load %arg1[%c1_98, %c0_99, %c4_100, %c4_101] : memref<2x4x20x20xf32, #tpu.memory_space<vmem>>, vector<1x4x16x16xf32>
    %75 = vector.shape_cast %74 : vector<1x4x16x16xf32> to vector<4x16x16xf32>
    %76 = vector.shape_cast %75 : vector<4x16x16xf32> to vector<4x256xf32>
    %c32_102 = arith.constant 32 : index
    %c0_103 = arith.constant 0 : index
    %77 = vector.load %arg4[%c32_102, %c0_103] : memref<36x256xf32, #tpu.memory_space<vmem>>, vector<4x256xf32>
    tpu.vector_store %arg4[%c32_102, %c0_103], %76 {strides = array<i32>} : memref<36x256xf32, #tpu.memory_space<vmem>>, vector<4x256xf32>,
    %c0_104 = arith.constant 0 : index
    %c0_105 = arith.constant 0 : index
    %78 = vector.load %arg4[%c0_104, %c0_105] : memref<36x256xf32, #tpu.memory_space<vmem>>, vector<36x256xf32>
    %cst_106 = arith.constant dense<0.000000e+00> : vector<8x256xf32>
    %79 = tpu.matmul %0, %78, %cst_106 {dimension_numbers = #tpu.dot_dimension_numbers<[1], [0], [0], [1], [0, 0, 1, 1], [], []>} : vector<8x36xf32>, vector<36x256xf32>, vector<8x256xf32> -> vector<8x256xf32>
    %c1_107 = arith.constant 1 : index
    %c0_108 = arith.constant 0 : index
    %c0_109 = arith.constant 0 : index
    %80 = vector.load %arg3[%c1_107, %c0_108, %c0_109] : memref<2x8x256xf32, #tpu.memory_space<vmem>>, vector<1x8x256xf32>
    %81 = vector.shape_cast %80 : vector<1x8x256xf32> to vector<8x256xf32>
    %82 = vector.shape_cast %79 : vector<8x256xf32> to vector<1x8x256xf32>
    tpu.vector_store %arg3[%c1_107, %c0_108, %c0_109], %82 {strides = array<i32>} : memref<2x8x256xf32, #tpu.memory_space<vmem>>, vector<1x8x256xf32>,
    return
  }
  func.func @transform_0(%arg0: i32) -> (i32, i32, i32, i32) {
    %c0_i32 = arith.constant 0 : i32
    %c0_i32_0 = arith.constant 0 : i32
    %c0_i32_1 = arith.constant 0 : i32
    %c0_i32_2 = arith.constant 0 : i32
    %c0_i32_3 = arith.constant 0 : i32
    return %c0_i32, %c0_i32_0, %c0_i32_1, %c0_i32_2 : i32, i32, i32, i32
  }
  func.func @transform_1(%arg0: i32) -> (i32, i32) {
    %c0_i32 = arith.constant 0 : i32
    %c0_i32_0 = arith.constant 0 : i32
    %c0_i32_1 = arith.constant 0 : i32
    return %c0_i32, %c0_i32_0 : i32, i32
  }
  func.func @transform_2(%arg0: i32) -> (i32, i32, i32) {
    %c0_i32 = arith.constant 0 : i32
    %c0_i32_0 = arith.constant 0 : i32
    %c0_i32_1 = arith.constant 0 : i32
    %c0_i32_2 = arith.constant 0 : i32
    return %c0_i32, %c0_i32_0, %c0_i32_1 : i32, i32, i32
  }
}

</mosaic_0001>

<llo_original>
// kernel: tpu_custom_call.1
$region0: #{tpu_custom_call.1}
  #allocation0 [shape = 'u32[]', space=smem, size = 0x4, offset = 0x4, fixed_abs, tag = 'smem constant byte address 0x4 - core index']
  #allocation1 [shape = 'u32[144,128]{1,0:T(1,128)}', space=vmem, size = 0x12000, scoped, tag = 'internal scratch']
  #allocation2 [shape = 'f32[36,256]{1,0:T(8,128)}', space=vmem, size = 0xa000, scoped, tag = 'scratch operand']
  %s0 = inlined_call_operand.vmem [shape: f32[2,4,20,20], index: 0, kind: input, shape index: {}]
  %s1 = inlined_call_operand.vmem [shape: f32[8,36], index: 1, kind: input, shape index: {}]
  %s2 = inlined_call_operand.hbm [shape: f32[2,8,256], index: 2, kind: output, shape index: {}]
  %s3 = sld [smem:[#allocation0]]
  $region18: #{tpu_custom_call.1} parent=0
    _
  %s5 = ssub.s32 1, %s3
  %s6 = scalar_select 0, %s5, %s3
  $region1: #{tpu_custom_call.1} parent=0
    #allocation3 [shape = 'u8[16384]{0}', space=vmem, size = 0x4000, scoped, tag = 'output window, operand 0, single buffered']
    #allocation4 [shape = 's32[1]{0}', space=sflag, size = 0x4, scoped, tag = 'scoped memory for tpu_custom_call.1']
    %7 = vsyncpa [#allocation4], 0
    // Predicated region
    $region2: #{tpu_custom_call.1} parent=1 // pred_check
      _
    $region3: #{tpu_custom_call.1} parent=1 // pred_check_branch
      %9 = sbr.rel (0) target = $region5
    $region4: #{tpu_custom_call.1} parent=1 // pred_region
      _
    $region5: #{tpu_custom_call.1} parent=1 // pred_fallthru
      _
    // Predicated region
    $region6: #{tpu_custom_call.1} parent=1 // pred_check
      _
    $region7: #{tpu_custom_call.1} parent=1 // pred_check_branch
      %11 = sbr.rel (0) target = $region9
    $region8: #{tpu_custom_call.1} parent=1 // pred_region
      _
    $region9: #{tpu_custom_call.1} parent=1 // pred_fallthru
      _
    %v12 = vld [vmem:[%s1] sm:$0xff]
    %v13 = vld [vmem:[%s0] sm:$0xff]
    %v14 = vld [vmem:[%s0 + $0x8] sm:$0xff]
    %v15 = vld [vmem:[%s0 + $0x18] sm:$0xff]
    %v16 = vld [vmem:[%s0 + $0x20] sm:$0xff]
    %v17 = vld [vmem:[%s0 + $0x30] sm:$0xff]
    %v18 = vld [vmem:[%s0 + $0x38] sm:$0xff]
    %v19 = vld [vmem:[%s0 + $0x48] sm:$0xff]
    %v20 = vld [vmem:[%s0 + $0x50] sm:$0xff]
    %v21 = vcombine.low %v13, %v17
    %v22 = vcombine.high %v13, %v17
    %v24 = vunpack.c.l.s4 1983009808
    %v25 = vunpack.c.0.s8 %v24
    %v26 = vlaneseq
    %v27 = vshrl.u32 %v26, 7
    %v28 = vsub.s32 %v25, %v27
    %v29 = vrot.slane %v21, %v28
    %v31 = vunpack.c.l.s4 1983009808
    %v32 = vunpack.c.0.s8 %v31
    %v33 = vlaneseq
    %v34 = vshrl.u32 %v33, 7
    %v35 = vsub.s32 %v32, %v34
    %v36 = vrot.slane %v22, %v35
    %v37 = vcombine.low %v15, %v19
    %v38 = vcombine.high %v15, %v19
    %v40 = vunpack.c.l.s4 1983009808
    %v41 = vunpack.c.0.s8 %v40
    %v42 = vlaneseq
    %v43 = vshrl.u32 %v42, 7
    %v44 = vsub.s32 %v41, %v43
    %v45 = vrot.slane %v37, %v44
    %v47 = vunpack.c.l.s4 1983009808
    %v48 = vunpack.c.0.s8 %v47
    %v49 = vlaneseq
    %v50 = vshrl.u32 %v49, 7
    %v51 = vsub.s32 %v48, %v50
    %v52 = vrot.slane %v38, %v51
    %v53 = vcombine.low %v29, %v45
    %v54 = vcombine.high %v29, %v45
    %v56 = vunpack.c.l.s4 1934713408
    %v57 = vunpack.c.0.s8 %v56
    %v58 = vlaneseq
    %v59 = vshrl.u32 %v58, 7
    %v60 = vsub.s32 %v57, %v59
    %v61 = vrot.slane %v53, %v60
    %v63 = vunpack.c.l.s4 1934713408
    %v64 = vunpack.c.0.s8 %v63
    %v65 = vlaneseq
    %v66 = vshrl.u32 %v65, 7
    %v67 = vsub.s32 %v64, %v66
    %v68 = vrot.slane %v54, %v67
    %v69 = vcombine.low %v36, %v52
    %v70 = vcombine.high %v36, %v52
    %v72 = vunpack.c.l.s4 1934713408
    %v73 = vunpack.c.0.s8 %v72
    %v74 = vlaneseq
    %v75 = vshrl.u32 %v74, 7
    %v76 = vsub.s32 %v73, %v75
    %v77 = vrot.slane %v69, %v76
    %v79 = vunpack.c.l.s4 1934713408
    %v80 = vunpack.c.0.s8 %v79
    %v81 = vlaneseq
    %v82 = vshrl.u32 %v81, 7
    %v83 = vsub.s32 %v80, %v82
    %v84 = vrot.slane %v70, %v83
    %v85 = vcombine.high %v61, 0.0
    %v86 = vcombine.high %v68, 0.0
    %v87 = vcombine.high %v77, 0.0
    %v88 = vcombine.high %v84, 0.0
    %v89 = vcombine.low %v14, %v18
    %v90 = vcombine.high %v14, %v18
    %v92 = vunpack.c.l.s4 1983009808
    %v93 = vunpack.c.0.s8 %v92
    %v94 = vlaneseq
    %v95 = vshrl.u32 %v94, 7
    %v96 = vsub.s32 %v93, %v95
    %v97 = vrot.slane %v89, %v96
    %v99 = vunpack.c.l.s4 1983009808
    %v100 = vunpack.c.0.s8 %v99
    %v101 = vlaneseq
    %v102 = vshrl.u32 %v101, 7
    %v103 = vsub.s32 %v100, %v102
    %v104 = vrot.slane %v90, %v103
    %v105 = vcombine.low %v16, %v20
    %v106 = vcombine.high %v16, %v20
    %v108 = vunpack.c.l.s4 1983009808
    %v109 = vunpack.c.0.s8 %v108
    %v110 = vlaneseq
    %v111 = vshrl.u32 %v110, 7
    %v112 = vsub.s32 %v109, %v111
    %v113 = vrot.slane %v105, %v112
    %v115 = vunpack.c.l.s4 1983009808
    %v116 = vunpack.c.0.s8 %v115
    %v117 = vlaneseq
    %v118 = vshrl.u32 %v117, 7
    %v119 = vsub.s32 %v116, %v118
    %v120 = vrot.slane %v106, %v119
    %v121 = vcombine.low %v97, %v113
    %v122 = vcombine.high %v97, %v113
    %v124 = vunpack.c.l.s4 1934713408
    %v125 = vunpack.c.0.s8 %v124
    %v126 = vlaneseq
    %v127 = vshrl.u32 %v126, 7
    %v128 = vsub.s32 %v125, %v127
    %v129 = vrot.slane %v121, %v128
    %v131 = vunpack.c.l.s4 1934713408
    %v132 = vunpack.c.0.s8 %v131
    %v133 = vlaneseq
    %v134 = vshrl.u32 %v133, 7
    %v135 = vsub.s32 %v132, %v134
    %v136 = vrot.slane %v122, %v135
    %v137 = vcombine.low %v104, %v120
    %v138 = vcombine.high %v104, %v120
    %v140 = vunpack.c.l.s4 1934713408
    %v141 = vunpack.c.0.s8 %v140
    %v142 = vlaneseq
    %v143 = vshrl.u32 %v142, 7
    %v144 = vsub.s32 %v141, %v143
    %v145 = vrot.slane %v137, %v144
    %v147 = vunpack.c.l.s4 1934713408
    %v148 = vunpack.c.0.s8 %v147
    %v149 = vlaneseq
    %v150 = vshrl.u32 %v149, 7
    %v151 = vsub.s32 %v148, %v150
    %v152 = vrot.slane %v138, %v151
    %v153 = vcombine.high %v129, 0.0
    %v154 = vcombine.high %v136, 0.0
    %v155 = vcombine.high %v145, 0.0
    %v156 = vcombine.high %v152, 0.0
    %158 = vrot.lane.b32.xlu0 %v85, 16
    %v159 = vpop.permute.xlu0 %158
    %162 = vrot.lane.b32.xlu0 %v68, 32
    %v163 = vpop.permute.xlu0 %162
    %166 = vrot.lane.b32.xlu0 %v86, 48
    %v167 = vpop.permute.xlu0 %166
    %170 = vrot.lane.b32.xlu0 %v77, 64
    %v171 = vpop.permute.xlu0 %170
    %174 = vrot.lane.b32.xlu0 %v87, 80
    %v175 = vpop.permute.xlu0 %174
    %178 = vrot.lane.b32.xlu0 %v84, 96
    %v179 = vpop.permute.xlu0 %178
    %182 = vrot.lane.b32.xlu0 %v88, 112
    %v183 = vpop.permute.xlu0 %182
    %186 = vrot.lane.b32.xlu0 %v153, 16
    %v187 = vpop.permute.xlu0 %186
    %190 = vrot.lane.b32.xlu0 %v136, 32
    %v191 = vpop.permute.xlu0 %190
    %194 = vrot.lane.b32.xlu0 %v154, 48
    %v195 = vpop.permute.xlu0 %194
    %198 = vrot.lane.b32.xlu0 %v145, 64
    %v199 = vpop.permute.xlu0 %198
    %202 = vrot.lane.b32.xlu0 %v155, 80
    %v203 = vpop.permute.xlu0 %202
    %206 = vrot.lane.b32.xlu0 %v152, 96
    %v207 = vpop.permute.xlu0 %206
    %210 = vrot.lane.b32.xlu0 %v156, 112
    %v211 = vpop.permute.xlu0 %210
    %vm213 = vcmask 130048
    %v214 = vsel %vm213, %v61, %v159
    %vm215 = vcmask 261120
    %v216 = vsel %vm215, %v214, %v163
    %vm217 = vcmask 392192
    %v218 = vsel %vm217, %v216, %v167
    %vm219 = vcmask 523264
    %v220 = vsel %vm219, %v218, %v171
    %vm221 = vcmask 654336
    %v222 = vsel %vm221, %v220, %v175
    %vm223 = vcmask 785408
    %v224 = vsel %vm223, %v222, %v179
    %vm225 = vcmask 916480
    %v226 = vsel %vm225, %v224, %v183
    %v227 = vsel %vm213, %v129, %v187
    %v228 = vsel %vm215, %v227, %v191
    %v229 = vsel %vm217, %v228, %v195
    %v230 = vsel %vm219, %v229, %v199
    %v231 = vsel %vm221, %v230, %v203
    %v232 = vsel %vm223, %v231, %v207
    %v233 = vsel %vm225, %v232, %v211
    %234 = vst [vmem:[#allocation2] sm:$0xf] %v226
    %235 = vst [vmem:[#allocation2 + $0x8] sm:$0xf] %v233
    %v236 = vld [vmem:[%s0] sm:$0xff]
    %v237 = vld [vmem:[%s0 + $0x8] sm:$0xff]
    %v238 = vld [vmem:[%s0 + $0x18] sm:$0xff]
    %v239 = vld [vmem:[%s0 + $0x20] sm:$0xff]
    %v240 = vld [vmem:[%s0 + $0x30] sm:$0xff]
    %v241 = vld [vmem:[%s0 + $0x38] sm:$0xff]
    %v242 = vld [vmem:[%s0 + $0x48] sm:$0xff]
    %v243 = vld [vmem:[%s0 + $0x50] sm:$0xff]
    %252 = vrot.lane.b32.xlu0 %v236, 126
    %v253 = vpop.permute.xlu0 %252
    %254 = vrot.lane.b32.xlu0 %v237, 126
    %v255 = vpop.permute.xlu0 %254
    %256 = vrot.lane.b32.xlu0 %v238, 126
    %v257 = vpop.permute.xlu0 %256
    %258 = vrot.lane.b32.xlu0 %v239, 126
    %v259 = vpop.permute.xlu0 %258
    %260 = vrot.lane.b32.xlu0 %v240, 126
    %v261 = vpop.permute.xlu0 %260
    %262 = vrot.lane.b32.xlu0 %v241, 126
    %v263 = vpop.permute.xlu0 %262
    %264 = vrot.lane.b32.xlu0 %v242, 126
    %v265 = vpop.permute.xlu0 %264
    %266 = vrot.lane.b32.xlu0 %v243, 126
    %v267 = vpop.permute.xlu0 %266
    %v276 = vcombine.low %v253, %v261
    %v277 = vcombine.high %v253, %v261
    %v279 = vunpack.c.l.s4 1983009808
    %v280 = vunpack.c.0.s8 %v279
    %v281 = vlaneseq
    %v282 = vshrl.u32 %v281, 7
    %v283 = vsub.s32 %v280, %v282
    %v284 = vrot.slane %v276, %v283
    %v286 = vunpack.c.l.s4 1983009808
    %v287 = vunpack.c.0.s8 %v286
    %v288 = vlaneseq
    %v289 = vshrl.u32 %v288, 7
    %v290 = vsub.s32 %v287, %v289
    %v291 = vrot.slane %v277, %v290
    %v292 = vcombine.low %v257, %v265
    %v293 = vcombine.high %v257, %v265
    %v295 = vunpack.c.l.s4 1983009808
    %v296 = vunpack.c.0.s8 %v295
    %v297 = vlaneseq
    %v298 = vshrl.u32 %v297, 7
    %v299 = vsub.s32 %v296, %v298
    %v300 = vrot.slane %v292, %v299
    %v302 = vunpack.c.l.s4 1983009808
    %v303 = vunpack.c.0.s8 %v302
    %v304 = vlaneseq
    %v305 = vshrl.u32 %v304, 7
    %v306 = vsub.s32 %v303, %v305
    %v307 = vrot.slane %v293, %v306
    %v308 = vcombine.low %v284, %v300
    %v309 = vcombine.high %v284, %v300
    %v311 = vunpack.c.l.s4 1934713408
    %v312 = vunpack.c.0.s8 %v311
    %v313 = vlaneseq
    %v314 = vshrl.u32 %v313, 7
    %v315 = vsub.s32 %v312, %v314
    %v316 = vrot.slane %v308, %v315
    %v318 = vunpack.c.l.s4 1934713408
    %v319 = vunpack.c.0.s8 %v318
    %v320 = vlaneseq
    %v321 = vshrl.u32 %v320, 7
    %v322 = vsub.s32 %v319, %v321
    %v323 = vrot.slane %v309, %v322
    %v324 = vcombine.low %v291, %v307
    %v325 = vcombine.high %v291, %v307
    %v327 = vunpack.c.l.s4 1934713408
    %v328 = vunpack.c.0.s8 %v327
    %v329 = vlaneseq
    %v330 = vshrl.u32 %v329, 7
    %v331 = vsub.s32 %v328, %v330
    %v332 = vrot.slane %v324, %v331
    %v334 = vunpack.c.l.s4 1934713408
    %v335 = vunpack.c.0.s8 %v334
    %v336 = vlaneseq
    %v337 = vshrl.u32 %v336, 7
    %v338 = vsub.s32 %v335, %v337
    %v339 = vrot.slane %v325, %v338
    %v340 = vcombine.high %v316, 0.0
    %v341 = vcombine.high %v323, 0.0
    %v342 = vcombine.high %v332, 0.0
    %v343 = vcombine.high %v339, 0.0
    %v344 = vcombine.low %v255, %v263
    %v345 = vcombine.high %v255, %v263
    %v347 = vunpack.c.l.s4 1983009808
    %v348 = vunpack.c.0.s8 %v347
    %v349 = vlaneseq
    %v350 = vshrl.u32 %v349, 7
    %v351 = vsub.s32 %v348, %v350
    %v352 = vrot.slane %v344, %v351
    %v354 = vunpack.c.l.s4 1983009808
    %v355 = vunpack.c.0.s8 %v354
    %v356 = vlaneseq
    %v357 = vshrl.u32 %v356, 7
    %v358 = vsub.s32 %v355, %v357
    %v359 = vrot.slane %v345, %v358
    %v360 = vcombine.low %v259, %v267
    %v361 = vcombine.high %v259, %v267
    %v363 = vunpack.c.l.s4 1983009808
    %v364 = vunpack.c.0.s8 %v363
    %v365 = vlaneseq
    %v366 = vshrl.u32 %v365, 7
    %v367 = vsub.s32 %v364, %v366
    %v368 = vrot.slane %v360, %v367
    %v370 = vunpack.c.l.s4 1983009808
    %v371 = vunpack.c.0.s8 %v370
    %v372 = vlaneseq
    %v373 = vshrl.u32 %v372, 7
    %v374 = vsub.s32 %v371, %v373
    %v375 = vrot.slane %v361, %v374
    %v376 = vcombine.low %v352, %v368
    %v377 = vcombine.high %v352, %v368
    %v379 = vunpack.c.l.s4 1934713408
    %v380 = vunpack.c.0.s8 %v379
    %v381 = vlaneseq
    %v382 = vshrl.u32 %v381, 7
    %v383 = vsub.s32 %v380, %v382
    %v384 = vrot.slane %v376, %v383
    %v386 = vunpack.c.l.s4 1934713408
    %v387 = vunpack.c.0.s8 %v386
    %v388 = vlaneseq
    %v389 = vshrl.u32 %v388, 7
    %v390 = vsub.s32 %v387, %v389
    %v391 = vrot.slane %v377, %v390
    %v392 = vcombine.low %v359, %v375
    %v393 = vcombine.high %v359, %v375
    %v395 = vunpack.c.l.s4 1934713408
    %v396 = vunpack.c.0.s8 %v395
    %v397 = vlaneseq
    %v398 = vshrl.u32 %v397, 7
    %v399 = vsub.s32 %v396, %v398
    %v400 = vrot.slane %v392, %v399
    %v402 = vunpack.c.l.s4 1934713408
    %v403 = vunpack.c.0.s8 %v402
    %v404 = vlaneseq
    %v405 = vshrl.u32 %v404, 7
    %v406 = vsub.s32 %v403, %v405
    %v407 = vrot.slane %v393, %v406
    %v408 = vcombine.high %v384, 0.0
    %v409 = vcombine.high %v391, 0.0
    %v410 = vcombine.high %v400, 0.0
    %v411 = vcombine.high %v407, 0.0
    %413 = vrot.lane.b32.xlu0 %v340, 16
    %v414 = vpop.permute.xlu0 %413
    %417 = vrot.lane.b32.xlu0 %v323, 32
    %v418 = vpop.permute.xlu0 %417
    %421 = vrot.lane.b32.xlu0 %v341, 48
    %v422 = vpop.permute.xlu0 %421
    %425 = vrot.lane.b32.xlu0 %v332, 64
    %v426 = vpop.permute.xlu0 %425
    %429 = vrot.lane.b32.xlu0 %v342, 80
    %v430 = vpop.permute.xlu0 %429
    %433 = vrot.lane.b32.xlu0 %v339, 96
    %v434 = vpop.permute.xlu0 %433
    %437 = vrot.lane.b32.xlu0 %v343, 112
    %v438 = vpop.permute.xlu0 %437
    %441 = vrot.lane.b32.xlu0 %v408, 16
    %v442 = vpop.permute.xlu0 %441
    %445 = vrot.lane.b32.xlu0 %v391, 32
    %v446 = vpop.permute.xlu0 %445
    %449 = vrot.lane.b32.xlu0 %v409, 48
    %v450 = vpop.permute.xlu0 %449
    %453 = vrot.lane.b32.xlu0 %v400, 64
    %v454 = vpop.permute.xlu0 %453
    %457 = vrot.lane.b32.xlu0 %v410, 80
    %v458 = vpop.permute.xlu0 %457
    %461 = vrot.lane.b32.xlu0 %v407, 96
    %v462 = vpop.permute.xlu0 %461
    %465 = vrot.lane.b32.xlu0 %v411, 112
    %v466 = vpop.permute.xlu0 %465
    %v468 = vsel %vm213, %v316, %v414
    %v469 = vsel %vm215, %v468, %v418
    %v470 = vsel %vm217, %v469, %v422
    %v471 = vsel %vm219, %v470, %v426
    %v472 = vsel %vm221, %v471, %v430
    %v473 = vsel %vm223, %v472, %v434
    %v474 = vsel %vm225, %v473, %v438
    %v475 = vsel %vm213, %v384, %v442
    %v476 = vsel %vm215, %v475, %v446
    %v477 = vsel %vm217, %v476, %v450
    %v478 = vsel %vm219, %v477, %v454
    %v479 = vsel %vm221, %v478, %v458
    %v480 = vsel %vm223, %v479, %v462
    %v481 = vsel %vm225, %v480, %v466
    %v484 = vrot.slane %v474, 4
    %v485 = vrot.slane %v481, 4
    %488 = vst [vmem:[#allocation2] sm:$0xf0] %v484
    %489 = vst [vmem:[#allocation2 + $0x8] sm:$0xf0] %v485
    %v490 = vld [vmem:[%s0] sm:$0xff]
    %v491 = vld [vmem:[%s0 + $0x8] sm:$0xff]
    %v492 = vld [vmem:[%s0 + $0x18] sm:$0xff]
    %v493 = vld [vmem:[%s0 + $0x20] sm:$0xff]
    %v494 = vld [vmem:[%s0 + $0x30] sm:$0xff]
    %v495 = vld [vmem:[%s0 + $0x38] sm:$0xff]
    %v496 = vld [vmem:[%s0 + $0x48] sm:$0xff]
    %v497 = vld [vmem:[%s0 + $0x50] sm:$0xff]
    %506 = vrot.lane.b32.xlu0 %v490, 124
    %v507 = vpop.permute.xlu0 %506
    %508 = vrot.lane.b32.xlu0 %v491, 124
    %v509 = vpop.permute.xlu0 %508
    %510 = vrot.lane.b32.xlu0 %v492, 124
    %v511 = vpop.permute.xlu0 %510
    %512 = vrot.lane.b32.xlu0 %v493, 124
    %v513 = vpop.permute.xlu0 %512
    %514 = vrot.lane.b32.xlu0 %v494, 124
    %v515 = vpop.permute.xlu0 %514
    %516 = vrot.lane.b32.xlu0 %v495, 124
    %v517 = vpop.permute.xlu0 %516
    %518 = vrot.lane.b32.xlu0 %v496, 124
    %v519 = vpop.permute.xlu0 %518
    %520 = vrot.lane.b32.xlu0 %v497, 124
    %v521 = vpop.permute.xlu0 %520
    %v530 = vcombine.low %v507, %v515
    %v531 = vcombine.high %v507, %v515
    %v533 = vunpack.c.l.s4 1983009808
    %v534 = vunpack.c.0.s8 %v533
    %v535 = vlaneseq
    %v536 = vshrl.u32 %v535, 7
    %v537 = vsub.s32 %v534, %v536
    %v538 = vrot.slane %v530, %v537
    %v540 = vunpack.c.l.s4 1983009808
    %v541 = vunpack.c.0.s8 %v540
    %v542 = vlaneseq
    %v543 = vshrl.u32 %v542, 7
    %v544 = vsub.s32 %v541, %v543
    %v545 = vrot.slane %v531, %v544
    %v546 = vcombine.low %v511, %v519
    %v547 = vcombine.high %v511, %v519
    %v549 = vunpack.c.l.s4 1983009808
    %v550 = vunpack.c.0.s8 %v549
    %v551 = vlaneseq
    %v552 = vshrl.u32 %v551, 7
    %v553 = vsub.s32 %v550, %v552
    %v554 = vrot.slane %v546, %v553
    %v556 = vunpack.c.l.s4 1983009808
    %v557 = vunpack.c.0.s8 %v556
    %v558 = vlaneseq
    %v559 = vshrl.u32 %v558, 7
    %v560 = vsub.s32 %v557, %v559
    %v561 = vrot.slane %v547, %v560
    %v562 = vcombine.low %v538, %v554
    %v563 = vcombine.high %v538, %v554
    %v565 = vunpack.c.l.s4 1934713408
    %v566 = vunpack.c.0.s8 %v565
    %v567 = vlaneseq
    %v568 = vshrl.u32 %v567, 7
    %v569 = vsub.s32 %v566, %v568
    %v570 = vrot.slane %v562, %v569
    %v572 = vunpack.c.l.s4 1934713408
    %v573 = vunpack.c.0.s8 %v572
    %v574 = vlaneseq
    %v575 = vshrl.u32 %v574, 7
    %v576 = vsub.s32 %v573, %v575
    %v577 = vrot.slane %v563, %v576
    %v578 = vcombine.low %v545, %v561
    %v579 = vcombine.high %v545, %v561
    %v581 = vunpack.c.l.s4 1934713408
    %v582 = vunpack.c.0.s8 %v581
    %v583 = vlaneseq
    %v584 = vshrl.u32 %v583, 7
    %v585 = vsub.s32 %v582, %v584
    %v586 = vrot.slane %v578, %v585
    %v588 = vunpack.c.l.s4 1934713408
    %v589 = vunpack.c.0.s8 %v588
    %v590 = vlaneseq
    %v591 = vshrl.u32 %v590, 7
    %v592 = vsub.s32 %v589, %v591
    %v593 = vrot.slane %v579, %v592
    %v594 = vcombine.high %v570, 0.0
    %v595 = vcombine.high %v577, 0.0
    %v596 = vcombine.high %v586, 0.0
    %v597 = vcombine.high %v593, 0.0
    %v598 = vcombine.low %v509, %v517
    %v599 = vcombine.high %v509, %v517
    %v601 = vunpack.c.l.s4 1983009808
    %v602 = vunpack.c.0.s8 %v601
    %v603 = vlaneseq
    %v604 = vshrl.u32 %v603, 7
    %v605 = vsub.s32 %v602, %v604
    %v606 = vrot.slane %v598, %v605
    %v608 = vunpack.c.l.s4 1983009808
    %v609 = vunpack.c.0.s8 %v608
    %v610 = vlaneseq
    %v611 = vshrl.u32 %v610, 7
    %v612 = vsub.s32 %v609, %v611
    %v613 = vrot.slane %v599, %v612
    %v614 = vcombine.low %v513, %v521
    %v615 = vcombine.high %v513, %v521
    %v617 = vunpack.c.l.s4 1983009808
    %v618 = vunpack.c.0.s8 %v617
    %v619 = vlaneseq
    %v620 = vshrl.u32 %v619, 7
    %v621 = vsub.s32 %v618, %v620
    %v622 = vrot.slane %v614, %v621
    %v624 = vunpack.c.l.s4 1983009808
    %v625 = vunpack.c.0.s8 %v624
    %v626 = vlaneseq
    %v627 = vshrl.u32 %v626, 7
    %v628 = vsub.s32 %v625, %v627
    %v629 = vrot.slane %v615, %v628
    %v630 = vcombine.low %v606, %v622
    %v631 = vcombine.high %v606, %v622
    %v633 = vunpack.c.l.s4 1934713408
    %v634 = vunpack.c.0.s8 %v633
    %v635 = vlaneseq
    %v636 = vshrl.u32 %v635, 7
    %v637 = vsub.s32 %v634, %v636
    %v638 = vrot.slane %v630, %v637
    %v640 = vunpack.c.l.s4 1934713408
    %v641 = vunpack.c.0.s8 %v640
    %v642 = vlaneseq
    %v643 = vshrl.u32 %v642, 7
    %v644 = vsub.s32 %v641, %v643
    %v645 = vrot.slane %v631, %v644
    %v646 = vcombine.low %v613, %v629
    %v647 = vcombine.high %v613, %v629
    %v649 = vunpack.c.l.s4 1934713408
    %v650 = vunpack.c.0.s8 %v649
    %v651 = vlaneseq
    %v652 = vshrl.u32 %v651, 7
    %v653 = vsub.s32 %v650, %v652
    %v654 = vrot.slane %v646, %v653
    %v656 = vunpack.c.l.s4 1934713408
    %v657 = vunpack.c.0.s8 %v656
    %v658 = vlaneseq
    %v659 = vshrl.u32 %v658, 7
    %v660 = vsub.s32 %v657, %v659
    %v661 = vrot.slane %v647, %v660
    %v662 = vcombine.high %v638, 0.0
    %v663 = vcombine.high %v645, 0.0
    %v664 = vcombine.high %v654, 0.0
    %v665 = vcombine.high %v661, 0.0
    %667 = vrot.lane.b32.xlu0 %v594, 16
    %v668 = vpop.permute.xlu0 %667
    %671 = vrot.lane.b32.xlu0 %v577, 32
    %v672 = vpop.permute.xlu0 %671
    %675 = vrot.lane.b32.xlu0 %v595, 48
    %v676 = vpop.permute.xlu0 %675
    %679 = vrot.lane.b32.xlu0 %v586, 64
    %v680 = vpop.permute.xlu0 %679
    %683 = vrot.lane.b32.xlu0 %v596, 80
    %v684 = vpop.permute.xlu0 %683
    %687 = vrot.lane.b32.xlu0 %v593, 96
    %v688 = vpop.permute.xlu0 %687
    %691 = vrot.lane.b32.xlu0 %v597, 112
    %v692 = vpop.permute.xlu0 %691
    %695 = vrot.lane.b32.xlu0 %v662, 16
    %v696 = vpop.permute.xlu0 %695
    %699 = vrot.lane.b32.xlu0 %v645, 32
    %v700 = vpop.permute.xlu0 %699
    %703 = vrot.lane.b32.xlu0 %v663, 48
    %v704 = vpop.permute.xlu0 %703
    %707 = vrot.lane.b32.xlu0 %v654, 64
    %v708 = vpop.permute.xlu0 %707
    %711 = vrot.lane.b32.xlu0 %v664, 80
    %v712 = vpop.permute.xlu0 %711
    %715 = vrot.lane.b32.xlu0 %v661, 96
    %v716 = vpop.permute.xlu0 %715
    %719 = vrot.lane.b32.xlu0 %v665, 112
    %v720 = vpop.permute.xlu0 %719
    %v722 = vsel %vm213, %v570, %v668
    %v723 = vsel %vm215, %v722, %v672
    %v724 = vsel %vm217, %v723, %v676
    %v725 = vsel %vm219, %v724, %v680
    %v726 = vsel %vm221, %v725, %v684
    %v727 = vsel %vm223, %v726, %v688
    %v728 = vsel %vm225, %v727, %v692
    %v729 = vsel %vm213, %v638, %v696
    %v730 = vsel %vm215, %v729, %v700
    %v731 = vsel %vm217, %v730, %v704
    %v732 = vsel %vm219, %v731, %v708
    %v733 = vsel %vm221, %v732, %v712
    %v734 = vsel %vm223, %v733, %v716
    %v735 = vsel %vm225, %v734, %v720
    %736 = vst [vmem:[#allocation2 + $0x10] sm:$0xf] %v728
    %737 = vst [vmem:[#allocation2 + $0x18] sm:$0xf] %v735
    %v738 = vld [vmem:[%s0 + $0x2] sm:$0xff]
    %v739 = vld [vmem:[%s0 + $0xa] sm:$0xff]
    %v740 = vld [vmem:[%s0 + $0x1a] sm:$0xff]
    %v741 = vld [vmem:[%s0 + $0x22] sm:$0xff]
    %v742 = vld [vmem:[%s0 + $0x32] sm:$0xff]
    %v743 = vld [vmem:[%s0 + $0x3a] sm:$0xff]
    %v744 = vld [vmem:[%s0 + $0x4a] sm:$0xff]
    %v745 = vld [vmem:[%s0 + $0x52] sm:$0xff]
    %v746 = vcombine.low %v738, %v742
    %v747 = vcombine.high %v738, %v742
    %v749 = vunpack.c.l.s4 1983009808
    %v750 = vunpack.c.0.s8 %v749
    %v751 = vlaneseq
    %v752 = vshrl.u32 %v751, 7
    %v753 = vsub.s32 %v750, %v752
    %v754 = vrot.slane %v746, %v753
    %v756 = vunpack.c.l.s4 1983009808
    %v757 = vunpack.c.0.s8 %v756
    %v758 = vlaneseq
    %v759 = vshrl.u32 %v758, 7
    %v760 = vsub.s32 %v757, %v759
    %v761 = vrot.slane %v747, %v760
    %v762 = vcombine.low %v740, %v744
    %v763 = vcombine.high %v740, %v744
    %v765 = vunpack.c.l.s4 1983009808
    %v766 = vunpack.c.0.s8 %v765
    %v767 = vlaneseq
    %v768 = vshrl.u32 %v767, 7
    %v769 = vsub.s32 %v766, %v768
    %v770 = vrot.slane %v762, %v769
    %v772 = vunpack.c.l.s4 1983009808
    %v773 = vunpack.c.0.s8 %v772
    %v774 = vlaneseq
    %v775 = vshrl.u32 %v774, 7
    %v776 = vsub.s32 %v773, %v775
    %v777 = vrot.slane %v763, %v776
    %v778 = vcombine.low %v754, %v770
    %v779 = vcombine.high %v754, %v770
    %v781 = vunpack.c.l.s4 1934713408
    %v782 = vunpack.c.0.s8 %v781
    %v783 = vlaneseq
    %v784 = vshrl.u32 %v783, 7
    %v785 = vsub.s32 %v782, %v784
    %v786 = vrot.slane %v778, %v785
    %v788 = vunpack.c.l.s4 1934713408
    %v789 = vunpack.c.0.s8 %v788
    %v790 = vlaneseq
    %v791 = vshrl.u32 %v790, 7
    %v792 = vsub.s32 %v789, %v791
    %v793 = vrot.slane %v779, %v792
    %v794 = vcombine.low %v761, %v777
    %v795 = vcombine.high %v761, %v777
    %v797 = vunpack.c.l.s4 1934713408
    %v798 = vunpack.c.0.s8 %v797
    %v799 = vlaneseq
    %v800 = vshrl.u32 %v799, 7
    %v801 = vsub.s32 %v798, %v800
    %v802 = vrot.slane %v794, %v801
    %v804 = vunpack.c.l.s4 1934713408
    %v805 = vunpack.c.0.s8 %v804
    %v806 = vlaneseq
    %v807 = vshrl.u32 %v806, 7
    %v808 = vsub.s32 %v805, %v807
    %v809 = vrot.slane %v795, %v808
    %v810 = vcombine.high %v786, 0.0
    %v811 = vcombine.high %v793, 0.0
    %v812 = vcombine.high %v802, 0.0
    %v813 = vcombine.high %v809, 0.0
    %v814 = vcombine.low %v739, %v743
    %v815 = vcombine.high %v739, %v743
    %v817 = vunpack.c.l.s4 1983009808
    %v818 = vunpack.c.0.s8 %v817
    %v819 = vlaneseq
    %v820 = vshrl.u32 %v819, 7
    %v821 = vsub.s32 %v818, %v820
    %v822 = vrot.slane %v814, %v821
    %v824 = vunpack.c.l.s4 1983009808
    %v825 = vunpack.c.0.s8 %v824
    %v826 = vlaneseq
    %v827 = vshrl.u32 %v826, 7
    %v828 = vsub.s32 %v825, %v827
    %v829 = vrot.slane %v815, %v828
    %v830 = vcombine.low %v741, %v745
    %v831 = vcombine.high %v741, %v745
    %v833 = vunpack.c.l.s4 1983009808
    %v834 = vunpack.c.0.s8 %v833
    %v835 = vlaneseq
    %v836 = vshrl.u32 %v835, 7
    %v837 = vsub.s32 %v834, %v836
    %v838 = vrot.slane %v830, %v837
    %v840 = vunpack.c.l.s4 1983009808
    %v841 = vunpack.c.0.s8 %v840
    %v842 = vlaneseq
    %v843 = vshrl.u32 %v842, 7
    %v844 = vsub.s32 %v841, %v843
    %v845 = vrot.slane %v831, %v844
    %v846 = vcombine.low %v822, %v838
    %v847 = vcombine.high %v822, %v838
    %v849 = vunpack.c.l.s4 1934713408
    %v850 = vunpack.c.0.s8 %v849
    %v851 = vlaneseq
    %v852 = vshrl.u32 %v851, 7
    %v853 = vsub.s32 %v850, %v852
    %v854 = vrot.slane %v846, %v853
    %v856 = vunpack.c.l.s4 1934713408
    %v857 = vunpack.c.0.s8 %v856
    %v858 = vlaneseq
    %v859 = vshrl.u32 %v858, 7
    %v860 = vsub.s32 %v857, %v859
    %v861 = vrot.slane %v847, %v860
    %v862 = vcombine.low %v829, %v845
    %v863 = vcombine.high %v829, %v845
    %v865 = vunpack.c.l.s4 1934713408
    %v866 = vunpack.c.0.s8 %v865
    %v867 = vlaneseq
    %v868 = vshrl.u32 %v867, 7
    %v869 = vsub.s32 %v866, %v868
    %v870 = vrot.slane %v862, %v869
    %v872 = vunpack.c.l.s4 1934713408
    %v873 = vunpack.c.0.s8 %v872
    %v874 = vlaneseq
    %v875 = vshrl.u32 %v874, 7
    %v876 = vsub.s32 %v873, %v875
    %v877 = vrot.slane %v863, %v876
    %v878 = vcombine.high %v854, 0.0
    %v879 = vcombine.high %v861, 0.0
    %v880 = vcombine.high %v870, 0.0
    %v881 = vcombine.high %v877, 0.0
    %883 = vrot.lane.b32.xlu0 %v810, 16
    %v884 = vpop.permute.xlu0 %883
    %887 = vrot.lane.b32.xlu0 %v793, 32
    %v888 = vpop.permute.xlu0 %887
    %891 = vrot.lane.b32.xlu0 %v811, 48
    %v892 = vpop.permute.xlu0 %891
    %895 = vrot.lane.b32.xlu0 %v802, 64
    %v896 = vpop.permute.xlu0 %895
    %899 = vrot.lane.b32.xlu0 %v812, 80
    %v900 = vpop.permute.xlu0 %899
    %903 = vrot.lane.b32.xlu0 %v809, 96
    %v904 = vpop.permute.xlu0 %903
    %907 = vrot.lane.b32.xlu0 %v813, 112
    %v908 = vpop.permute.xlu0 %907
    %911 = vrot.lane.b32.xlu0 %v878, 16
    %v912 = vpop.permute.xlu0 %911
    %915 = vrot.lane.b32.xlu0 %v861, 32
    %v916 = vpop.permute.xlu0 %915
    %919 = vrot.lane.b32.xlu0 %v879, 48
    %v920 = vpop.permute.xlu0 %919
    %923 = vrot.lane.b32.xlu0 %v870, 64
    %v924 = vpop.permute.xlu0 %923
    %927 = vrot.lane.b32.xlu0 %v880, 80
    %v928 = vpop.permute.xlu0 %927
    %931 = vrot.lane.b32.xlu0 %v877, 96
    %v932 = vpop.permute.xlu0 %931
    %935 = vrot.lane.b32.xlu0 %v881, 112
    %v936 = vpop.permute.xlu0 %935
    %v938 = vsel %vm213, %v786, %v884
    %v939 = vsel %vm215, %v938, %v888
    %v940 = vsel %vm217, %v939, %v892
    %v941 = vsel %vm219, %v940, %v896
    %v942 = vsel %vm221, %v941, %v900
    %v943 = vsel %vm223, %v942, %v904
    %v944 = vsel %vm225, %v943, %v908
    %v945 = vsel %vm213, %v854, %v912
    %v946 = vsel %vm215, %v945, %v916
    %v947 = vsel %vm217, %v946, %v920
    %v948 = vsel %vm219, %v947, %v924
    %v949 = vsel %vm221, %v948, %v928
    %v950 = vsel %vm223, %v949, %v932
    %v951 = vsel %vm225, %v950, %v936
    %v954 = vrot.slane %v944, 4
    %v955 = vrot.slane %v951, 4
    %958 = vst [vmem:[#allocation2 + $0x10] sm:$0xf0] %v954
    %959 = vst [vmem:[#allocation2 + $0x18] sm:$0xf0] %v955
    %v960 = vld [vmem:[%s0 + $0x2] sm:$0xff]
    %v961 = vld [vmem:[%s0 + $0xa] sm:$0xff]
    %v962 = vld [vmem:[%s0 + $0x1a] sm:$0xff]
    %v963 = vld [vmem:[%s0 + $0x22] sm:$0xff]
    %v964 = vld [vmem:[%s0 + $0x32] sm:$0xff]
    %v965 = vld [vmem:[%s0 + $0x3a] sm:$0xff]
    %v966 = vld [vmem:[%s0 + $0x4a] sm:$0xff]
    %v967 = vld [vmem:[%s0 + $0x52] sm:$0xff]
    %976 = vrot.lane.b32.xlu0 %v960, 126
    %v977 = vpop.permute.xlu0 %976
    %978 = vrot.lane.b32.xlu0 %v961, 126
    %v979 = vpop.permute.xlu0 %978
    %980 = vrot.lane.b32.xlu0 %v962, 126
    %v981 = vpop.permute.xlu0 %980
    %982 = vrot.lane.b32.xlu0 %v963, 126
    %v983 = vpop.permute.xlu0 %982
    %984 = vrot.lane.b32.xlu0 %v964, 126
    %v985 = vpop.permute.xlu0 %984
    %986 = vrot.lane.b32.xlu0 %v965, 126
    %v987 = vpop.permute.xlu0 %986
    %988 = vrot.lane.b32.xlu0 %v966, 126
    %v989 = vpop.permute.xlu0 %988
    %990 = vrot.lane.b32.xlu0 %v967, 126
    %v991 = vpop.permute.xlu0 %990
    %v1000 = vcombine.low %v977, %v985
    %v1001 = vcombine.high %v977, %v985
    %v1003 = vunpack.c.l.s4 1983009808
    %v1004 = vunpack.c.0.s8 %v1003
    %v1005 = vlaneseq
    %v1006 = vshrl.u32 %v1005, 7
    %v1007 = vsub.s32 %v1004, %v1006
    %v1008 = vrot.slane %v1000, %v1007
    %v1010 = vunpack.c.l.s4 1983009808
    %v1011 = vunpack.c.0.s8 %v1010
    %v1012 = vlaneseq
    %v1013 = vshrl.u32 %v1012, 7
    %v1014 = vsub.s32 %v1011, %v1013
    %v1015 = vrot.slane %v1001, %v1014
    %v1016 = vcombine.low %v981, %v989
    %v1017 = vcombine.high %v981, %v989
    %v1019 = vunpack.c.l.s4 1983009808
    %v1020 = vunpack.c.0.s8 %v1019
    %v1021 = vlaneseq
    %v1022 = vshrl.u32 %v1021, 7
    %v1023 = vsub.s32 %v1020, %v1022
    %v1024 = vrot.slane %v1016, %v1023
    %v1026 = vunpack.c.l.s4 1983009808
    %v1027 = vunpack.c.0.s8 %v1026
    %v1028 = vlaneseq
    %v1029 = vshrl.u32 %v1028, 7
    %v1030 = vsub.s32 %v1027, %v1029
    %v1031 = vrot.slane %v1017, %v1030
    %v1032 = vcombine.low %v1008, %v1024
    %v1033 = vcombine.high %v1008, %v1024
    %v1035 = vunpack.c.l.s4 1934713408
    %v1036 = vunpack.c.0.s8 %v1035
    %v1037 = vlaneseq
    %v1038 = vshrl.u32 %v1037, 7
    %v1039 = vsub.s32 %v1036, %v1038
    %v1040 = vrot.slane %v1032, %v1039
    %v1042 = vunpack.c.l.s4 1934713408
    %v1043 = vunpack.c.0.s8 %v1042
    %v1044 = vlaneseq
    %v1045 = vshrl.u32 %v1044, 7
    %v1046 = vsub.s32 %v1043, %v1045
    %v1047 = vrot.slane %v1033, %v1046
    %v1048 = vcombine.low %v1015, %v1031
    %v1049 = vcombine.high %v1015, %v1031
    %v1051 = vunpack.c.l.s4 1934713408
    %v1052 = vunpack.c.0.s8 %v1051
    %v1053 = vlaneseq
    %v1054 = vshrl.u32 %v1053, 7
    %v1055 = vsub.s32 %v1052, %v1054
    %v1056 = vrot.slane %v1048, %v1055
    %v1058 = vunpack.c.l.s4 1934713408
    %v1059 = vunpack.c.0.s8 %v1058
    %v1060 = vlaneseq
    %v1061 = vshrl.u32 %v1060, 7
    %v1062 = vsub.s32 %v1059, %v1061
    %v1063 = vrot.slane %v1049, %v1062
    %v1064 = vcombine.high %v1040, 0.0
    %v1065 = vcombine.high %v1047, 0.0
    %v1066 = vcombine.high %v1056, 0.0
    %v1067 = vcombine.high %v1063, 0.0
    %v1068 = vcombine.low %v979, %v987
    %v1069 = vcombine.high %v979, %v987
    %v1071 = vunpack.c.l.s4 1983009808
    %v1072 = vunpack.c.0.s8 %v1071
    %v1073 = vlaneseq
    %v1074 = vshrl.u32 %v1073, 7
    %v1075 = vsub.s32 %v1072, %v1074
    %v1076 = vrot.slane %v1068, %v1075
    %v1078 = vunpack.c.l.s4 1983009808
    %v1079 = vunpack.c.0.s8 %v1078
    %v1080 = vlaneseq
    %v1081 = vshrl.u32 %v1080, 7
    %v1082 = vsub.s32 %v1079, %v1081
    %v1083 = vrot.slane %v1069, %v1082
    %v1084 = vcombine.low %v983, %v991
    %v1085 = vcombine.high %v983, %v991
    %v1087 = vunpack.c.l.s4 1983009808
    %v1088 = vunpack.c.0.s8 %v1087
    %v1089 = vlaneseq
    %v1090 = vshrl.u32 %v1089, 7
    %v1091 = vsub.s32 %v1088, %v1090
    %v1092 = vrot.slane %v1084, %v1091
    %v1094 = vunpack.c.l.s4 1983009808
    %v1095 = vunpack.c.0.s8 %v1094
    %v1096 = vlaneseq
    %v1097 = vshrl.u32 %v1096, 7
    %v1098 = vsub.s32 %v1095, %v1097
    %v1099 = vrot.slane %v1085, %v1098
    %v1100 = vcombine.low %v1076, %v1092
    %v1101 = vcombine.high %v1076, %v1092
    %v1103 = vunpack.c.l.s4 1934713408
    %v1104 = vunpack.c.0.s8 %v1103
    %v1105 = vlaneseq
    %v1106 = vshrl.u32 %v1105, 7
    %v1107 = vsub.s32 %v1104, %v1106
    %v1108 = vrot.slane %v1100, %v1107
    %v1110 = vunpack.c.l.s4 1934713408
    %v1111 = vunpack.c.0.s8 %v1110
    %v1112 = vlaneseq
    %v1113 = vshrl.u32 %v1112, 7
    %v1114 = vsub.s32 %v1111, %v1113
    %v1115 = vrot.slane %v1101, %v1114
    %v1116 = vcombine.low %v1083, %v1099
    %v1117 = vcombine.high %v1083, %v1099
    %v1119 = vunpack.c.l.s4 1934713408
    %v1120 = vunpack.c.0.s8 %v1119
    %v1121 = vlaneseq
    %v1122 = vshrl.u32 %v1121, 7
    %v1123 = vsub.s32 %v1120, %v1122
    %v1124 = vrot.slane %v1116, %v1123
    %v1126 = vunpack.c.l.s4 1934713408
    %v1127 = vunpack.c.0.s8 %v1126
    %v1128 = vlaneseq
    %v1129 = vshrl.u32 %v1128, 7
    %v1130 = vsub.s32 %v1127, %v1129
    %v1131 = vrot.slane %v1117, %v1130
    %v1132 = vcombine.high %v1108, 0.0
    %v1133 = vcombine.high %v1115, 0.0
    %v1134 = vcombine.high %v1124, 0.0
    %v1135 = vcombine.high %v1131, 0.0
    %1137 = vrot.lane.b32.xlu0 %v1064, 16
    %v1138 = vpop.permute.xlu0 %1137
    %1141 = vrot.lane.b32.xlu0 %v1047, 32
    %v1142 = vpop.permute.xlu0 %1141
    %1145 = vrot.lane.b32.xlu0 %v1065, 48
    %v1146 = vpop.permute.xlu0 %1145
    %1149 = vrot.lane.b32.xlu0 %v1056, 64
    %v1150 = vpop.permute.xlu0 %1149
    %1153 = vrot.lane.b32.xlu0 %v1066, 80
    %v1154 = vpop.permute.xlu0 %1153
    %1157 = vrot.lane.b32.xlu0 %v1063, 96
    %v1158 = vpop.permute.xlu0 %1157
    %1161 = vrot.lane.b32.xlu0 %v1067, 112
    %v1162 = vpop.permute.xlu0 %1161
    %1165 = vrot.lane.b32.xlu0 %v1132, 16
    %v1166 = vpop.permute.xlu0 %1165
    %1169 = vrot.lane.b32.xlu0 %v1115, 32
    %v1170 = vpop.permute.xlu0 %1169
    %1173 = vrot.lane.b32.xlu0 %v1133, 48
    %v1174 = vpop.permute.xlu0 %1173
    %1177 = vrot.lane.b32.xlu0 %v1124, 64
    %v1178 = vpop.permute.xlu0 %1177
    %1181 = vrot.lane.b32.xlu0 %v1134, 80
    %v1182 = vpop.permute.xlu0 %1181
    %1185 = vrot.lane.b32.xlu0 %v1131, 96
    %v1186 = vpop.permute.xlu0 %1185
    %1189 = vrot.lane.b32.xlu0 %v1135, 112
    %v1190 = vpop.permute.xlu0 %1189
    %v1192 = vsel %vm213, %v1040, %v1138
    %v1193 = vsel %vm215, %v1192, %v1142
    %v1194 = vsel %vm217, %v1193, %v1146
    %v1195 = vsel %vm219, %v1194, %v1150
    %v1196 = vsel %vm221, %v1195, %v1154
    %v1197 = vsel %vm223, %v1196, %v1158
    %v1198 = vsel %vm225, %v1197, %v1162
    %v1199 = vsel %vm213, %v1108, %v1166
    %v1200 = vsel %vm215, %v1199, %v1170
    %v1201 = vsel %vm217, %v1200, %v1174
    %v1202 = vsel %vm219, %v1201, %v1178
    %v1203 = vsel %vm221, %v1202, %v1182
    %v1204 = vsel %vm223, %v1203, %v1186
    %v1205 = vsel %vm225, %v1204, %v1190
    %1206 = vst [vmem:[#allocation2 + $0x20] sm:$0xf] %v1198
    %1207 = vst [vmem:[#allocation2 + $0x28] sm:$0xf] %v1205
    %v1208 = vld [vmem:[%s0 + $0x2] sm:$0xff]
    %v1209 = vld [vmem:[%s0 + $0xa] sm:$0xff]
    %v1210 = vld [vmem:[%s0 + $0x1a] sm:$0xff]
    %v1211 = vld [vmem:[%s0 + $0x22] sm:$0xff]
    %v1212 = vld [vmem:[%s0 + $0x32] sm:$0xff]
    %v1213 = vld [vmem:[%s0 + $0x3a] sm:$0xff]
    %v1214 = vld [vmem:[%s0 + $0x4a] sm:$0xff]
    %v1215 = vld [vmem:[%s0 + $0x52] sm:$0xff]
    %1224 = vrot.lane.b32.xlu0 %v1208, 124
    %v1225 = vpop.permute.xlu0 %1224
    %1226 = vrot.lane.b32.xlu0 %v1209, 124
    %v1227 = vpop.permute.xlu0 %1226
    %1228 = vrot.lane.b32.xlu0 %v1210, 124
    %v1229 = vpop.permute.xlu0 %1228
    %1230 = vrot.lane.b32.xlu0 %v1211, 124
    %v1231 = vpop.permute.xlu0 %1230
    %1232 = vrot.lane.b32.xlu0 %v1212, 124
    %v1233 = vpop.permute.xlu0 %1232
    %1234 = vrot.lane.b32.xlu0 %v1213, 124
    %v1235 = vpop.permute.xlu0 %1234
    %1236 = vrot.lane.b32.xlu0 %v1214, 124
    %v1237 = vpop.permute.xlu0 %1236
    %1238 = vrot.lane.b32.xlu0 %v1215, 124
    %v1239 = vpop.permute.xlu0 %1238
    %v1248 = vcombine.low %v1225, %v1233
    %v1249 = vcombine.high %v1225, %v1233
    %v1251 = vunpack.c.l.s4 1983009808
    %v1252 = vunpack.c.0.s8 %v1251
    %v1253 = vlaneseq
    %v1254 = vshrl.u32 %v1253, 7
    %v1255 = vsub.s32 %v1252, %v1254
    %v1256 = vrot.slane %v1248, %v1255
    %v1258 = vunpack.c.l.s4 1983009808
    %v1259 = vunpack.c.0.s8 %v1258
    %v1260 = vlaneseq
    %v1261 = vshrl.u32 %v1260, 7
    %v1262 = vsub.s32 %v1259, %v1261
    %v1263 = vrot.slane %v1249, %v1262
    %v1264 = vcombine.low %v1229, %v1237
    %v1265 = vcombine.high %v1229, %v1237
    %v1267 = vunpack.c.l.s4 1983009808
    %v1268 = vunpack.c.0.s8 %v1267
    %v1269 = vlaneseq
    %v1270 = vshrl.u32 %v1269, 7
    %v1271 = vsub.s32 %v1268, %v1270
    %v1272 = vrot.slane %v1264, %v1271
    %v1274 = vunpack.c.l.s4 1983009808
    %v1275 = vunpack.c.0.s8 %v1274
    %v1276 = vlaneseq
    %v1277 = vshrl.u32 %v1276, 7
    %v1278 = vsub.s32 %v1275, %v1277
    %v1279 = vrot.slane %v1265, %v1278
    %v1280 = vcombine.low %v1256, %v1272
    %v1281 = vcombine.high %v1256, %v1272
    %v1283 = vunpack.c.l.s4 1934713408
    %v1284 = vunpack.c.0.s8 %v1283
    %v1285 = vlaneseq
    %v1286 = vshrl.u32 %v1285, 7
    %v1287 = vsub.s32 %v1284, %v1286
    %v1288 = vrot.slane %v1280, %v1287
    %v1290 = vunpack.c.l.s4 1934713408
    %v1291 = vunpack.c.0.s8 %v1290
    %v1292 = vlaneseq
    %v1293 = vshrl.u32 %v1292, 7
    %v1294 = vsub.s32 %v1291, %v1293
    %v1295 = vrot.slane %v1281, %v1294
    %v1296 = vcombine.low %v1263, %v1279
    %v1297 = vcombine.high %v1263, %v1279
    %v1299 = vunpack.c.l.s4 1934713408
    %v1300 = vunpack.c.0.s8 %v1299
    %v1301 = vlaneseq
    %v1302 = vshrl.u32 %v1301, 7
    %v1303 = vsub.s32 %v1300, %v1302
    %v1304 = vrot.slane %v1296, %v1303
    %v1306 = vunpack.c.l.s4 1934713408
    %v1307 = vunpack.c.0.s8 %v1306
    %v1308 = vlaneseq
    %v1309 = vshrl.u32 %v1308, 7
    %v1310 = vsub.s32 %v1307, %v1309
    %v1311 = vrot.slane %v1297, %v1310
    %v1312 = vcombine.high %v1288, 0.0
    %v1313 = vcombine.high %v1295, 0.0
    %v1314 = vcombine.high %v1304, 0.0
    %v1315 = vcombine.high %v1311, 0.0
    %v1316 = vcombine.low %v1227, %v1235
    %v1317 = vcombine.high %v1227, %v1235
    %v1319 = vunpack.c.l.s4 1983009808
    %v1320 = vunpack.c.0.s8 %v1319
    %v1321 = vlaneseq
    %v1322 = vshrl.u32 %v1321, 7
    %v1323 = vsub.s32 %v1320, %v1322
    %v1324 = vrot.slane %v1316, %v1323
    %v1326 = vunpack.c.l.s4 1983009808
    %v1327 = vunpack.c.0.s8 %v1326
    %v1328 = vlaneseq
    %v1329 = vshrl.u32 %v1328, 7
    %v1330 = vsub.s32 %v1327, %v1329
    %v1331 = vrot.slane %v1317, %v1330
    %v1332 = vcombine.low %v1231, %v1239
    %v1333 = vcombine.high %v1231, %v1239
    %v1335 = vunpack.c.l.s4 1983009808
    %v1336 = vunpack.c.0.s8 %v1335
    %v1337 = vlaneseq
    %v1338 = vshrl.u32 %v1337, 7
    %v1339 = vsub.s32 %v1336, %v1338
    %v1340 = vrot.slane %v1332, %v1339
    %v1342 = vunpack.c.l.s4 1983009808
    %v1343 = vunpack.c.0.s8 %v1342
    %v1344 = vlaneseq
    %v1345 = vshrl.u32 %v1344, 7
    %v1346 = vsub.s32 %v1343, %v1345
    %v1347 = vrot.slane %v1333, %v1346
    %v1348 = vcombine.low %v1324, %v1340
    %v1349 = vcombine.high %v1324, %v1340
    %v1351 = vunpack.c.l.s4 1934713408
    %v1352 = vunpack.c.0.s8 %v1351
    %v1353 = vlaneseq
    %v1354 = vshrl.u32 %v1353, 7
    %v1355 = vsub.s32 %v1352, %v1354
    %v1356 = vrot.slane %v1348, %v1355
    %v1358 = vunpack.c.l.s4 1934713408
    %v1359 = vunpack.c.0.s8 %v1358
    %v1360 = vlaneseq
    %v1361 = vshrl.u32 %v1360, 7
    %v1362 = vsub.s32 %v1359, %v1361
    %v1363 = vrot.slane %v1349, %v1362
    %v1364 = vcombine.low %v1331, %v1347
    %v1365 = vcombine.high %v1331, %v1347
    %v1367 = vunpack.c.l.s4 1934713408
    %v1368 = vunpack.c.0.s8 %v1367
    %v1369 = vlaneseq
    %v1370 = vshrl.u32 %v1369, 7
    %v1371 = vsub.s32 %v1368, %v1370
    %v1372 = vrot.slane %v1364, %v1371
    %v1374 = vunpack.c.l.s4 1934713408
    %v1375 = vunpack.c.0.s8 %v1374
    %v1376 = vlaneseq
    %v1377 = vshrl.u32 %v1376, 7
    %v1378 = vsub.s32 %v1375, %v1377
    %v1379 = vrot.slane %v1365, %v1378
    %v1380 = vcombine.high %v1356, 0.0
    %v1381 = vcombine.high %v1363, 0.0
    %v1382 = vcombine.high %v1372, 0.0
    %v1383 = vcombine.high %v1379, 0.0
    %1385 = vrot.lane.b32.xlu0 %v1312, 16
    %v1386 = vpop.permute.xlu0 %1385
    %1389 = vrot.lane.b32.xlu0 %v1295, 32
    %v1390 = vpop.permute.xlu0 %1389
    %1393 = vrot.lane.b32.xlu0 %v1313, 48
    %v1394 = vpop.permute.xlu0 %1393
    %1397 = vrot.lane.b32.xlu0 %v1304, 64
    %v1398 = vpop.permute.xlu0 %1397
    %1401 = vrot.lane.b32.xlu0 %v1314, 80
    %v1402 = vpop.permute.xlu0 %1401
    %1405 = vrot.lane.b32.xlu0 %v1311, 96
    %v1406 = vpop.permute.xlu0 %1405
    %1409 = vrot.lane.b32.xlu0 %v1315, 112
    %v1410 = vpop.permute.xlu0 %1409
    %1413 = vrot.lane.b32.xlu0 %v1380, 16
    %v1414 = vpop.permute.xlu0 %1413
    %1417 = vrot.lane.b32.xlu0 %v1363, 32
    %v1418 = vpop.permute.xlu0 %1417
    %1421 = vrot.lane.b32.xlu0 %v1381, 48
    %v1422 = vpop.permute.xlu0 %1421
    %1425 = vrot.lane.b32.xlu0 %v1372, 64
    %v1426 = vpop.permute.xlu0 %1425
    %1429 = vrot.lane.b32.xlu0 %v1382, 80
    %v1430 = vpop.permute.xlu0 %1429
    %1433 = vrot.lane.b32.xlu0 %v1379, 96
    %v1434 = vpop.permute.xlu0 %1433
    %1437 = vrot.lane.b32.xlu0 %v1383, 112
    %v1438 = vpop.permute.xlu0 %1437
    %v1440 = vsel %vm213, %v1288, %v1386
    %v1441 = vsel %vm215, %v1440, %v1390
    %v1442 = vsel %vm217, %v1441, %v1394
    %v1443 = vsel %vm219, %v1442, %v1398
    %v1444 = vsel %vm221, %v1443, %v1402
    %v1445 = vsel %vm223, %v1444, %v1406
    %v1446 = vsel %vm225, %v1445, %v1410
    %v1447 = vsel %vm213, %v1356, %v1414
    %v1448 = vsel %vm215, %v1447, %v1418
    %v1449 = vsel %vm217, %v1448, %v1422
    %v1450 = vsel %vm219, %v1449, %v1426
    %v1451 = vsel %vm221, %v1450, %v1430
    %v1452 = vsel %vm223, %v1451, %v1434
    %v1453 = vsel %vm225, %v1452, %v1438
    %v1456 = vrot.slane %v1446, 4
    %v1457 = vrot.slane %v1453, 4
    %1460 = vst [vmem:[#allocation2 + $0x20] sm:$0xf0] %v1456
    %1461 = vst [vmem:[#allocation2 + $0x28] sm:$0xf0] %v1457
    %v1462 = vld [vmem:[%s0 + $0x4] sm:$0xff]
    %v1463 = vld [vmem:[%s0 + $0xc] sm:$0xff]
    %v1464 = vld [vmem:[%s0 + $0x1c] sm:$0xff]
    %v1465 = vld [vmem:[%s0 + $0x24] sm:$0xff]
    %v1466 = vld [vmem:[%s0 + $0x34] sm:$0xff]
    %v1467 = vld [vmem:[%s0 + $0x3c] sm:$0xff]
    %v1468 = vld [vmem:[%s0 + $0x4c] sm:$0xff]
    %v1469 = vld [vmem:[%s0 + $0x54] sm:$0xff]
    %v1470 = vcombine.low %v1462, %v1466
    %v1471 = vcombine.high %v1462, %v1466
    %v1473 = vunpack.c.l.s4 1983009808
    %v1474 = vunpack.c.0.s8 %v1473
    %v1475 = vlaneseq
    %v1476 = vshrl.u32 %v1475, 7
    %v1477 = vsub.s32 %v1474, %v1476
    %v1478 = vrot.slane %v1470, %v1477
    %v1480 = vunpack.c.l.s4 1983009808
    %v1481 = vunpack.c.0.s8 %v1480
    %v1482 = vlaneseq
    %v1483 = vshrl.u32 %v1482, 7
    %v1484 = vsub.s32 %v1481, %v1483
    %v1485 = vrot.slane %v1471, %v1484
    %v1486 = vcombine.low %v1464, %v1468
    %v1487 = vcombine.high %v1464, %v1468
    %v1489 = vunpack.c.l.s4 1983009808
    %v1490 = vunpack.c.0.s8 %v1489
    %v1491 = vlaneseq
    %v1492 = vshrl.u32 %v1491, 7
    %v1493 = vsub.s32 %v1490, %v1492
    %v1494 = vrot.slane %v1486, %v1493
    %v1496 = vunpack.c.l.s4 1983009808
    %v1497 = vunpack.c.0.s8 %v1496
    %v1498 = vlaneseq
    %v1499 = vshrl.u32 %v1498, 7
    %v1500 = vsub.s32 %v1497, %v1499
    %v1501 = vrot.slane %v1487, %v1500
    %v1502 = vcombine.low %v1478, %v1494
    %v1503 = vcombine.high %v1478, %v1494
    %v1505 = vunpack.c.l.s4 1934713408
    %v1506 = vunpack.c.0.s8 %v1505
    %v1507 = vlaneseq
    %v1508 = vshrl.u32 %v1507, 7
    %v1509 = vsub.s32 %v1506, %v1508
    %v1510 = vrot.slane %v1502, %v1509
    %v1512 = vunpack.c.l.s4 1934713408
    %v1513 = vunpack.c.0.s8 %v1512
    %v1514 = vlaneseq
    %v1515 = vshrl.u32 %v1514, 7
    %v1516 = vsub.s32 %v1513, %v1515
    %v1517 = vrot.slane %v1503, %v1516
    %v1518 = vcombine.low %v1485, %v1501
    %v1519 = vcombine.high %v1485, %v1501
    %v1521 = vunpack.c.l.s4 1934713408
    %v1522 = vunpack.c.0.s8 %v1521
    %v1523 = vlaneseq
    %v1524 = vshrl.u32 %v1523, 7
    %v1525 = vsub.s32 %v1522, %v1524
    %v1526 = vrot.slane %v1518, %v1525
    %v1528 = vunpack.c.l.s4 1934713408
    %v1529 = vunpack.c.0.s8 %v1528
    %v1530 = vlaneseq
    %v1531 = vshrl.u32 %v1530, 7
    %v1532 = vsub.s32 %v1529, %v1531
    %v1533 = vrot.slane %v1519, %v1532
    %v1534 = vcombine.high %v1510, 0.0
    %v1535 = vcombine.high %v1517, 0.0
    %v1536 = vcombine.high %v1526, 0.0
    %v1537 = vcombine.high %v1533, 0.0
    %v1538 = vcombine.low %v1463, %v1467
    %v1539 = vcombine.high %v1463, %v1467
    %v1541 = vunpack.c.l.s4 1983009808
    %v1542 = vunpack.c.0.s8 %v1541
    %v1543 = vlaneseq
    %v1544 = vshrl.u32 %v1543, 7
    %v1545 = vsub.s32 %v1542, %v1544
    %v1546 = vrot.slane %v1538, %v1545
    %v1548 = vunpack.c.l.s4 1983009808
    %v1549 = vunpack.c.0.s8 %v1548
    %v1550 = vlaneseq
    %v1551 = vshrl.u32 %v1550, 7
    %v1552 = vsub.s32 %v1549, %v1551
    %v1553 = vrot.slane %v1539, %v1552
    %v1554 = vcombine.low %v1465, %v1469
    %v1555 = vcombine.high %v1465, %v1469
    %v1557 = vunpack.c.l.s4 1983009808
    %v1558 = vunpack.c.0.s8 %v1557
    %v1559 = vlaneseq
    %v1560 = vshrl.u32 %v1559, 7
    %v1561 = vsub.s32 %v1558, %v1560
    %v1562 = vrot.slane %v1554, %v1561
    %v1564 = vunpack.c.l.s4 1983009808
    %v1565 = vunpack.c.0.s8 %v1564
    %v1566 = vlaneseq
    %v1567 = vshrl.u32 %v1566, 7
    %v1568 = vsub.s32 %v1565, %v1567
    %v1569 = vrot.slane %v1555, %v1568
    %v1570 = vcombine.low %v1546, %v1562
    %v1571 = vcombine.high %v1546, %v1562
    %v1573 = vunpack.c.l.s4 1934713408
    %v1574 = vunpack.c.0.s8 %v1573
    %v1575 = vlaneseq
    %v1576 = vshrl.u32 %v1575, 7
    %v1577 = vsub.s32 %v1574, %v1576
    %v1578 = vrot.slane %v1570, %v1577
    %v1580 = vunpack.c.l.s4 1934713408
    %v1581 = vunpack.c.0.s8 %v1580
    %v1582 = vlaneseq
    %v1583 = vshrl.u32 %v1582, 7
    %v1584 = vsub.s32 %v1581, %v1583
    %v1585 = vrot.slane %v1571, %v1584
    %v1586 = vcombine.low %v1553, %v1569
    %v1587 = vcombine.high %v1553, %v1569
    %v1589 = vunpack.c.l.s4 1934713408
    %v1590 = vunpack.c.0.s8 %v1589
    %v1591 = vlaneseq
    %v1592 = vshrl.u32 %v1591, 7
    %v1593 = vsub.s32 %v1590, %v1592
    %v1594 = vrot.slane %v1586, %v1593
    %v1596 = vunpack.c.l.s4 1934713408
    %v1597 = vunpack.c.0.s8 %v1596
    %v1598 = vlaneseq
    %v1599 = vshrl.u32 %v1598, 7
    %v1600 = vsub.s32 %v1597, %v1599
    %v1601 = vrot.slane %v1587, %v1600
    %v1602 = vcombine.high %v1578, 0.0
    %v1603 = vcombine.high %v1585, 0.0
    %v1604 = vcombine.high %v1594, 0.0
    %v1605 = vcombine.high %v1601, 0.0
    %1607 = vrot.lane.b32.xlu0 %v1534, 16
    %v1608 = vpop.permute.xlu0 %1607
    %1611 = vrot.lane.b32.xlu0 %v1517, 32
    %v1612 = vpop.permute.xlu0 %1611
    %1615 = vrot.lane.b32.xlu0 %v1535, 48
    %v1616 = vpop.permute.xlu0 %1615
    %1619 = vrot.lane.b32.xlu0 %v1526, 64
    %v1620 = vpop.permute.xlu0 %1619
    %1623 = vrot.lane.b32.xlu0 %v1536, 80
    %v1624 = vpop.permute.xlu0 %1623
    %1627 = vrot.lane.b32.xlu0 %v1533, 96
    %v1628 = vpop.permute.xlu0 %1627
    %1631 = vrot.lane.b32.xlu0 %v1537, 112
    %v1632 = vpop.permute.xlu0 %1631
    %1635 = vrot.lane.b32.xlu0 %v1602, 16
    %v1636 = vpop.permute.xlu0 %1635
    %1639 = vrot.lane.b32.xlu0 %v1585, 32
    %v1640 = vpop.permute.xlu0 %1639
    %1643 = vrot.lane.b32.xlu0 %v1603, 48
    %v1644 = vpop.permute.xlu0 %1643
    %1647 = vrot.lane.b32.xlu0 %v1594, 64
    %v1648 = vpop.permute.xlu0 %1647
    %1651 = vrot.lane.b32.xlu0 %v1604, 80
    %v1652 = vpop.permute.xlu0 %1651
    %1655 = vrot.lane.b32.xlu0 %v1601, 96
    %v1656 = vpop.permute.xlu0 %1655
    %1659 = vrot.lane.b32.xlu0 %v1605, 112
    %v1660 = vpop.permute.xlu0 %1659
    %v1662 = vsel %vm213, %v1510, %v1608
    %v1663 = vsel %vm215, %v1662, %v1612
    %v1664 = vsel %vm217, %v1663, %v1616
    %v1665 = vsel %vm219, %v1664, %v1620
    %v1666 = vsel %vm221, %v1665, %v1624
    %v1667 = vsel %vm223, %v1666, %v1628
    %v1668 = vsel %vm225, %v1667, %v1632
    %v1669 = vsel %vm213, %v1578, %v1636
    %v1670 = vsel %vm215, %v1669, %v1640
    %v1671 = vsel %vm217, %v1670, %v1644
    %v1672 = vsel %vm219, %v1671, %v1648
    %v1673 = vsel %vm221, %v1672, %v1652
    %v1674 = vsel %vm223, %v1673, %v1656
    %v1675 = vsel %vm225, %v1674, %v1660
    %1676 = vst [vmem:[#allocation2 + $0x30] sm:$0xf] %v1668
    %1677 = vst [vmem:[#allocation2 + $0x38] sm:$0xf] %v1675
    %v1678 = vld [vmem:[%s0 + $0x4] sm:$0xff]
    %v1679 = vld [vmem:[%s0 + $0xc] sm:$0xff]
    %v1680 = vld [vmem:[%s0 + $0x1c] sm:$0xff]
    %v1681 = vld [vmem:[%s0 + $0x24] sm:$0xff]
    %v1682 = vld [vmem:[%s0 + $0x34] sm:$0xff]
    %v1683 = vld [vmem:[%s0 + $0x3c] sm:$0xff]
    %v1684 = vld [vmem:[%s0 + $0x4c] sm:$0xff]
    %v1685 = vld [vmem:[%s0 + $0x54] sm:$0xff]
    %1694 = vrot.lane.b32.xlu0 %v1678, 126
    %v1695 = vpop.permute.xlu0 %1694
    %1696 = vrot.lane.b32.xlu0 %v1679, 126
    %v1697 = vpop.permute.xlu0 %1696
    %1698 = vrot.lane.b32.xlu0 %v1680, 126
    %v1699 = vpop.permute.xlu0 %1698
    %1700 = vrot.lane.b32.xlu0 %v1681, 126
    %v1701 = vpop.permute.xlu0 %1700
    %1702 = vrot.lane.b32.xlu0 %v1682, 126
    %v1703 = vpop.permute.xlu0 %1702
    %1704 = vrot.lane.b32.xlu0 %v1683, 126
    %v1705 = vpop.permute.xlu0 %1704
    %1706 = vrot.lane.b32.xlu0 %v1684, 126
    %v1707 = vpop.permute.xlu0 %1706
    %1708 = vrot.lane.b32.xlu0 %v1685, 126
    %v1709 = vpop.permute.xlu0 %1708
    %v1718 = vcombine.low %v1695, %v1703
    %v1719 = vcombine.high %v1695, %v1703
    %v1721 = vunpack.c.l.s4 1983009808
    %v1722 = vunpack.c.0.s8 %v1721
    %v1723 = vlaneseq
    %v1724 = vshrl.u32 %v1723, 7
    %v1725 = vsub.s32 %v1722, %v1724
    %v1726 = vrot.slane %v1718, %v1725
    %v1728 = vunpack.c.l.s4 1983009808
    %v1729 = vunpack.c.0.s8 %v1728
    %v1730 = vlaneseq
    %v1731 = vshrl.u32 %v1730, 7
    %v1732 = vsub.s32 %v1729, %v1731
    %v1733 = vrot.slane %v1719, %v1732
    %v1734 = vcombine.low %v1699, %v1707
    %v1735 = vcombine.high %v1699, %v1707
    %v1737 = vunpack.c.l.s4 1983009808
    %v1738 = vunpack.c.0.s8 %v1737
    %v1739 = vlaneseq
    %v1740 = vshrl.u32 %v1739, 7
    %v1741 = vsub.s32 %v1738, %v1740
    %v1742 = vrot.slane %v1734, %v1741
    %v1744 = vunpack.c.l.s4 1983009808
    %v1745 = vunpack.c.0.s8 %v1744
    %v1746 = vlaneseq
    %v1747 = vshrl.u32 %v1746, 7
    %v1748 = vsub.s32 %v1745, %v1747
    %v1749 = vrot.slane %v1735, %v1748
    %v1750 = vcombine.low %v1726, %v1742
    %v1751 = vcombine.high %v1726, %v1742
    %v1753 = vunpack.c.l.s4 1934713408
    %v1754 = vunpack.c.0.s8 %v1753
    %v1755 = vlaneseq
    %v1756 = vshrl.u32 %v1755, 7
    %v1757 = vsub.s32 %v1754, %v1756
    %v1758 = vrot.slane %v1750, %v1757
    %v1760 = vunpack.c.l.s4 1934713408
    %v1761 = vunpack.c.0.s8 %v1760
    %v1762 = vlaneseq
    %v1763 = vshrl.u32 %v1762, 7
    %v1764 = vsub.s32 %v1761, %v1763
    %v1765 = vrot.slane %v1751, %v1764
    %v1766 = vcombine.low %v1733, %v1749
    %v1767 = vcombine.high %v1733, %v1749
    %v1769 = vunpack.c.l.s4 1934713408
    %v1770 = vunpack.c.0.s8 %v1769
    %v1771 = vlaneseq
    %v1772 = vshrl.u32 %v1771, 7
    %v1773 = vsub.s32 %v1770, %v1772
    %v1774 = vrot.slane %v1766, %v1773
    %v1776 = vunpack.c.l.s4 1934713408
    %v1777 = vunpack.c.0.s8 %v1776
    %v1778 = vlaneseq
    %v1779 = vshrl.u32 %v1778, 7
    %v1780 = vsub.s32 %v1777, %v1779
    %v1781 = vrot.slane %v1767, %v1780
    %v1782 = vcombine.high %v1758, 0.0
    %v1783 = vcombine.high %v1765, 0.0
    %v1784 = vcombine.high %v1774, 0.0
    %v1785 = vcombine.high %v1781, 0.0
    %v1786 = vcombine.low %v1697, %v1705
    %v1787 = vcombine.high %v1697, %v1705
    %v1789 = vunpack.c.l.s4 1983009808
    %v1790 = vunpack.c.0.s8 %v1789
    %v1791 = vlaneseq
    %v1792 = vshrl.u32 %v1791, 7
    %v1793 = vsub.s32 %v1790, %v1792
    %v1794 = vrot.slane %v1786, %v1793
    %v1796 = vunpack.c.l.s4 1983009808
    %v1797 = vunpack.c.0.s8 %v1796
    %v1798 = vlaneseq
    %v1799 = vshrl.u32 %v1798, 7
    %v1800 = vsub.s32 %v1797, %v1799
    %v1801 = vrot.slane %v1787, %v1800
    %v1802 = vcombine.low %v1701, %v1709
    %v1803 = vcombine.high %v1701, %v1709
    %v1805 = vunpack.c.l.s4 1983009808
    %v1806 = vunpack.c.0.s8 %v1805
    %v1807 = vlaneseq
    %v1808 = vshrl.u32 %v1807, 7
    %v1809 = vsub.s32 %v1806, %v1808
    %v1810 = vrot.slane %v1802, %v1809
    %v1812 = vunpack.c.l.s4 1983009808
    %v1813 = vunpack.c.0.s8 %v1812
    %v1814 = vlaneseq
    %v1815 = vshrl.u32 %v1814, 7
    %v1816 = vsub.s32 %v1813, %v1815
    %v1817 = vrot.slane %v1803, %v1816
    %v1818 = vcombine.low %v1794, %v1810
    %v1819 = vcombine.high %v1794, %v1810
    %v1821 = vunpack.c.l.s4 1934713408
    %v1822 = vunpack.c.0.s8 %v1821
    %v1823 = vlaneseq
    %v1824 = vshrl.u32 %v1823, 7
    %v1825 = vsub.s32 %v1822, %v1824
    %v1826 = vrot.slane %v1818, %v1825
    %v1828 = vunpack.c.l.s4 1934713408
    %v1829 = vunpack.c.0.s8 %v1828
    %v1830 = vlaneseq
    %v1831 = vshrl.u32 %v1830, 7
    %v1832 = vsub.s32 %v1829, %v1831
    %v1833 = vrot.slane %v1819, %v1832
    %v1834 = vcombine.low %v1801, %v1817
    %v1835 = vcombine.high %v1801, %v1817
    %v1837 = vunpack.c.l.s4 1934713408
    %v1838 = vunpack.c.0.s8 %v1837
    %v1839 = vlaneseq
    %v1840 = vshrl.u32 %v1839, 7
    %v1841 = vsub.s32 %v1838, %v1840
    %v1842 = vrot.slane %v1834, %v1841
    %v1844 = vunpack.c.l.s4 1934713408
    %v1845 = vunpack.c.0.s8 %v1844
    %v1846 = vlaneseq
    %v1847 = vshrl.u32 %v1846, 7
    %v1848 = vsub.s32 %v1845, %v1847
    %v1849 = vrot.slane %v1835, %v1848
    %v1850 = vcombine.high %v1826, 0.0
    %v1851 = vcombine.high %v1833, 0.0
    %v1852 = vcombine.high %v1842, 0.0
    %v1853 = vcombine.high %v1849, 0.0
    %1855 = vrot.lane.b32.xlu0 %v1782, 16
    %v1856 = vpop.permute.xlu0 %1855
    %1859 = vrot.lane.b32.xlu0 %v1765, 32
    %v1860 = vpop.permute.xlu0 %1859
    %1863 = vrot.lane.b32.xlu0 %v1783, 48
    %v1864 = vpop.permute.xlu0 %1863
    %1867 = vrot.lane.b32.xlu0 %v1774, 64
    %v1868 = vpop.permute.xlu0 %1867
    %1871 = vrot.lane.b32.xlu0 %v1784, 80
    %v1872 = vpop.permute.xlu0 %1871
    %1875 = vrot.lane.b32.xlu0 %v1781, 96
    %v1876 = vpop.permute.xlu0 %1875
    %1879 = vrot.lane.b32.xlu0 %v1785, 112
    %v1880 = vpop.permute.xlu0 %1879
    %1883 = vrot.lane.b32.xlu0 %v1850, 16
    %v1884 = vpop.permute.xlu0 %1883
    %1887 = vrot.lane.b32.xlu0 %v1833, 32
    %v1888 = vpop.permute.xlu0 %1887
    %1891 = vrot.lane.b32.xlu0 %v1851, 48
    %v1892 = vpop.permute.xlu0 %1891
    %1895 = vrot.lane.b32.xlu0 %v1842, 64
    %v1896 = vpop.permute.xlu0 %1895
    %1899 = vrot.lane.b32.xlu0 %v1852, 80
    %v1900 = vpop.permute.xlu0 %1899
    %1903 = vrot.lane.b32.xlu0 %v1849, 96
    %v1904 = vpop.permute.xlu0 %1903
    %1907 = vrot.lane.b32.xlu0 %v1853, 112
    %v1908 = vpop.permute.xlu0 %1907
    %v1910 = vsel %vm213, %v1758, %v1856
    %v1911 = vsel %vm215, %v1910, %v1860
    %v1912 = vsel %vm217, %v1911, %v1864
    %v1913 = vsel %vm219, %v1912, %v1868
    %v1914 = vsel %vm221, %v1913, %v1872
    %v1915 = vsel %vm223, %v1914, %v1876
    %v1916 = vsel %vm225, %v1915, %v1880
    %v1917 = vsel %vm213, %v1826, %v1884
    %v1918 = vsel %vm215, %v1917, %v1888
    %v1919 = vsel %vm217, %v1918, %v1892
    %v1920 = vsel %vm219, %v1919, %v1896
    %v1921 = vsel %vm221, %v1920, %v1900
    %v1922 = vsel %vm223, %v1921, %v1904
    %v1923 = vsel %vm225, %v1922, %v1908
    %v1926 = vrot.slane %v1916, 4
    %v1927 = vrot.slane %v1923, 4
    %1930 = vst [vmem:[#allocation2 + $0x30] sm:$0xf0] %v1926
    %1931 = vst [vmem:[#allocation2 + $0x38] sm:$0xf0] %v1927
    %v1932 = vld [vmem:[%s0 + $0x4] sm:$0xff]
    %v1933 = vld [vmem:[%s0 + $0xc] sm:$0xff]
    %v1934 = vld [vmem:[%s0 + $0x1c] sm:$0xff]
    %v1935 = vld [vmem:[%s0 + $0x24] sm:$0xff]
    %v1936 = vld [vmem:[%s0 + $0x34] sm:$0xff]
    %v1937 = vld [vmem:[%s0 + $0x3c] sm:$0xff]
    %v1938 = vld [vmem:[%s0 + $0x4c] sm:$0xff]
    %v1939 = vld [vmem:[%s0 + $0x54] sm:$0xff]
    %1948 = vrot.lane.b32.xlu0 %v1932, 124
    %v1949 = vpop.permute.xlu0 %1948
    %1950 = vrot.lane.b32.xlu0 %v1933, 124
    %v1951 = vpop.permute.xlu0 %1950
    %1952 = vrot.lane.b32.xlu0 %v1934, 124
    %v1953 = vpop.permute.xlu0 %1952
    %1954 = vrot.lane.b32.xlu0 %v1935, 124
    %v1955 = vpop.permute.xlu0 %1954
    %1956 = vrot.lane.b32.xlu0 %v1936, 124
    %v1957 = vpop.permute.xlu0 %1956
    %1958 = vrot.lane.b32.xlu0 %v1937, 124
    %v1959 = vpop.permute.xlu0 %1958
    %1960 = vrot.lane.b32.xlu0 %v1938, 124
    %v1961 = vpop.permute.xlu0 %1960
    %1962 = vrot.lane.b32.xlu0 %v1939, 124
    %v1963 = vpop.permute.xlu0 %1962
    %v1972 = vcombine.low %v1949, %v1957
    %v1973 = vcombine.high %v1949, %v1957
    %v1975 = vunpack.c.l.s4 1983009808
    %v1976 = vunpack.c.0.s8 %v1975
    %v1977 = vlaneseq
    %v1978 = vshrl.u32 %v1977, 7
    %v1979 = vsub.s32 %v1976, %v1978
    %v1980 = vrot.slane %v1972, %v1979
    %v1982 = vunpack.c.l.s4 1983009808
    %v1983 = vunpack.c.0.s8 %v1982
    %v1984 = vlaneseq
    %v1985 = vshrl.u32 %v1984, 7
    %v1986 = vsub.s32 %v1983, %v1985
    %v1987 = vrot.slane %v1973, %v1986
    %v1988 = vcombine.low %v1953, %v1961
    %v1989 = vcombine.high %v1953, %v1961
    %v1991 = vunpack.c.l.s4 1983009808
    %v1992 = vunpack.c.0.s8 %v1991
    %v1993 = vlaneseq
    %v1994 = vshrl.u32 %v1993, 7
    %v1995 = vsub.s32 %v1992, %v1994
    %v1996 = vrot.slane %v1988, %v1995
    %v1998 = vunpack.c.l.s4 1983009808
    %v1999 = vunpack.c.0.s8 %v1998
    %v2000 = vlaneseq
    %v2001 = vshrl.u32 %v2000, 7
    %v2002 = vsub.s32 %v1999, %v2001
    %v2003 = vrot.slane %v1989, %v2002
    %v2004 = vcombine.low %v1980, %v1996
    %v2005 = vcombine.high %v1980, %v1996
    %v2007 = vunpack.c.l.s4 1934713408
    %v2008 = vunpack.c.0.s8 %v2007
    %v2009 = vlaneseq
    %v2010 = vshrl.u32 %v2009, 7
    %v2011 = vsub.s32 %v2008, %v2010
    %v2012 = vrot.slane %v2004, %v2011
    %v2014 = vunpack.c.l.s4 1934713408
    %v2015 = vunpack.c.0.s8 %v2014
    %v2016 = vlaneseq
    %v2017 = vshrl.u32 %v2016, 7
    %v2018 = vsub.s32 %v2015, %v2017
    %v2019 = vrot.slane %v2005, %v2018
    %v2020 = vcombine.low %v1987, %v2003
    %v2021 = vcombine.high %v1987, %v2003
    %v2023 = vunpack.c.l.s4 1934713408
    %v2024 = vunpack.c.0.s8 %v2023
    %v2025 = vlaneseq
    %v2026 = vshrl.u32 %v2025, 7
    %v2027 = vsub.s32 %v2024, %v2026
    %v2028 = vrot.slane %v2020, %v2027
    %v2030 = vunpack.c.l.s4 1934713408
    %v2031 = vunpack.c.0.s8 %v2030
    %v2032 = vlaneseq
    %v2033 = vshrl.u32 %v2032, 7
    %v2034 = vsub.s32 %v2031, %v2033
    %v2035 = vrot.slane %v2021, %v2034
    %v2036 = vcombine.high %v2012, 0.0
    %v2037 = vcombine.high %v2019, 0.0
    %v2038 = vcombine.high %v2028, 0.0
    %v2039 = vcombine.high %v2035, 0.0
    %v2040 = vcombine.low %v1951, %v1959
    %v2041 = vcombine.high %v1951, %v1959
    %v2043 = vunpack.c.l.s4 1983009808
    %v2044 = vunpack.c.0.s8 %v2043
    %v2045 = vlaneseq
    %v2046 = vshrl.u32 %v2045, 7
    %v2047 = vsub.s32 %v2044, %v2046
    %v2048 = vrot.slane %v2040, %v2047
    %v2050 = vunpack.c.l.s4 1983009808
    %v2051 = vunpack.c.0.s8 %v2050
    %v2052 = vlaneseq
    %v2053 = vshrl.u32 %v2052, 7
    %v2054 = vsub.s32 %v2051, %v2053
    %v2055 = vrot.slane %v2041, %v2054
    %v2056 = vcombine.low %v1955, %v1963
    %v2057 = vcombine.high %v1955, %v1963
    %v2059 = vunpack.c.l.s4 1983009808
    %v2060 = vunpack.c.0.s8 %v2059
    %v2061 = vlaneseq
    %v2062 = vshrl.u32 %v2061, 7
    %v2063 = vsub.s32 %v2060, %v2062
    %v2064 = vrot.slane %v2056, %v2063
    %v2066 = vunpack.c.l.s4 1983009808
    %v2067 = vunpack.c.0.s8 %v2066
    %v2068 = vlaneseq
    %v2069 = vshrl.u32 %v2068, 7
    %v2070 = vsub.s32 %v2067, %v2069
    %v2071 = vrot.slane %v2057, %v2070
    %v2072 = vcombine.low %v2048, %v2064
    %v2073 = vcombine.high %v2048, %v2064
    %v2075 = vunpack.c.l.s4 1934713408
    %v2076 = vunpack.c.0.s8 %v2075
    %v2077 = vlaneseq
    %v2078 = vshrl.u32 %v2077, 7
    %v2079 = vsub.s32 %v2076, %v2078
    %v2080 = vrot.slane %v2072, %v2079
    %v2082 = vunpack.c.l.s4 1934713408
    %v2083 = vunpack.c.0.s8 %v2082
    %v2084 = vlaneseq
    %v2085 = vshrl.u32 %v2084, 7
    %v2086 = vsub.s32 %v2083, %v2085
    %v2087 = vrot.slane %v2073, %v2086
    %v2088 = vcombine.low %v2055, %v2071
    %v2089 = vcombine.high %v2055, %v2071
    %v2091 = vunpack.c.l.s4 1934713408
    %v2092 = vunpack.c.0.s8 %v2091
    %v2093 = vlaneseq
    %v2094 = vshrl.u32 %v2093, 7
    %v2095 = vsub.s32 %v2092, %v2094
    %v2096 = vrot.slane %v2088, %v2095
    %v2098 = vunpack.c.l.s4 1934713408
    %v2099 = vunpack.c.0.s8 %v2098
    %v2100 = vlaneseq
    %v2101 = vshrl.u32 %v2100, 7
    %v2102 = vsub.s32 %v2099, %v2101
    %v2103 = vrot.slane %v2089, %v2102
    %v2104 = vcombine.high %v2080, 0.0
    %v2105 = vcombine.high %v2087, 0.0
    %v2106 = vcombine.high %v2096, 0.0
    %v2107 = vcombine.high %v2103, 0.0
    %2109 = vrot.lane.b32.xlu0 %v2036, 16
    %v2110 = vpop.permute.xlu0 %2109
    %2113 = vrot.lane.b32.xlu0 %v2019, 32
    %v2114 = vpop.permute.xlu0 %2113
    %2117 = vrot.lane.b32.xlu0 %v2037, 48
    %v2118 = vpop.permute.xlu0 %2117
    %2121 = vrot.lane.b32.xlu0 %v2028, 64
    %v2122 = vpop.permute.xlu0 %2121
    %2125 = vrot.lane.b32.xlu0 %v2038, 80
    %v2126 = vpop.permute.xlu0 %2125
    %2129 = vrot.lane.b32.xlu0 %v2035, 96
    %v2130 = vpop.permute.xlu0 %2129
    %2133 = vrot.lane.b32.xlu0 %v2039, 112
    %v2134 = vpop.permute.xlu0 %2133
    %2137 = vrot.lane.b32.xlu0 %v2104, 16
    %v2138 = vpop.permute.xlu0 %2137
    %2141 = vrot.lane.b32.xlu0 %v2087, 32
    %v2142 = vpop.permute.xlu0 %2141
    %2145 = vrot.lane.b32.xlu0 %v2105, 48
    %v2146 = vpop.permute.xlu0 %2145
    %2149 = vrot.lane.b32.xlu0 %v2096, 64
    %v2150 = vpop.permute.xlu0 %2149
    %2153 = vrot.lane.b32.xlu0 %v2106, 80
    %v2154 = vpop.permute.xlu0 %2153
    %2157 = vrot.lane.b32.xlu0 %v2103, 96
    %v2158 = vpop.permute.xlu0 %2157
    %2161 = vrot.lane.b32.xlu0 %v2107, 112
    %v2162 = vpop.permute.xlu0 %2161
    %v2164 = vsel %vm213, %v2012, %v2110
    %v2165 = vsel %vm215, %v2164, %v2114
    %v2166 = vsel %vm217, %v2165, %v2118
    %v2167 = vsel %vm219, %v2166, %v2122
    %v2168 = vsel %vm221, %v2167, %v2126
    %v2169 = vsel %vm223, %v2168, %v2130
    %v2170 = vsel %vm225, %v2169, %v2134
    %v2171 = vsel %vm213, %v2080, %v2138
    %v2172 = vsel %vm215, %v2171, %v2142
    %v2173 = vsel %vm217, %v2172, %v2146
    %v2174 = vsel %vm219, %v2173, %v2150
    %v2175 = vsel %vm221, %v2174, %v2154
    %v2176 = vsel %vm223, %v2175, %v2158
    %v2177 = vsel %vm225, %v2176, %v2162
    %2178 = vst [vmem:[#allocation2 + $0x40] sm:$0xf] %v2170
    %2179 = vst [vmem:[#allocation2 + $0x48] sm:$0xf] %v2177
    %v2180 = vld [vmem:[#allocation2] sm:$0xff]
    %v2181 = vld [vmem:[#allocation2 + $0x8] sm:$0xff]
    %v2182 = vld [vmem:[#allocation2 + $0x10] sm:$0xff]
    %v2183 = vld [vmem:[#allocation2 + $0x18] sm:$0xff]
    %v2184 = vld [vmem:[#allocation2 + $0x20] sm:$0xff]
    %v2185 = vld [vmem:[#allocation2 + $0x28] sm:$0xff]
    %v2186 = vld [vmem:[#allocation2 + $0x30] sm:$0xff]
    %v2187 = vld [vmem:[#allocation2 + $0x38] sm:$0xff]
    %v2188 = vld [vmem:[#allocation2 + $0x40] sm:$0xf]
    %v2189 = vld [vmem:[#allocation2 + $0x48] sm:$0xf]
    %vm2190 = vcmask 293888
    %v2192 = vsel %vm2190, %v12, 0
    %vm2194 = vcmask 1043456
    %v2196 = vsel %vm2194, %v2188, 0
    %v2199 = vsel %vm2194, %v2189, 0
    %2201 = vmatprep.subr.mxu0 0.0
    %2202 = vmatpush1.msra.mxu0 0.0
    %2203 = vmatprep.subr.mxu0 0.0
    %2204 = vmatpush1.msra.mxu0 0.0
    %2205 = vmatprep.subr.mxu0 0.0
    %2206 = vmatpush1.msra.mxu0 0.0
    %2207 = vmatprep.subr.mxu0 0.0
    %2208 = vmatpush1.msra.mxu0 0.0
    %2209 = vmatprep.subr.mxu0 0.0
    %2210 = vmatpush1.msra.mxu0 0.0
    %2211 = vmatprep.subr.mxu0 0.0
    %2212 = vmatpush1.msra.mxu0 0.0
    %2213 = vmatprep.subr.mxu0 0.0
    %2214 = vmatpush1.msra.mxu0 0.0
    %2215 = vmatprep.subr.mxu0 0.0
    %2216 = vmatpush1.msra.mxu0 0.0
    %2217 = vmatprep.subr.mxu0 0.0
    %2218 = vmatpush1.msra.mxu0 0.0
    %2219 = vmatprep.subr.mxu0 0.0
    %2220 = vmatpush1.msra.mxu0 0.0
    %2221 = vmatprep.subr.mxu0 0.0
    %2222 = vmatpush1.msra.mxu0 0.0
    %2223 = vmatprep.subr.mxu0 %v2199
    %2224 = vmatpush1.msra.mxu0 %v2196
    %2225 = vmatprep.subr.mxu0 %v2187
    %2226 = vmatpush1.msra.mxu0 %v2186
    %2227 = vmatprep.subr.mxu0 %v2185
    %2228 = vmatpush1.msra.mxu0 %v2184
    %2229 = vmatprep.subr.mxu0 %v2183
    %2230 = vmatpush1.msra.mxu0 %v2182
    %2231 = vmatprep.subr.mxu0 %v2181
    %2232 = vmatpush1.msra.mxu0 %v2180
    %2233 = vmatprep.subr.mxu0 0.0
    %2234 = vmatpush2.msra.mxu0 0.0
    %2235 = vmatprep.subr.mxu0 0.0
    %2236 = vmatpush2.msra.mxu0 0.0
    %2237 = vmatprep.subr.mxu0 0.0
    %2238 = vmatpush2.msra.mxu0 0.0
    %2239 = vmatprep.subr.mxu0 0.0
    %2240 = vmatpush2.msra.mxu0 0.0
    %2241 = vmatprep.subr.mxu0 0.0
    %2242 = vmatpush2.msra.mxu0 0.0
    %2243 = vmatprep.subr.mxu0 0.0
    %2244 = vmatpush2.msra.mxu0 0.0
    %2245 = vmatprep.subr.mxu0 0.0
    %2246 = vmatpush2.msra.mxu0 0.0
    %2247 = vmatprep.subr.mxu0 0.0
    %2248 = vmatpush2.msra.mxu0 0.0
    %2249 = vmatprep.subr.mxu0 0.0
    %2250 = vmatpush2.msra.mxu0 0.0
    %2251 = vmatprep.subr.mxu0 0.0
    %2252 = vmatpush2.msra.mxu0 0.0
    %2253 = vmatprep.subr.mxu0 0.0
    %2254 = vmatpush2.msra.mxu0 0.0
    %2255 = vmatprep.subr.mxu0 0.0
    %2256 = vmatpush2.msra.mxu0 0.0
    %2257 = vmatprep.subr.mxu0 0.0
    %2258 = vmatpush2.msra.mxu0 0.0
    %2259 = vmatprep.subr.mxu0 0.0
    %2260 = vmatpush2.msra.mxu0 0.0
    %2261 = vmatprep.subr.mxu0 0.0
    %2262 = vmatpush2.msra.mxu0 0.0
    %2263 = vmatprep.subr.mxu0 0.0
    %2264 = vmatpush2.msra.mxu0 0.0
    %2265 = vmatprep.mubr.f32.mxu0 0.0
    %2266 = vmatmul.mubr.f32.gmra.mxu0 %v2192
    %v2267 = vpop.f32.mrf.mxu0
    %v2268 = vadd.f32 0.0, %v2267
    %v2269 = vpop.f32.mrf.mxu0
    %v2270 = vadd.f32 0.0, %v2269
    %2271 = vdwg.mxu0
    %2272 = vst [vmem:[#allocation3] sm:$0xff] %v2268
    %2273 = vst [vmem:[#allocation3 + $0x8] sm:$0xff] %v2270
    %s2274 = scalar_lea.vmem %s0, 96
    %v2275 = vld [vmem:[%s2274] sm:$0xff]
    %v2276 = vld [vmem:[%s2274 + $0x8] sm:$0xff]
    %v2277 = vld [vmem:[%s2274 + $0x18] sm:$0xff]
    %v2278 = vld [vmem:[%s2274 + $0x20] sm:$0xff]
    %v2279 = vld [vmem:[%s2274 + $0x30] sm:$0xff]
    %v2280 = vld [vmem:[%s2274 + $0x38] sm:$0xff]
    %v2281 = vld [vmem:[%s2274 + $0x48] sm:$0xff]
    %v2282 = vld [vmem:[%s2274 + $0x50] sm:$0xff]
    %v2283 = vcombine.low %v2275, %v2279
    %v2284 = vcombine.high %v2275, %v2279
    %v2286 = vunpack.c.l.s4 1983009808
    %v2287 = vunpack.c.0.s8 %v2286
    %v2288 = vlaneseq
    %v2289 = vshrl.u32 %v2288, 7
    %v2290 = vsub.s32 %v2287, %v2289
    %v2291 = vrot.slane %v2283, %v2290
    %v2293 = vunpack.c.l.s4 1983009808
    %v2294 = vunpack.c.0.s8 %v2293
    %v2295 = vlaneseq
    %v2296 = vshrl.u32 %v2295, 7
    %v2297 = vsub.s32 %v2294, %v2296
    %v2298 = vrot.slane %v2284, %v2297
    %v2299 = vcombine.low %v2277, %v2281
    %v2300 = vcombine.high %v2277, %v2281
    %v2302 = vunpack.c.l.s4 1983009808
    %v2303 = vunpack.c.0.s8 %v2302
    %v2304 = vlaneseq
    %v2305 = vshrl.u32 %v2304, 7
    %v2306 = vsub.s32 %v2303, %v2305
    %v2307 = vrot.slane %v2299, %v2306
    %v2309 = vunpack.c.l.s4 1983009808
    %v2310 = vunpack.c.0.s8 %v2309
    %v2311 = vlaneseq
    %v2312 = vshrl.u32 %v2311, 7
    %v2313 = vsub.s32 %v2310, %v2312
    %v2314 = vrot.slane %v2300, %v2313
    %v2315 = vcombine.low %v2291, %v2307
    %v2316 = vcombine.high %v2291, %v2307
    %v2318 = vunpack.c.l.s4 1934713408
    %v2319 = vunpack.c.0.s8 %v2318
    %v2320 = vlaneseq
    %v2321 = vshrl.u32 %v2320, 7
    %v2322 = vsub.s32 %v2319, %v2321
    %v2323 = vrot.slane %v2315, %v2322
    %v2325 = vunpack.c.l.s4 1934713408
    %v2326 = vunpack.c.0.s8 %v2325
    %v2327 = vlaneseq
    %v2328 = vshrl.u32 %v2327, 7
    %v2329 = vsub.s32 %v2326, %v2328
    %v2330 = vrot.slane %v2316, %v2329
    %v2331 = vcombine.low %v2298, %v2314
    %v2332 = vcombine.high %v2298, %v2314
    %v2334 = vunpack.c.l.s4 1934713408
    %v2335 = vunpack.c.0.s8 %v2334
    %v2336 = vlaneseq
    %v2337 = vshrl.u32 %v2336, 7
    %v2338 = vsub.s32 %v2335, %v2337
    %v2339 = vrot.slane %v2331, %v2338
    %v2341 = vunpack.c.l.s4 1934713408
    %v2342 = vunpack.c.0.s8 %v2341
    %v2343 = vlaneseq
    %v2344 = vshrl.u32 %v2343, 7
    %v2345 = vsub.s32 %v2342, %v2344
    %v2346 = vrot.slane %v2332, %v2345
    %v2347 = vcombine.high %v2323, 0.0
    %v2348 = vcombine.high %v2330, 0.0
    %v2349 = vcombine.high %v2339, 0.0
    %v2350 = vcombine.high %v2346, 0.0
    %v2351 = vcombine.low %v2276, %v2280
    %v2352 = vcombine.high %v2276, %v2280
    %v2354 = vunpack.c.l.s4 1983009808
    %v2355 = vunpack.c.0.s8 %v2354
    %v2356 = vlaneseq
    %v2357 = vshrl.u32 %v2356, 7
    %v2358 = vsub.s32 %v2355, %v2357
    %v2359 = vrot.slane %v2351, %v2358
    %v2361 = vunpack.c.l.s4 1983009808
    %v2362 = vunpack.c.0.s8 %v2361
    %v2363 = vlaneseq
    %v2364 = vshrl.u32 %v2363, 7
    %v2365 = vsub.s32 %v2362, %v2364
    %v2366 = vrot.slane %v2352, %v2365
    %v2367 = vcombine.low %v2278, %v2282
    %v2368 = vcombine.high %v2278, %v2282
    %v2370 = vunpack.c.l.s4 1983009808
    %v2371 = vunpack.c.0.s8 %v2370
    %v2372 = vlaneseq
    %v2373 = vshrl.u32 %v2372, 7
    %v2374 = vsub.s32 %v2371, %v2373
    %v2375 = vrot.slane %v2367, %v2374
    %v2377 = vunpack.c.l.s4 1983009808
    %v2378 = vunpack.c.0.s8 %v2377
    %v2379 = vlaneseq
    %v2380 = vshrl.u32 %v2379, 7
    %v2381 = vsub.s32 %v2378, %v2380
    %v2382 = vrot.slane %v2368, %v2381
    %v2383 = vcombine.low %v2359, %v2375
    %v2384 = vcombine.high %v2359, %v2375
    %v2386 = vunpack.c.l.s4 1934713408
    %v2387 = vunpack.c.0.s8 %v2386
    %v2388 = vlaneseq
    %v2389 = vshrl.u32 %v2388, 7
    %v2390 = vsub.s32 %v2387, %v2389
    %v2391 = vrot.slane %v2383, %v2390
    %v2393 = vunpack.c.l.s4 1934713408
    %v2394 = vunpack.c.0.s8 %v2393
    %v2395 = vlaneseq
    %v2396 = vshrl.u32 %v2395, 7
    %v2397 = vsub.s32 %v2394, %v2396
    %v2398 = vrot.slane %v2384, %v2397
    %v2399 = vcombine.low %v2366, %v2382
    %v2400 = vcombine.high %v2366, %v2382
    %v2402 = vunpack.c.l.s4 1934713408
    %v2403 = vunpack.c.0.s8 %v2402
    %v2404 = vlaneseq
    %v2405 = vshrl.u32 %v2404, 7
    %v2406 = vsub.s32 %v2403, %v2405
    %v2407 = vrot.slane %v2399, %v2406
    %v2409 = vunpack.c.l.s4 1934713408
    %v2410 = vunpack.c.0.s8 %v2409
    %v2411 = vlaneseq
    %v2412 = vshrl.u32 %v2411, 7
    %v2413 = vsub.s32 %v2410, %v2412
    %v2414 = vrot.slane %v2400, %v2413
    %v2415 = vcombine.high %v2391, 0.0
    %v2416 = vcombine.high %v2398, 0.0
    %v2417 = vcombine.high %v2407, 0.0
    %v2418 = vcombine.high %v2414, 0.0
    %2420 = vrot.lane.b32.xlu0 %v2347, 16
    %v2421 = vpop.permute.xlu0 %2420
    %2424 = vrot.lane.b32.xlu0 %v2330, 32
    %v2425 = vpop.permute.xlu0 %2424
    %2428 = vrot.lane.b32.xlu0 %v2348, 48
    %v2429 = vpop.permute.xlu0 %2428
    %2432 = vrot.lane.b32.xlu0 %v2339, 64
    %v2433 = vpop.permute.xlu0 %2432
    %2436 = vrot.lane.b32.xlu0 %v2349, 80
    %v2437 = vpop.permute.xlu0 %2436
    %2440 = vrot.lane.b32.xlu0 %v2346, 96
    %v2441 = vpop.permute.xlu0 %2440
    %2444 = vrot.lane.b32.xlu0 %v2350, 112
    %v2445 = vpop.permute.xlu0 %2444
    %2448 = vrot.lane.b32.xlu0 %v2415, 16
    %v2449 = vpop.permute.xlu0 %2448
    %2452 = vrot.lane.b32.xlu0 %v2398, 32
    %v2453 = vpop.permute.xlu0 %2452
    %2456 = vrot.lane.b32.xlu0 %v2416, 48
    %v2457 = vpop.permute.xlu0 %2456
    %2460 = vrot.lane.b32.xlu0 %v2407, 64
    %v2461 = vpop.permute.xlu0 %2460
    %2464 = vrot.lane.b32.xlu0 %v2417, 80
    %v2465 = vpop.permute.xlu0 %2464
    %2468 = vrot.lane.b32.xlu0 %v2414, 96
    %v2469 = vpop.permute.xlu0 %2468
    %2472 = vrot.lane.b32.xlu0 %v2418, 112
    %v2473 = vpop.permute.xlu0 %2472
    %v2475 = vsel %vm213, %v2323, %v2421
    %v2476 = vsel %vm215, %v2475, %v2425
    %v2477 = vsel %vm217, %v2476, %v2429
    %v2478 = vsel %vm219, %v2477, %v2433
    %v2479 = vsel %vm221, %v2478, %v2437
    %v2480 = vsel %vm223, %v2479, %v2441
    %v2481 = vsel %vm225, %v2480, %v2445
    %v2482 = vsel %vm213, %v2391, %v2449
    %v2483 = vsel %vm215, %v2482, %v2453
    %v2484 = vsel %vm217, %v2483, %v2457
    %v2485 = vsel %vm219, %v2484, %v2461
    %v2486 = vsel %vm221, %v2485, %v2465
    %v2487 = vsel %vm223, %v2486, %v2469
    %v2488 = vsel %vm225, %v2487, %v2473
    %2489 = vst [vmem:[#allocation2] sm:$0xf] %v2481
    %2490 = vst [vmem:[#allocation2 + $0x8] sm:$0xf] %v2488
    %v2491 = vld [vmem:[%s2274] sm:$0xff]
    %v2492 = vld [vmem:[%s2274 + $0x8] sm:$0xff]
    %v2493 = vld [vmem:[%s2274 + $0x18] sm:$0xff]
    %v2494 = vld [vmem:[%s2274 + $0x20] sm:$0xff]
    %v2495 = vld [vmem:[%s2274 + $0x30] sm:$0xff]
    %v2496 = vld [vmem:[%s2274 + $0x38] sm:$0xff]
    %v2497 = vld [vmem:[%s2274 + $0x48] sm:$0xff]
    %v2498 = vld [vmem:[%s2274 + $0x50] sm:$0xff]
    %2507 = vrot.lane.b32.xlu0 %v2491, 126
    %v2508 = vpop.permute.xlu0 %2507
    %2509 = vrot.lane.b32.xlu0 %v2492, 126
    %v2510 = vpop.permute.xlu0 %2509
    %2511 = vrot.lane.b32.xlu0 %v2493, 126
    %v2512 = vpop.permute.xlu0 %2511
    %2513 = vrot.lane.b32.xlu0 %v2494, 126
    %v2514 = vpop.permute.xlu0 %2513
    %2515 = vrot.lane.b32.xlu0 %v2495, 126
    %v2516 = vpop.permute.xlu0 %2515
    %2517 = vrot.lane.b32.xlu0 %v2496, 126
    %v2518 = vpop.permute.xlu0 %2517
    %2519 = vrot.lane.b32.xlu0 %v2497, 126
    %v2520 = vpop.permute.xlu0 %2519
    %2521 = vrot.lane.b32.xlu0 %v2498, 126
    %v2522 = vpop.permute.xlu0 %2521
    %v2531 = vcombine.low %v2508, %v2516
    %v2532 = vcombine.high %v2508, %v2516
    %v2534 = vunpack.c.l.s4 1983009808
    %v2535 = vunpack.c.0.s8 %v2534
    %v2536 = vlaneseq
    %v2537 = vshrl.u32 %v2536, 7
    %v2538 = vsub.s32 %v2535, %v2537
    %v2539 = vrot.slane %v2531, %v2538
    %v2541 = vunpack.c.l.s4 1983009808
    %v2542 = vunpack.c.0.s8 %v2541
    %v2543 = vlaneseq
    %v2544 = vshrl.u32 %v2543, 7
    %v2545 = vsub.s32 %v2542, %v2544
    %v2546 = vrot.slane %v2532, %v2545
    %v2547 = vcombine.low %v2512, %v2520
    %v2548 = vcombine.high %v2512, %v2520
    %v2550 = vunpack.c.l.s4 1983009808
    %v2551 = vunpack.c.0.s8 %v2550
    %v2552 = vlaneseq
    %v2553 = vshrl.u32 %v2552, 7
    %v2554 = vsub.s32 %v2551, %v2553
    %v2555 = vrot.slane %v2547, %v2554
    %v2557 = vunpack.c.l.s4 1983009808
    %v2558 = vunpack.c.0.s8 %v2557
    %v2559 = vlaneseq
    %v2560 = vshrl.u32 %v2559, 7
    %v2561 = vsub.s32 %v2558, %v2560
    %v2562 = vrot.slane %v2548, %v2561
    %v2563 = vcombine.low %v2539, %v2555
    %v2564 = vcombine.high %v2539, %v2555
    %v2566 = vunpack.c.l.s4 1934713408
    %v2567 = vunpack.c.0.s8 %v2566
    %v2568 = vlaneseq
    %v2569 = vshrl.u32 %v2568, 7
    %v2570 = vsub.s32 %v2567, %v2569
    %v2571 = vrot.slane %v2563, %v2570
    %v2573 = vunpack.c.l.s4 1934713408
    %v2574 = vunpack.c.0.s8 %v2573
    %v2575 = vlaneseq
    %v2576 = vshrl.u32 %v2575, 7
    %v2577 = vsub.s32 %v2574, %v2576
    %v2578 = vrot.slane %v2564, %v2577
    %v2579 = vcombine.low %v2546, %v2562
    %v2580 = vcombine.high %v2546, %v2562
    %v2582 = vunpack.c.l.s4 1934713408
    %v2583 = vunpack.c.0.s8 %v2582
    %v2584 = vlaneseq
    %v2585 = vshrl.u32 %v2584, 7
    %v2586 = vsub.s32 %v2583, %v2585
    %v2587 = vrot.slane %v2579, %v2586
    %v2589 = vunpack.c.l.s4 1934713408
    %v2590 = vunpack.c.0.s8 %v2589
    %v2591 = vlaneseq
    %v2592 = vshrl.u32 %v2591, 7
    %v2593 = vsub.s32 %v2590, %v2592
    %v2594 = vrot.slane %v2580, %v2593
    %v2595 = vcombine.high %v2571, 0.0
    %v2596 = vcombine.high %v2578, 0.0
    %v2597 = vcombine.high %v2587, 0.0
    %v2598 = vcombine.high %v2594, 0.0
    %v2599 = vcombine.low %v2510, %v2518
    %v2600 = vcombine.high %v2510, %v2518
    %v2602 = vunpack.c.l.s4 1983009808
    %v2603 = vunpack.c.0.s8 %v2602
    %v2604 = vlaneseq
    %v2605 = vshrl.u32 %v2604, 7
    %v2606 = vsub.s32 %v2603, %v2605
    %v2607 = vrot.slane %v2599, %v2606
    %v2609 = vunpack.c.l.s4 1983009808
    %v2610 = vunpack.c.0.s8 %v2609
    %v2611 = vlaneseq
    %v2612 = vshrl.u32 %v2611, 7
    %v2613 = vsub.s32 %v2610, %v2612
    %v2614 = vrot.slane %v2600, %v2613
    %v2615 = vcombine.low %v2514, %v2522
    %v2616 = vcombine.high %v2514, %v2522
    %v2618 = vunpack.c.l.s4 1983009808
    %v2619 = vunpack.c.0.s8 %v2618
    %v2620 = vlaneseq
    %v2621 = vshrl.u32 %v2620, 7
    %v2622 = vsub.s32 %v2619, %v2621
    %v2623 = vrot.slane %v2615, %v2622
    %v2625 = vunpack.c.l.s4 1983009808
    %v2626 = vunpack.c.0.s8 %v2625
    %v2627 = vlaneseq
    %v2628 = vshrl.u32 %v2627, 7
    %v2629 = vsub.s32 %v2626, %v2628
    %v2630 = vrot.slane %v2616, %v2629
    %v2631 = vcombine.low %v2607, %v2623
    %v2632 = vcombine.high %v2607, %v2623
    %v2634 = vunpack.c.l.s4 1934713408
    %v2635 = vunpack.c.0.s8 %v2634
    %v2636 = vlaneseq
    %v2637 = vshrl.u32 %v2636, 7
    %v2638 = vsub.s32 %v2635, %v2637
    %v2639 = vrot.slane %v2631, %v2638
    %v2641 = vunpack.c.l.s4 1934713408
    %v2642 = vunpack.c.0.s8 %v2641
    %v2643 = vlaneseq
    %v2644 = vshrl.u32 %v2643, 7
    %v2645 = vsub.s32 %v2642, %v2644
    %v2646 = vrot.slane %v2632, %v2645
    %v2647 = vcombine.low %v2614, %v2630
    %v2648 = vcombine.high %v2614, %v2630
    %v2650 = vunpack.c.l.s4 1934713408
    %v2651 = vunpack.c.0.s8 %v2650
    %v2652 = vlaneseq
    %v2653 = vshrl.u32 %v2652, 7
    %v2654 = vsub.s32 %v2651, %v2653
    %v2655 = vrot.slane %v2647, %v2654
    %v2657 = vunpack.c.l.s4 1934713408
    %v2658 = vunpack.c.0.s8 %v2657
    %v2659 = vlaneseq
    %v2660 = vshrl.u32 %v2659, 7
    %v2661 = vsub.s32 %v2658, %v2660
    %v2662 = vrot.slane %v2648, %v2661
    %v2663 = vcombine.high %v2639, 0.0
    %v2664 = vcombine.high %v2646, 0.0
    %v2665 = vcombine.high %v2655, 0.0
    %v2666 = vcombine.high %v2662, 0.0
    %2668 = vrot.lane.b32.xlu0 %v2595, 16
    %v2669 = vpop.permute.xlu0 %2668
    %2672 = vrot.lane.b32.xlu0 %v2578, 32
    %v2673 = vpop.permute.xlu0 %2672
    %2676 = vrot.lane.b32.xlu0 %v2596, 48
    %v2677 = vpop.permute.xlu0 %2676
    %2680 = vrot.lane.b32.xlu0 %v2587, 64
    %v2681 = vpop.permute.xlu0 %2680
    %2684 = vrot.lane.b32.xlu0 %v2597, 80
    %v2685 = vpop.permute.xlu0 %2684
    %2688 = vrot.lane.b32.xlu0 %v2594, 96
    %v2689 = vpop.permute.xlu0 %2688
    %2692 = vrot.lane.b32.xlu0 %v2598, 112
    %v2693 = vpop.permute.xlu0 %2692
    %2696 = vrot.lane.b32.xlu0 %v2663, 16
    %v2697 = vpop.permute.xlu0 %2696
    %2700 = vrot.lane.b32.xlu0 %v2646, 32
    %v2701 = vpop.permute.xlu0 %2700
    %2704 = vrot.lane.b32.xlu0 %v2664, 48
    %v2705 = vpop.permute.xlu0 %2704
    %2708 = vrot.lane.b32.xlu0 %v2655, 64
    %v2709 = vpop.permute.xlu0 %2708
    %2712 = vrot.lane.b32.xlu0 %v2665, 80
    %v2713 = vpop.permute.xlu0 %2712
    %2716 = vrot.lane.b32.xlu0 %v2662, 96
    %v2717 = vpop.permute.xlu0 %2716
    %2720 = vrot.lane.b32.xlu0 %v2666, 112
    %v2721 = vpop.permute.xlu0 %2720
    %v2723 = vsel %vm213, %v2571, %v2669
    %v2724 = vsel %vm215, %v2723, %v2673
    %v2725 = vsel %vm217, %v2724, %v2677
    %v2726 = vsel %vm219, %v2725, %v2681
    %v2727 = vsel %vm221, %v2726, %v2685
    %v2728 = vsel %vm223, %v2727, %v2689
    %v2729 = vsel %vm225, %v2728, %v2693
    %v2730 = vsel %vm213, %v2639, %v2697
    %v2731 = vsel %vm215, %v2730, %v2701
    %v2732 = vsel %vm217, %v2731, %v2705
    %v2733 = vsel %vm219, %v2732, %v2709
    %v2734 = vsel %vm221, %v2733, %v2713
    %v2735 = vsel %vm223, %v2734, %v2717
    %v2736 = vsel %vm225, %v2735, %v2721
    %v2739 = vrot.slane %v2729, 4
    %v2740 = vrot.slane %v2736, 4
    %2743 = vst [vmem:[#allocation2] sm:$0xf0] %v2739
    %2744 = vst [vmem:[#allocation2 + $0x8] sm:$0xf0] %v2740
    %v2745 = vld [vmem:[%s2274] sm:$0xff]
    %v2746 = vld [vmem:[%s2274 + $0x8] sm:$0xff]
    %v2747 = vld [vmem:[%s2274 + $0x18] sm:$0xff]
    %v2748 = vld [vmem:[%s2274 + $0x20] sm:$0xff]
    %v2749 = vld [vmem:[%s2274 + $0x30] sm:$0xff]
    %v2750 = vld [vmem:[%s2274 + $0x38] sm:$0xff]
    %v2751 = vld [vmem:[%s2274 + $0x48] sm:$0xff]
    %v2752 = vld [vmem:[%s2274 + $0x50] sm:$0xff]
    %2761 = vrot.lane.b32.xlu0 %v2745, 124
    %v2762 = vpop.permute.xlu0 %2761
    %2763 = vrot.lane.b32.xlu0 %v2746, 124
    %v2764 = vpop.permute.xlu0 %2763
    %2765 = vrot.lane.b32.xlu0 %v2747, 124
    %v2766 = vpop.permute.xlu0 %2765
    %2767 = vrot.lane.b32.xlu0 %v2748, 124
    %v2768 = vpop.permute.xlu0 %2767
    %2769 = vrot.lane.b32.xlu0 %v2749, 124
    %v2770 = vpop.permute.xlu0 %2769
    %2771 = vrot.lane.b32.xlu0 %v2750, 124
    %v2772 = vpop.permute.xlu0 %2771
    %2773 = vrot.lane.b32.xlu0 %v2751, 124
    %v2774 = vpop.permute.xlu0 %2773
    %2775 = vrot.lane.b32.xlu0 %v2752, 124
    %v2776 = vpop.permute.xlu0 %2775
    %v2785 = vcombine.low %v2762, %v2770
    %v2786 = vcombine.high %v2762, %v2770
    %v2788 = vunpack.c.l.s4 1983009808
    %v2789 = vunpack.c.0.s8 %v2788
    %v2790 = vlaneseq
    %v2791 = vshrl.u32 %v2790, 7
    %v2792 = vsub.s32 %v2789, %v2791
    %v2793 = vrot.slane %v2785, %v2792
    %v2795 = vunpack.c.l.s4 1983009808
    %v2796 = vunpack.c.0.s8 %v2795
    %v2797 = vlaneseq
    %v2798 = vshrl.u32 %v2797, 7
    %v2799 = vsub.s32 %v2796, %v2798
    %v2800 = vrot.slane %v2786, %v2799
    %v2801 = vcombine.low %v2766, %v2774
    %v2802 = vcombine.high %v2766, %v2774
    %v2804 = vunpack.c.l.s4 1983009808
    %v2805 = vunpack.c.0.s8 %v2804
    %v2806 = vlaneseq
    %v2807 = vshrl.u32 %v2806, 7
    %v2808 = vsub.s32 %v2805, %v2807
    %v2809 = vrot.slane %v2801, %v2808
    %v2811 = vunpack.c.l.s4 1983009808
    %v2812 = vunpack.c.0.s8 %v2811
    %v2813 = vlaneseq
    %v2814 = vshrl.u32 %v2813, 7
    %v2815 = vsub.s32 %v2812, %v2814
    %v2816 = vrot.slane %v2802, %v2815
    %v2817 = vcombine.low %v2793, %v2809
    %v2818 = vcombine.high %v2793, %v2809
    %v2820 = vunpack.c.l.s4 1934713408
    %v2821 = vunpack.c.0.s8 %v2820
    %v2822 = vlaneseq
    %v2823 = vshrl.u32 %v2822, 7
    %v2824 = vsub.s32 %v2821, %v2823
    %v2825 = vrot.slane %v2817, %v2824
    %v2827 = vunpack.c.l.s4 1934713408
    %v2828 = vunpack.c.0.s8 %v2827
    %v2829 = vlaneseq
    %v2830 = vshrl.u32 %v2829, 7
    %v2831 = vsub.s32 %v2828, %v2830
    %v2832 = vrot.slane %v2818, %v2831
    %v2833 = vcombine.low %v2800, %v2816
    %v2834 = vcombine.high %v2800, %v2816
    %v2836 = vunpack.c.l.s4 1934713408
    %v2837 = vunpack.c.0.s8 %v2836
    %v2838 = vlaneseq
    %v2839 = vshrl.u32 %v2838, 7
    %v2840 = vsub.s32 %v2837, %v2839
    %v2841 = vrot.slane %v2833, %v2840
    %v2843 = vunpack.c.l.s4 1934713408
    %v2844 = vunpack.c.0.s8 %v2843
    %v2845 = vlaneseq
    %v2846 = vshrl.u32 %v2845, 7
    %v2847 = vsub.s32 %v2844, %v2846
    %v2848 = vrot.slane %v2834, %v2847
    %v2849 = vcombine.high %v2825, 0.0
    %v2850 = vcombine.high %v2832, 0.0
    %v2851 = vcombine.high %v2841, 0.0
    %v2852 = vcombine.high %v2848, 0.0
    %v2853 = vcombine.low %v2764, %v2772
    %v2854 = vcombine.high %v2764, %v2772
    %v2856 = vunpack.c.l.s4 1983009808
    %v2857 = vunpack.c.0.s8 %v2856
    %v2858 = vlaneseq
    %v2859 = vshrl.u32 %v2858, 7
    %v2860 = vsub.s32 %v2857, %v2859
    %v2861 = vrot.slane %v2853, %v2860
    %v2863 = vunpack.c.l.s4 1983009808
    %v2864 = vunpack.c.0.s8 %v2863
    %v2865 = vlaneseq
    %v2866 = vshrl.u32 %v2865, 7
    %v2867 = vsub.s32 %v2864, %v2866
    %v2868 = vrot.slane %v2854, %v2867
    %v2869 = vcombine.low %v2768, %v2776
    %v2870 = vcombine.high %v2768, %v2776
    %v2872 = vunpack.c.l.s4 1983009808
    %v2873 = vunpack.c.0.s8 %v2872
    %v2874 = vlaneseq
    %v2875 = vshrl.u32 %v2874, 7
    %v2876 = vsub.s32 %v2873, %v2875
    %v2877 = vrot.slane %v2869, %v2876
    %v2879 = vunpack.c.l.s4 1983009808
    %v2880 = vunpack.c.0.s8 %v2879
    %v2881 = vlaneseq
    %v2882 = vshrl.u32 %v2881, 7
    %v2883 = vsub.s32 %v2880, %v2882
    %v2884 = vrot.slane %v2870, %v2883
    %v2885 = vcombine.low %v2861, %v2877
    %v2886 = vcombine.high %v2861, %v2877
    %v2888 = vunpack.c.l.s4 1934713408
    %v2889 = vunpack.c.0.s8 %v2888
    %v2890 = vlaneseq
    %v2891 = vshrl.u32 %v2890, 7
    %v2892 = vsub.s32 %v2889, %v2891
    %v2893 = vrot.slane %v2885, %v2892
    %v2895 = vunpack.c.l.s4 1934713408
    %v2896 = vunpack.c.0.s8 %v2895
    %v2897 = vlaneseq
    %v2898 = vshrl.u32 %v2897, 7
    %v2899 = vsub.s32 %v2896, %v2898
    %v2900 = vrot.slane %v2886, %v2899
    %v2901 = vcombine.low %v2868, %v2884
    %v2902 = vcombine.high %v2868, %v2884
    %v2904 = vunpack.c.l.s4 1934713408
    %v2905 = vunpack.c.0.s8 %v2904
    %v2906 = vlaneseq
    %v2907 = vshrl.u32 %v2906, 7
    %v2908 = vsub.s32 %v2905, %v2907
    %v2909 = vrot.slane %v2901, %v2908
    %v2911 = vunpack.c.l.s4 1934713408
    %v2912 = vunpack.c.0.s8 %v2911
    %v2913 = vlaneseq
    %v2914 = vshrl.u32 %v2913, 7
    %v2915 = vsub.s32 %v2912, %v2914
    %v2916 = vrot.slane %v2902, %v2915
    %v2917 = vcombine.high %v2893, 0.0
    %v2918 = vcombine.high %v2900, 0.0
    %v2919 = vcombine.high %v2909, 0.0
    %v2920 = vcombine.high %v2916, 0.0
    %2922 = vrot.lane.b32.xlu0 %v2849, 16
    %v2923 = vpop.permute.xlu0 %2922
    %2926 = vrot.lane.b32.xlu0 %v2832, 32
    %v2927 = vpop.permute.xlu0 %2926
    %2930 = vrot.lane.b32.xlu0 %v2850, 48
    %v2931 = vpop.permute.xlu0 %2930
    %2934 = vrot.lane.b32.xlu0 %v2841, 64
    %v2935 = vpop.permute.xlu0 %2934
    %2938 = vrot.lane.b32.xlu0 %v2851, 80
    %v2939 = vpop.permute.xlu0 %2938
    %2942 = vrot.lane.b32.xlu0 %v2848, 96
    %v2943 = vpop.permute.xlu0 %2942
    %2946 = vrot.lane.b32.xlu0 %v2852, 112
    %v2947 = vpop.permute.xlu0 %2946
    %2950 = vrot.lane.b32.xlu0 %v2917, 16
    %v2951 = vpop.permute.xlu0 %2950
    %2954 = vrot.lane.b32.xlu0 %v2900, 32
    %v2955 = vpop.permute.xlu0 %2954
    %2958 = vrot.lane.b32.xlu0 %v2918, 48
    %v2959 = vpop.permute.xlu0 %2958
    %2962 = vrot.lane.b32.xlu0 %v2909, 64
    %v2963 = vpop.permute.xlu0 %2962
    %2966 = vrot.lane.b32.xlu0 %v2919, 80
    %v2967 = vpop.permute.xlu0 %2966
    %2970 = vrot.lane.b32.xlu0 %v2916, 96
    %v2971 = vpop.permute.xlu0 %2970
    %2974 = vrot.lane.b32.xlu0 %v2920, 112
    %v2975 = vpop.permute.xlu0 %2974
    %v2977 = vsel %vm213, %v2825, %v2923
    %v2978 = vsel %vm215, %v2977, %v2927
    %v2979 = vsel %vm217, %v2978, %v2931
    %v2980 = vsel %vm219, %v2979, %v2935
    %v2981 = vsel %vm221, %v2980, %v2939
    %v2982 = vsel %vm223, %v2981, %v2943
    %v2983 = vsel %vm225, %v2982, %v2947
    %v2984 = vsel %vm213, %v2893, %v2951
    %v2985 = vsel %vm215, %v2984, %v2955
    %v2986 = vsel %vm217, %v2985, %v2959
    %v2987 = vsel %vm219, %v2986, %v2963
    %v2988 = vsel %vm221, %v2987, %v2967
    %v2989 = vsel %vm223, %v2988, %v2971
    %v2990 = vsel %vm225, %v2989, %v2975
    %2991 = vst [vmem:[#allocation2 + $0x10] sm:$0xf] %v2983
    %2992 = vst [vmem:[#allocation2 + $0x18] sm:$0xf] %v2990
    %v2993 = vld [vmem:[%s2274 + $0x2] sm:$0xff]
    %v2994 = vld [vmem:[%s2274 + $0xa] sm:$0xff]
    %v2995 = vld [vmem:[%s2274 + $0x1a] sm:$0xff]
    %v2996 = vld [vmem:[%s2274 + $0x22] sm:$0xff]
    %v2997 = vld [vmem:[%s2274 + $0x32] sm:$0xff]
    %v2998 = vld [vmem:[%s2274 + $0x3a] sm:$0xff]
    %v2999 = vld [vmem:[%s2274 + $0x4a] sm:$0xff]
    %v3000 = vld [vmem:[%s2274 + $0x52] sm:$0xff]
    %v3001 = vcombine.low %v2993, %v2997
    %v3002 = vcombine.high %v2993, %v2997
    %v3004 = vunpack.c.l.s4 1983009808
    %v3005 = vunpack.c.0.s8 %v3004
    %v3006 = vlaneseq
    %v3007 = vshrl.u32 %v3006, 7
    %v3008 = vsub.s32 %v3005, %v3007
    %v3009 = vrot.slane %v3001, %v3008
    %v3011 = vunpack.c.l.s4 1983009808
    %v3012 = vunpack.c.0.s8 %v3011
    %v3013 = vlaneseq
    %v3014 = vshrl.u32 %v3013, 7
    %v3015 = vsub.s32 %v3012, %v3014
    %v3016 = vrot.slane %v3002, %v3015
    %v3017 = vcombine.low %v2995, %v2999
    %v3018 = vcombine.high %v2995, %v2999
    %v3020 = vunpack.c.l.s4 1983009808
    %v3021 = vunpack.c.0.s8 %v3020
    %v3022 = vlaneseq
    %v3023 = vshrl.u32 %v3022, 7
    %v3024 = vsub.s32 %v3021, %v3023
    %v3025 = vrot.slane %v3017, %v3024
    %v3027 = vunpack.c.l.s4 1983009808
    %v3028 = vunpack.c.0.s8 %v3027
    %v3029 = vlaneseq
    %v3030 = vshrl.u32 %v3029, 7
    %v3031 = vsub.s32 %v3028, %v3030
    %v3032 = vrot.slane %v3018, %v3031
    %v3033 = vcombine.low %v3009, %v3025
    %v3034 = vcombine.high %v3009, %v3025
    %v3036 = vunpack.c.l.s4 1934713408
    %v3037 = vunpack.c.0.s8 %v3036
    %v3038 = vlaneseq
    %v3039 = vshrl.u32 %v3038, 7
    %v3040 = vsub.s32 %v3037, %v3039
    %v3041 = vrot.slane %v3033, %v3040
    %v3043 = vunpack.c.l.s4 1934713408
    %v3044 = vunpack.c.0.s8 %v3043
    %v3045 = vlaneseq
    %v3046 = vshrl.u32 %v3045, 7
    %v3047 = vsub.s32 %v3044, %v3046
    %v3048 = vrot.slane %v3034, %v3047
    %v3049 = vcombine.low %v3016, %v3032
    %v3050 = vcombine.high %v3016, %v3032
    %v3052 = vunpack.c.l.s4 1934713408
    %v3053 = vunpack.c.0.s8 %v3052
    %v3054 = vlaneseq
    %v3055 = vshrl.u32 %v3054, 7
    %v3056 = vsub.s32 %v3053, %v3055
    %v3057 = vrot.slane %v3049, %v3056
    %v3059 = vunpack.c.l.s4 1934713408
    %v3060 = vunpack.c.0.s8 %v3059
    %v3061 = vlaneseq
    %v3062 = vshrl.u32 %v3061, 7
    %v3063 = vsub.s32 %v3060, %v3062
    %v3064 = vrot.slane %v3050, %v3063
    %v3065 = vcombine.high %v3041, 0.0
    %v3066 = vcombine.high %v3048, 0.0
    %v3067 = vcombine.high %v3057, 0.0
    %v3068 = vcombine.high %v3064, 0.0
    %v3069 = vcombine.low %v2994, %v2998
    %v3070 = vcombine.high %v2994, %v2998
    %v3072 = vunpack.c.l.s4 1983009808
    %v3073 = vunpack.c.0.s8 %v3072
    %v3074 = vlaneseq
    %v3075 = vshrl.u32 %v3074, 7
    %v3076 = vsub.s32 %v3073, %v3075
    %v3077 = vrot.slane %v3069, %v3076
    %v3079 = vunpack.c.l.s4 1983009808
    %v3080 = vunpack.c.0.s8 %v3079
    %v3081 = vlaneseq
    %v3082 = vshrl.u32 %v3081, 7
    %v3083 = vsub.s32 %v3080, %v3082
    %v3084 = vrot.slane %v3070, %v3083
    %v3085 = vcombine.low %v2996, %v3000
    %v3086 = vcombine.high %v2996, %v3000
    %v3088 = vunpack.c.l.s4 1983009808
    %v3089 = vunpack.c.0.s8 %v3088
    %v3090 = vlaneseq
    %v3091 = vshrl.u32 %v3090, 7
    %v3092 = vsub.s32 %v3089, %v3091
    %v3093 = vrot.slane %v3085, %v3092
    %v3095 = vunpack.c.l.s4 1983009808
    %v3096 = vunpack.c.0.s8 %v3095
    %v3097 = vlaneseq
    %v3098 = vshrl.u32 %v3097, 7
    %v3099 = vsub.s32 %v3096, %v3098
    %v3100 = vrot.slane %v3086, %v3099
    %v3101 = vcombine.low %v3077, %v3093
    %v3102 = vcombine.high %v3077, %v3093
    %v3104 = vunpack.c.l.s4 1934713408
    %v3105 = vunpack.c.0.s8 %v3104
    %v3106 = vlaneseq
    %v3107 = vshrl.u32 %v3106, 7
    %v3108 = vsub.s32 %v3105, %v3107
    %v3109 = vrot.slane %v3101, %v3108
    %v3111 = vunpack.c.l.s4 1934713408
    %v3112 = vunpack.c.0.s8 %v3111
    %v3113 = vlaneseq
    %v3114 = vshrl.u32 %v3113, 7
    %v3115 = vsub.s32 %v3112, %v3114
    %v3116 = vrot.slane %v3102, %v3115
    %v3117 = vcombine.low %v3084, %v3100
    %v3118 = vcombine.high %v3084, %v3100
    %v3120 = vunpack.c.l.s4 1934713408
    %v3121 = vunpack.c.0.s8 %v3120
    %v3122 = vlaneseq
    %v3123 = vshrl.u32 %v3122, 7
    %v3124 = vsub.s32 %v3121, %v3123
    %v3125 = vrot.slane %v3117, %v3124
    %v3127 = vunpack.c.l.s4 1934713408
    %v3128 = vunpack.c.0.s8 %v3127
    %v3129 = vlaneseq
    %v3130 = vshrl.u32 %v3129, 7
    %v3131 = vsub.s32 %v3128, %v3130
    %v3132 = vrot.slane %v3118, %v3131
    %v3133 = vcombine.high %v3109, 0.0
    %v3134 = vcombine.high %v3116, 0.0
    %v3135 = vcombine.high %v3125, 0.0
    %v3136 = vcombine.high %v3132, 0.0
    %3138 = vrot.lane.b32.xlu0 %v3065, 16
    %v3139 = vpop.permute.xlu0 %3138
    %3142 = vrot.lane.b32.xlu0 %v3048, 32
    %v3143 = vpop.permute.xlu0 %3142
    %3146 = vrot.lane.b32.xlu0 %v3066, 48
    %v3147 = vpop.permute.xlu0 %3146
    %3150 = vrot.lane.b32.xlu0 %v3057, 64
    %v3151 = vpop.permute.xlu0 %3150
    %3154 = vrot.lane.b32.xlu0 %v3067, 80
    %v3155 = vpop.permute.xlu0 %3154
    %3158 = vrot.lane.b32.xlu0 %v3064, 96
    %v3159 = vpop.permute.xlu0 %3158
    %3162 = vrot.lane.b32.xlu0 %v3068, 112
    %v3163 = vpop.permute.xlu0 %3162
    %3166 = vrot.lane.b32.xlu0 %v3133, 16
    %v3167 = vpop.permute.xlu0 %3166
    %3170 = vrot.lane.b32.xlu0 %v3116, 32
    %v3171 = vpop.permute.xlu0 %3170
    %3174 = vrot.lane.b32.xlu0 %v3134, 48
    %v3175 = vpop.permute.xlu0 %3174
    %3178 = vrot.lane.b32.xlu0 %v3125, 64
    %v3179 = vpop.permute.xlu0 %3178
    %3182 = vrot.lane.b32.xlu0 %v3135, 80
    %v3183 = vpop.permute.xlu0 %3182
    %3186 = vrot.lane.b32.xlu0 %v3132, 96
    %v3187 = vpop.permute.xlu0 %3186
    %3190 = vrot.lane.b32.xlu0 %v3136, 112
    %v3191 = vpop.permute.xlu0 %3190
    %v3193 = vsel %vm213, %v3041, %v3139
    %v3194 = vsel %vm215, %v3193, %v3143
    %v3195 = vsel %vm217, %v3194, %v3147
    %v3196 = vsel %vm219, %v3195, %v3151
    %v3197 = vsel %vm221, %v3196, %v3155
    %v3198 = vsel %vm223, %v3197, %v3159
    %v3199 = vsel %vm225, %v3198, %v3163
    %v3200 = vsel %vm213, %v3109, %v3167
    %v3201 = vsel %vm215, %v3200, %v3171
    %v3202 = vsel %vm217, %v3201, %v3175
    %v3203 = vsel %vm219, %v3202, %v3179
    %v3204 = vsel %vm221, %v3203, %v3183
    %v3205 = vsel %vm223, %v3204, %v3187
    %v3206 = vsel %vm225, %v3205, %v3191
    %v3209 = vrot.slane %v3199, 4
    %v3210 = vrot.slane %v3206, 4
    %3213 = vst [vmem:[#allocation2 + $0x10] sm:$0xf0] %v3209
    %3214 = vst [vmem:[#allocation2 + $0x18] sm:$0xf0] %v3210
    %v3215 = vld [vmem:[%s2274 + $0x2] sm:$0xff]
    %v3216 = vld [vmem:[%s2274 + $0xa] sm:$0xff]
    %v3217 = vld [vmem:[%s2274 + $0x1a] sm:$0xff]
    %v3218 = vld [vmem:[%s2274 + $0x22] sm:$0xff]
    %v3219 = vld [vmem:[%s2274 + $0x32] sm:$0xff]
    %v3220 = vld [vmem:[%s2274 + $0x3a] sm:$0xff]
    %v3221 = vld [vmem:[%s2274 + $0x4a] sm:$0xff]
    %v3222 = vld [vmem:[%s2274 + $0x52] sm:$0xff]
    %3231 = vrot.lane.b32.xlu0 %v3215, 126
    %v3232 = vpop.permute.xlu0 %3231
    %3233 = vrot.lane.b32.xlu0 %v3216, 126
    %v3234 = vpop.permute.xlu0 %3233
    %3235 = vrot.lane.b32.xlu0 %v3217, 126
    %v3236 = vpop.permute.xlu0 %3235
    %3237 = vrot.lane.b32.xlu0 %v3218, 126
    %v3238 = vpop.permute.xlu0 %3237
    %3239 = vrot.lane.b32.xlu0 %v3219, 126
    %v3240 = vpop.permute.xlu0 %3239
    %3241 = vrot.lane.b32.xlu0 %v3220, 126
    %v3242 = vpop.permute.xlu0 %3241
    %3243 = vrot.lane.b32.xlu0 %v3221, 126
    %v3244 = vpop.permute.xlu0 %3243
    %3245 = vrot.lane.b32.xlu0 %v3222, 126
    %v3246 = vpop.permute.xlu0 %3245
    %v3255 = vcombine.low %v3232, %v3240
    %v3256 = vcombine.high %v3232, %v3240
    %v3258 = vunpack.c.l.s4 1983009808
    %v3259 = vunpack.c.0.s8 %v3258
    %v3260 = vlaneseq
    %v3261 = vshrl.u32 %v3260, 7
    %v3262 = vsub.s32 %v3259, %v3261
    %v3263 = vrot.slane %v3255, %v3262
    %v3265 = vunpack.c.l.s4 1983009808
    %v3266 = vunpack.c.0.s8 %v3265
    %v3267 = vlaneseq
    %v3268 = vshrl.u32 %v3267, 7
    %v3269 = vsub.s32 %v3266, %v3268
    %v3270 = vrot.slane %v3256, %v3269
    %v3271 = vcombine.low %v3236, %v3244
    %v3272 = vcombine.high %v3236, %v3244
    %v3274 = vunpack.c.l.s4 1983009808
    %v3275 = vunpack.c.0.s8 %v3274
    %v3276 = vlaneseq
    %v3277 = vshrl.u32 %v3276, 7
    %v3278 = vsub.s32 %v3275, %v3277
    %v3279 = vrot.slane %v3271, %v3278
    %v3281 = vunpack.c.l.s4 1983009808
    %v3282 = vunpack.c.0.s8 %v3281
    %v3283 = vlaneseq
    %v3284 = vshrl.u32 %v3283, 7
    %v3285 = vsub.s32 %v3282, %v3284
    %v3286 = vrot.slane %v3272, %v3285
    %v3287 = vcombine.low %v3263, %v3279
    %v3288 = vcombine.high %v3263, %v3279
    %v3290 = vunpack.c.l.s4 1934713408
    %v3291 = vunpack.c.0.s8 %v3290
    %v3292 = vlaneseq
    %v3293 = vshrl.u32 %v3292, 7
    %v3294 = vsub.s32 %v3291, %v3293
    %v3295 = vrot.slane %v3287, %v3294
    %v3297 = vunpack.c.l.s4 1934713408
    %v3298 = vunpack.c.0.s8 %v3297
    %v3299 = vlaneseq
    %v3300 = vshrl.u32 %v3299, 7
    %v3301 = vsub.s32 %v3298, %v3300
    %v3302 = vrot.slane %v3288, %v3301
    %v3303 = vcombine.low %v3270, %v3286
    %v3304 = vcombine.high %v3270, %v3286
    %v3306 = vunpack.c.l.s4 1934713408
    %v3307 = vunpack.c.0.s8 %v3306
    %v3308 = vlaneseq
    %v3309 = vshrl.u32 %v3308, 7
    %v3310 = vsub.s32 %v3307, %v3309
    %v3311 = vrot.slane %v3303, %v3310
    %v3313 = vunpack.c.l.s4 1934713408
    %v3314 = vunpack.c.0.s8 %v3313
    %v3315 = vlaneseq
    %v3316 = vshrl.u32 %v3315, 7
    %v3317 = vsub.s32 %v3314, %v3316
    %v3318 = vrot.slane %v3304, %v3317
    %v3319 = vcombine.high %v3295, 0.0
    %v3320 = vcombine.high %v3302, 0.0
    %v3321 = vcombine.high %v3311, 0.0
    %v3322 = vcombine.high %v3318, 0.0
    %v3323 = vcombine.low %v3234, %v3242
    %v3324 = vcombine.high %v3234, %v3242
    %v3326 = vunpack.c.l.s4 1983009808
    %v3327 = vunpack.c.0.s8 %v3326
    %v3328 = vlaneseq
    %v3329 = vshrl.u32 %v3328, 7
    %v3330 = vsub.s32 %v3327, %v3329
    %v3331 = vrot.slane %v3323, %v3330
    %v3333 = vunpack.c.l.s4 1983009808
    %v3334 = vunpack.c.0.s8 %v3333
    %v3335 = vlaneseq
    %v3336 = vshrl.u32 %v3335, 7
    %v3337 = vsub.s32 %v3334, %v3336
    %v3338 = vrot.slane %v3324, %v3337
    %v3339 = vcombine.low %v3238, %v3246
    %v3340 = vcombine.high %v3238, %v3246
    %v3342 = vunpack.c.l.s4 1983009808
    %v3343 = vunpack.c.0.s8 %v3342
    %v3344 = vlaneseq
    %v3345 = vshrl.u32 %v3344, 7
    %v3346 = vsub.s32 %v3343, %v3345
    %v3347 = vrot.slane %v3339, %v3346
    %v3349 = vunpack.c.l.s4 1983009808
    %v3350 = vunpack.c.0.s8 %v3349
    %v3351 = vlaneseq
    %v3352 = vshrl.u32 %v3351, 7
    %v3353 = vsub.s32 %v3350, %v3352
    %v3354 = vrot.slane %v3340, %v3353
    %v3355 = vcombine.low %v3331, %v3347
    %v3356 = vcombine.high %v3331, %v3347
    %v3358 = vunpack.c.l.s4 1934713408
    %v3359 = vunpack.c.0.s8 %v3358
    %v3360 = vlaneseq
    %v3361 = vshrl.u32 %v3360, 7
    %v3362 = vsub.s32 %v3359, %v3361
    %v3363 = vrot.slane %v3355, %v3362
    %v3365 = vunpack.c.l.s4 1934713408
    %v3366 = vunpack.c.0.s8 %v3365
    %v3367 = vlaneseq
    %v3368 = vshrl.u32 %v3367, 7
    %v3369 = vsub.s32 %v3366, %v3368
    %v3370 = vrot.slane %v3356, %v3369
    %v3371 = vcombine.low %v3338, %v3354
    %v3372 = vcombine.high %v3338, %v3354
    %v3374 = vunpack.c.l.s4 1934713408
    %v3375 = vunpack.c.0.s8 %v3374
    %v3376 = vlaneseq
    %v3377 = vshrl.u32 %v3376, 7
    %v3378 = vsub.s32 %v3375, %v3377
    %v3379 = vrot.slane %v3371, %v3378
    %v3381 = vunpack.c.l.s4 1934713408
    %v3382 = vunpack.c.0.s8 %v3381
    %v3383 = vlaneseq
    %v3384 = vshrl.u32 %v3383, 7
    %v3385 = vsub.s32 %v3382, %v3384
    %v3386 = vrot.slane %v3372, %v3385
    %v3387 = vcombine.high %v3363, 0.0
    %v3388 = vcombine.high %v3370, 0.0
    %v3389 = vcombine.high %v3379, 0.0
    %v3390 = vcombine.high %v3386, 0.0
    %3392 = vrot.lane.b32.xlu0 %v3319, 16
    %v3393 = vpop.permute.xlu0 %3392
    %3396 = vrot.lane.b32.xlu0 %v3302, 32
    %v3397 = vpop.permute.xlu0 %3396
    %3400 = vrot.lane.b32.xlu0 %v3320, 48
    %v3401 = vpop.permute.xlu0 %3400
    %3404 = vrot.lane.b32.xlu0 %v3311, 64
    %v3405 = vpop.permute.xlu0 %3404
    %3408 = vrot.lane.b32.xlu0 %v3321, 80
    %v3409 = vpop.permute.xlu0 %3408
    %3412 = vrot.lane.b32.xlu0 %v3318, 96
    %v3413 = vpop.permute.xlu0 %3412
    %3416 = vrot.lane.b32.xlu0 %v3322, 112
    %v3417 = vpop.permute.xlu0 %3416
    %3420 = vrot.lane.b32.xlu0 %v3387, 16
    %v3421 = vpop.permute.xlu0 %3420
    %3424 = vrot.lane.b32.xlu0 %v3370, 32
    %v3425 = vpop.permute.xlu0 %3424
    %3428 = vrot.lane.b32.xlu0 %v3388, 48
    %v3429 = vpop.permute.xlu0 %3428
    %3432 = vrot.lane.b32.xlu0 %v3379, 64
    %v3433 = vpop.permute.xlu0 %3432
    %3436 = vrot.lane.b32.xlu0 %v3389, 80
    %v3437 = vpop.permute.xlu0 %3436
    %3440 = vrot.lane.b32.xlu0 %v3386, 96
    %v3441 = vpop.permute.xlu0 %3440
    %3444 = vrot.lane.b32.xlu0 %v3390, 112
    %v3445 = vpop.permute.xlu0 %3444
    %v3447 = vsel %vm213, %v3295, %v3393
    %v3448 = vsel %vm215, %v3447, %v3397
    %v3449 = vsel %vm217, %v3448, %v3401
    %v3450 = vsel %vm219, %v3449, %v3405
    %v3451 = vsel %vm221, %v3450, %v3409
    %v3452 = vsel %vm223, %v3451, %v3413
    %v3453 = vsel %vm225, %v3452, %v3417
    %v3454 = vsel %vm213, %v3363, %v3421
    %v3455 = vsel %vm215, %v3454, %v3425
    %v3456 = vsel %vm217, %v3455, %v3429
    %v3457 = vsel %vm219, %v3456, %v3433
    %v3458 = vsel %vm221, %v3457, %v3437
    %v3459 = vsel %vm223, %v3458, %v3441
    %v3460 = vsel %vm225, %v3459, %v3445
    %3461 = vst [vmem:[#allocation2 + $0x20] sm:$0xf] %v3453
    %3462 = vst [vmem:[#allocation2 + $0x28] sm:$0xf] %v3460
    %v3463 = vld [vmem:[%s2274 + $0x2] sm:$0xff]
    %v3464 = vld [vmem:[%s2274 + $0xa] sm:$0xff]
    %v3465 = vld [vmem:[%s2274 + $0x1a] sm:$0xff]
    %v3466 = vld [vmem:[%s2274 + $0x22] sm:$0xff]
    %v3467 = vld [vmem:[%s2274 + $0x32] sm:$0xff]
    %v3468 = vld [vmem:[%s2274 + $0x3a] sm:$0xff]
    %v3469 = vld [vmem:[%s2274 + $0x4a] sm:$0xff]
    %v3470 = vld [vmem:[%s2274 + $0x52] sm:$0xff]
    %3479 = vrot.lane.b32.xlu0 %v3463, 124
    %v3480 = vpop.permute.xlu0 %3479
    %3481 = vrot.lane.b32.xlu0 %v3464, 124
    %v3482 = vpop.permute.xlu0 %3481
    %3483 = vrot.lane.b32.xlu0 %v3465, 124
    %v3484 = vpop.permute.xlu0 %3483
    %3485 = vrot.lane.b32.xlu0 %v3466, 124
    %v3486 = vpop.permute.xlu0 %3485
    %3487 = vrot.lane.b32.xlu0 %v3467, 124
    %v3488 = vpop.permute.xlu0 %3487
    %3489 = vrot.lane.b32.xlu0 %v3468, 124
    %v3490 = vpop.permute.xlu0 %3489
    %3491 = vrot.lane.b32.xlu0 %v3469, 124
    %v3492 = vpop.permute.xlu0 %3491
    %3493 = vrot.lane.b32.xlu0 %v3470, 124
    %v3494 = vpop.permute.xlu0 %3493
    %v3503 = vcombine.low %v3480, %v3488
    %v3504 = vcombine.high %v3480, %v3488
    %v3506 = vunpack.c.l.s4 1983009808
    %v3507 = vunpack.c.0.s8 %v3506
    %v3508 = vlaneseq
    %v3509 = vshrl.u32 %v3508, 7
    %v3510 = vsub.s32 %v3507, %v3509
    %v3511 = vrot.slane %v3503, %v3510
    %v3513 = vunpack.c.l.s4 1983009808
    %v3514 = vunpack.c.0.s8 %v3513
    %v3515 = vlaneseq
    %v3516 = vshrl.u32 %v3515, 7
    %v3517 = vsub.s32 %v3514, %v3516
    %v3518 = vrot.slane %v3504, %v3517
    %v3519 = vcombine.low %v3484, %v3492
    %v3520 = vcombine.high %v3484, %v3492
    %v3522 = vunpack.c.l.s4 1983009808
    %v3523 = vunpack.c.0.s8 %v3522
    %v3524 = vlaneseq
    %v3525 = vshrl.u32 %v3524, 7
    %v3526 = vsub.s32 %v3523, %v3525
    %v3527 = vrot.slane %v3519, %v3526
    %v3529 = vunpack.c.l.s4 1983009808
    %v3530 = vunpack.c.0.s8 %v3529
    %v3531 = vlaneseq
    %v3532 = vshrl.u32 %v3531, 7
    %v3533 = vsub.s32 %v3530, %v3532
    %v3534 = vrot.slane %v3520, %v3533
    %v3535 = vcombine.low %v3511, %v3527
    %v3536 = vcombine.high %v3511, %v3527
    %v3538 = vunpack.c.l.s4 1934713408
    %v3539 = vunpack.c.0.s8 %v3538
    %v3540 = vlaneseq
    %v3541 = vshrl.u32 %v3540, 7
    %v3542 = vsub.s32 %v3539, %v3541
    %v3543 = vrot.slane %v3535, %v3542
    %v3545 = vunpack.c.l.s4 1934713408
    %v3546 = vunpack.c.0.s8 %v3545
    %v3547 = vlaneseq
    %v3548 = vshrl.u32 %v3547, 7
    %v3549 = vsub.s32 %v3546, %v3548
    %v3550 = vrot.slane %v3536, %v3549
    %v3551 = vcombine.low %v3518, %v3534
    %v3552 = vcombine.high %v3518, %v3534
    %v3554 = vunpack.c.l.s4 1934713408
    %v3555 = vunpack.c.0.s8 %v3554
    %v3556 = vlaneseq
    %v3557 = vshrl.u32 %v3556, 7
    %v3558 = vsub.s32 %v3555, %v3557
    %v3559 = vrot.slane %v3551, %v3558
    %v3561 = vunpack.c.l.s4 1934713408
    %v3562 = vunpack.c.0.s8 %v3561
    %v3563 = vlaneseq
    %v3564 = vshrl.u32 %v3563, 7
    %v3565 = vsub.s32 %v3562, %v3564
    %v3566 = vrot.slane %v3552, %v3565
    %v3567 = vcombine.high %v3543, 0.0
    %v3568 = vcombine.high %v3550, 0.0
    %v3569 = vcombine.high %v3559, 0.0
    %v3570 = vcombine.high %v3566, 0.0
    %v3571 = vcombine.low %v3482, %v3490
    %v3572 = vcombine.high %v3482, %v3490
    %v3574 = vunpack.c.l.s4 1983009808
    %v3575 = vunpack.c.0.s8 %v3574
    %v3576 = vlaneseq
    %v3577 = vshrl.u32 %v3576, 7
    %v3578 = vsub.s32 %v3575, %v3577
    %v3579 = vrot.slane %v3571, %v3578
    %v3581 = vunpack.c.l.s4 1983009808
    %v3582 = vunpack.c.0.s8 %v3581
    %v3583 = vlaneseq
    %v3584 = vshrl.u32 %v3583, 7
    %v3585 = vsub.s32 %v3582, %v3584
    %v3586 = vrot.slane %v3572, %v3585
    %v3587 = vcombine.low %v3486, %v3494
    %v3588 = vcombine.high %v3486, %v3494
    %v3590 = vunpack.c.l.s4 1983009808
    %v3591 = vunpack.c.0.s8 %v3590
    %v3592 = vlaneseq
    %v3593 = vshrl.u32 %v3592, 7
    %v3594 = vsub.s32 %v3591, %v3593
    %v3595 = vrot.slane %v3587, %v3594
    %v3597 = vunpack.c.l.s4 1983009808
    %v3598 = vunpack.c.0.s8 %v3597
    %v3599 = vlaneseq
    %v3600 = vshrl.u32 %v3599, 7
    %v3601 = vsub.s32 %v3598, %v3600
    %v3602 = vrot.slane %v3588, %v3601
    %v3603 = vcombine.low %v3579, %v3595
    %v3604 = vcombine.high %v3579, %v3595
    %v3606 = vunpack.c.l.s4 1934713408
    %v3607 = vunpack.c.0.s8 %v3606
    %v3608 = vlaneseq
    %v3609 = vshrl.u32 %v3608, 7
    %v3610 = vsub.s32 %v3607, %v3609
    %v3611 = vrot.slane %v3603, %v3610
    %v3613 = vunpack.c.l.s4 1934713408
    %v3614 = vunpack.c.0.s8 %v3613
    %v3615 = vlaneseq
    %v3616 = vshrl.u32 %v3615, 7
    %v3617 = vsub.s32 %v3614, %v3616
    %v3618 = vrot.slane %v3604, %v3617
    %v3619 = vcombine.low %v3586, %v3602
    %v3620 = vcombine.high %v3586, %v3602
    %v3622 = vunpack.c.l.s4 1934713408
    %v3623 = vunpack.c.0.s8 %v3622
    %v3624 = vlaneseq
    %v3625 = vshrl.u32 %v3624, 7
    %v3626 = vsub.s32 %v3623, %v3625
    %v3627 = vrot.slane %v3619, %v3626
    %v3629 = vunpack.c.l.s4 1934713408
    %v3630 = vunpack.c.0.s8 %v3629
    %v3631 = vlaneseq
    %v3632 = vshrl.u32 %v3631, 7
    %v3633 = vsub.s32 %v3630, %v3632
    %v3634 = vrot.slane %v3620, %v3633
    %v3635 = vcombine.high %v3611, 0.0
    %v3636 = vcombine.high %v3618, 0.0
    %v3637 = vcombine.high %v3627, 0.0
    %v3638 = vcombine.high %v3634, 0.0
    %3640 = vrot.lane.b32.xlu0 %v3567, 16
    %v3641 = vpop.permute.xlu0 %3640
    %3644 = vrot.lane.b32.xlu0 %v3550, 32
    %v3645 = vpop.permute.xlu0 %3644
    %3648 = vrot.lane.b32.xlu0 %v3568, 48
    %v3649 = vpop.permute.xlu0 %3648
    %3652 = vrot.lane.b32.xlu0 %v3559, 64
    %v3653 = vpop.permute.xlu0 %3652
    %3656 = vrot.lane.b32.xlu0 %v3569, 80
    %v3657 = vpop.permute.xlu0 %3656
    %3660 = vrot.lane.b32.xlu0 %v3566, 96
    %v3661 = vpop.permute.xlu0 %3660
    %3664 = vrot.lane.b32.xlu0 %v3570, 112
    %v3665 = vpop.permute.xlu0 %3664
    %3668 = vrot.lane.b32.xlu0 %v3635, 16
    %v3669 = vpop.permute.xlu0 %3668
    %3672 = vrot.lane.b32.xlu0 %v3618, 32
    %v3673 = vpop.permute.xlu0 %3672
    %3676 = vrot.lane.b32.xlu0 %v3636, 48
    %v3677 = vpop.permute.xlu0 %3676
    %3680 = vrot.lane.b32.xlu0 %v3627, 64
    %v3681 = vpop.permute.xlu0 %3680
    %3684 = vrot.lane.b32.xlu0 %v3637, 80
    %v3685 = vpop.permute.xlu0 %3684
    %3688 = vrot.lane.b32.xlu0 %v3634, 96
    %v3689 = vpop.permute.xlu0 %3688
    %3692 = vrot.lane.b32.xlu0 %v3638, 112
    %v3693 = vpop.permute.xlu0 %3692
    %v3695 = vsel %vm213, %v3543, %v3641
    %v3696 = vsel %vm215, %v3695, %v3645
    %v3697 = vsel %vm217, %v3696, %v3649
    %v3698 = vsel %vm219, %v3697, %v3653
    %v3699 = vsel %vm221, %v3698, %v3657
    %v3700 = vsel %vm223, %v3699, %v3661
    %v3701 = vsel %vm225, %v3700, %v3665
    %v3702 = vsel %vm213, %v3611, %v3669
    %v3703 = vsel %vm215, %v3702, %v3673
    %v3704 = vsel %vm217, %v3703, %v3677
    %v3705 = vsel %vm219, %v3704, %v3681
    %v3706 = vsel %vm221, %v3705, %v3685
    %v3707 = vsel %vm223, %v3706, %v3689
    %v3708 = vsel %vm225, %v3707, %v3693
    %v3711 = vrot.slane %v3701, 4
    %v3712 = vrot.slane %v3708, 4
    %3715 = vst [vmem:[#allocation2 + $0x20] sm:$0xf0] %v3711
    %3716 = vst [vmem:[#allocation2 + $0x28] sm:$0xf0] %v3712
    %v3717 = vld [vmem:[%s2274 + $0x4] sm:$0xff]
    %v3718 = vld [vmem:[%s2274 + $0xc] sm:$0xff]
    %v3719 = vld [vmem:[%s2274 + $0x1c] sm:$0xff]
    %v3720 = vld [vmem:[%s2274 + $0x24] sm:$0xff]
    %v3721 = vld [vmem:[%s2274 + $0x34] sm:$0xff]
    %v3722 = vld [vmem:[%s2274 + $0x3c] sm:$0xff]
    %v3723 = vld [vmem:[%s2274 + $0x4c] sm:$0xff]
    %v3724 = vld [vmem:[%s2274 + $0x54] sm:$0xff]
    %v3725 = vcombine.low %v3717, %v3721
    %v3726 = vcombine.high %v3717, %v3721
    %v3728 = vunpack.c.l.s4 1983009808
    %v3729 = vunpack.c.0.s8 %v3728
    %v3730 = vlaneseq
    %v3731 = vshrl.u32 %v3730, 7
    %v3732 = vsub.s32 %v3729, %v3731
    %v3733 = vrot.slane %v3725, %v3732
    %v3735 = vunpack.c.l.s4 1983009808
    %v3736 = vunpack.c.0.s8 %v3735
    %v3737 = vlaneseq
    %v3738 = vshrl.u32 %v3737, 7
    %v3739 = vsub.s32 %v3736, %v3738
    %v3740 = vrot.slane %v3726, %v3739
    %v3741 = vcombine.low %v3719, %v3723
    %v3742 = vcombine.high %v3719, %v3723
    %v3744 = vunpack.c.l.s4 1983009808
    %v3745 = vunpack.c.0.s8 %v3744
    %v3746 = vlaneseq
    %v3747 = vshrl.u32 %v3746, 7
    %v3748 = vsub.s32 %v3745, %v3747
    %v3749 = vrot.slane %v3741, %v3748
    %v3751 = vunpack.c.l.s4 1983009808
    %v3752 = vunpack.c.0.s8 %v3751
    %v3753 = vlaneseq
    %v3754 = vshrl.u32 %v3753, 7
    %v3755 = vsub.s32 %v3752, %v3754
    %v3756 = vrot.slane %v3742, %v3755
    %v3757 = vcombine.low %v3733, %v3749
    %v3758 = vcombine.high %v3733, %v3749
    %v3760 = vunpack.c.l.s4 1934713408
    %v3761 = vunpack.c.0.s8 %v3760
    %v3762 = vlaneseq
    %v3763 = vshrl.u32 %v3762, 7
    %v3764 = vsub.s32 %v3761, %v3763
    %v3765 = vrot.slane %v3757, %v3764
    %v3767 = vunpack.c.l.s4 1934713408
    %v3768 = vunpack.c.0.s8 %v3767
    %v3769 = vlaneseq
    %v3770 = vshrl.u32 %v3769, 7
    %v3771 = vsub.s32 %v3768, %v3770
    %v3772 = vrot.slane %v3758, %v3771
    %v3773 = vcombine.low %v3740, %v3756
    %v3774 = vcombine.high %v3740, %v3756
    %v3776 = vunpack.c.l.s4 1934713408
    %v3777 = vunpack.c.0.s8 %v3776
    %v3778 = vlaneseq
    %v3779 = vshrl.u32 %v3778, 7
    %v3780 = vsub.s32 %v3777, %v3779
    %v3781 = vrot.slane %v3773, %v3780
    %v3783 = vunpack.c.l.s4 1934713408
    %v3784 = vunpack.c.0.s8 %v3783
    %v3785 = vlaneseq
    %v3786 = vshrl.u32 %v3785, 7
    %v3787 = vsub.s32 %v3784, %v3786
    %v3788 = vrot.slane %v3774, %v3787
    %v3789 = vcombine.high %v3765, 0.0
    %v3790 = vcombine.high %v3772, 0.0
    %v3791 = vcombine.high %v3781, 0.0
    %v3792 = vcombine.high %v3788, 0.0
    %v3793 = vcombine.low %v3718, %v3722
    %v3794 = vcombine.high %v3718, %v3722
    %v3796 = vunpack.c.l.s4 1983009808
    %v3797 = vunpack.c.0.s8 %v3796
    %v3798 = vlaneseq
    %v3799 = vshrl.u32 %v3798, 7
    %v3800 = vsub.s32 %v3797, %v3799
    %v3801 = vrot.slane %v3793, %v3800
    %v3803 = vunpack.c.l.s4 1983009808
    %v3804 = vunpack.c.0.s8 %v3803
    %v3805 = vlaneseq
    %v3806 = vshrl.u32 %v3805, 7
    %v3807 = vsub.s32 %v3804, %v3806
    %v3808 = vrot.slane %v3794, %v3807
    %v3809 = vcombine.low %v3720, %v3724
    %v3810 = vcombine.high %v3720, %v3724
    %v3812 = vunpack.c.l.s4 1983009808
    %v3813 = vunpack.c.0.s8 %v3812
    %v3814 = vlaneseq
    %v3815 = vshrl.u32 %v3814, 7
    %v3816 = vsub.s32 %v3813, %v3815
    %v3817 = vrot.slane %v3809, %v3816
    %v3819 = vunpack.c.l.s4 1983009808
    %v3820 = vunpack.c.0.s8 %v3819
    %v3821 = vlaneseq
    %v3822 = vshrl.u32 %v3821, 7
    %v3823 = vsub.s32 %v3820, %v3822
    %v3824 = vrot.slane %v3810, %v3823
    %v3825 = vcombine.low %v3801, %v3817
    %v3826 = vcombine.high %v3801, %v3817
    %v3828 = vunpack.c.l.s4 1934713408
    %v3829 = vunpack.c.0.s8 %v3828
    %v3830 = vlaneseq
    %v3831 = vshrl.u32 %v3830, 7
    %v3832 = vsub.s32 %v3829, %v3831
    %v3833 = vrot.slane %v3825, %v3832
    %v3835 = vunpack.c.l.s4 1934713408
    %v3836 = vunpack.c.0.s8 %v3835
    %v3837 = vlaneseq
    %v3838 = vshrl.u32 %v3837, 7
    %v3839 = vsub.s32 %v3836, %v3838
    %v3840 = vrot.slane %v3826, %v3839
    %v3841 = vcombine.low %v3808, %v3824
    %v3842 = vcombine.high %v3808, %v3824
    %v3844 = vunpack.c.l.s4 1934713408
    %v3845 = vunpack.c.0.s8 %v3844
    %v3846 = vlaneseq
    %v3847 = vshrl.u32 %v3846, 7
    %v3848 = vsub.s32 %v3845, %v3847
    %v3849 = vrot.slane %v3841, %v3848
    %v3851 = vunpack.c.l.s4 1934713408
    %v3852 = vunpack.c.0.s8 %v3851
    %v3853 = vlaneseq
    %v3854 = vshrl.u32 %v3853, 7
    %v3855 = vsub.s32 %v3852, %v3854
    %v3856 = vrot.slane %v3842, %v3855
    %v3857 = vcombine.high %v3833, 0.0
    %v3858 = vcombine.high %v3840, 0.0
    %v3859 = vcombine.high %v3849, 0.0
    %v3860 = vcombine.high %v3856, 0.0
    %3862 = vrot.lane.b32.xlu0 %v3789, 16
    %v3863 = vpop.permute.xlu0 %3862
    %3866 = vrot.lane.b32.xlu0 %v3772, 32
    %v3867 = vpop.permute.xlu0 %3866
    %3870 = vrot.lane.b32.xlu0 %v3790, 48
    %v3871 = vpop.permute.xlu0 %3870
    %3874 = vrot.lane.b32.xlu0 %v3781, 64
    %v3875 = vpop.permute.xlu0 %3874
    %3878 = vrot.lane.b32.xlu0 %v3791, 80
    %v3879 = vpop.permute.xlu0 %3878
    %3882 = vrot.lane.b32.xlu0 %v3788, 96
    %v3883 = vpop.permute.xlu0 %3882
    %3886 = vrot.lane.b32.xlu0 %v3792, 112
    %v3887 = vpop.permute.xlu0 %3886
    %3890 = vrot.lane.b32.xlu0 %v3857, 16
    %v3891 = vpop.permute.xlu0 %3890
    %3894 = vrot.lane.b32.xlu0 %v3840, 32
    %v3895 = vpop.permute.xlu0 %3894
    %3898 = vrot.lane.b32.xlu0 %v3858, 48
    %v3899 = vpop.permute.xlu0 %3898
    %3902 = vrot.lane.b32.xlu0 %v3849, 64
    %v3903 = vpop.permute.xlu0 %3902
    %3906 = vrot.lane.b32.xlu0 %v3859, 80
    %v3907 = vpop.permute.xlu0 %3906
    %3910 = vrot.lane.b32.xlu0 %v3856, 96
    %v3911 = vpop.permute.xlu0 %3910
    %3914 = vrot.lane.b32.xlu0 %v3860, 112
    %v3915 = vpop.permute.xlu0 %3914
    %v3917 = vsel %vm213, %v3765, %v3863
    %v3918 = vsel %vm215, %v3917, %v3867
    %v3919 = vsel %vm217, %v3918, %v3871
    %v3920 = vsel %vm219, %v3919, %v3875
    %v3921 = vsel %vm221, %v3920, %v3879
    %v3922 = vsel %vm223, %v3921, %v3883
    %v3923 = vsel %vm225, %v3922, %v3887
    %v3924 = vsel %vm213, %v3833, %v3891
    %v3925 = vsel %vm215, %v3924, %v3895
    %v3926 = vsel %vm217, %v3925, %v3899
    %v3927 = vsel %vm219, %v3926, %v3903
    %v3928 = vsel %vm221, %v3927, %v3907
    %v3929 = vsel %vm223, %v3928, %v3911
    %v3930 = vsel %vm225, %v3929, %v3915
    %3931 = vst [vmem:[#allocation2 + $0x30] sm:$0xf] %v3923
    %3932 = vst [vmem:[#allocation2 + $0x38] sm:$0xf] %v3930
    %v3933 = vld [vmem:[%s2274 + $0x4] sm:$0xff]
    %v3934 = vld [vmem:[%s2274 + $0xc] sm:$0xff]
    %v3935 = vld [vmem:[%s2274 + $0x1c] sm:$0xff]
    %v3936 = vld [vmem:[%s2274 + $0x24] sm:$0xff]
    %v3937 = vld [vmem:[%s2274 + $0x34] sm:$0xff]
    %v3938 = vld [vmem:[%s2274 + $0x3c] sm:$0xff]
    %v3939 = vld [vmem:[%s2274 + $0x4c] sm:$0xff]
    %v3940 = vld [vmem:[%s2274 + $0x54] sm:$0xff]
    %3949 = vrot.lane.b32.xlu0 %v3933, 126
    %v3950 = vpop.permute.xlu0 %3949
    %3951 = vrot.lane.b32.xlu0 %v3934, 126
    %v3952 = vpop.permute.xlu0 %3951
    %3953 = vrot.lane.b32.xlu0 %v3935, 126
    %v3954 = vpop.permute.xlu0 %3953
    %3955 = vrot.lane.b32.xlu0 %v3936, 126
    %v3956 = vpop.permute.xlu0 %3955
    %3957 = vrot.lane.b32.xlu0 %v3937, 126
    %v3958 = vpop.permute.xlu0 %3957
    %3959 = vrot.lane.b32.xlu0 %v3938, 126
    %v3960 = vpop.permute.xlu0 %3959
    %3961 = vrot.lane.b32.xlu0 %v3939, 126
    %v3962 = vpop.permute.xlu0 %3961
    %3963 = vrot.lane.b32.xlu0 %v3940, 126
    %v3964 = vpop.permute.xlu0 %3963
    %v3973 = vcombine.low %v3950, %v3958
    %v3974 = vcombine.high %v3950, %v3958
    %v3976 = vunpack.c.l.s4 1983009808
    %v3977 = vunpack.c.0.s8 %v3976
    %v3978 = vlaneseq
    %v3979 = vshrl.u32 %v3978, 7
    %v3980 = vsub.s32 %v3977, %v3979
    %v3981 = vrot.slane %v3973, %v3980
    %v3983 = vunpack.c.l.s4 1983009808
    %v3984 = vunpack.c.0.s8 %v3983
    %v3985 = vlaneseq
    %v3986 = vshrl.u32 %v3985, 7
    %v3987 = vsub.s32 %v3984, %v3986
    %v3988 = vrot.slane %v3974, %v3987
    %v3989 = vcombine.low %v3954, %v3962
    %v3990 = vcombine.high %v3954, %v3962
    %v3992 = vunpack.c.l.s4 1983009808
    %v3993 = vunpack.c.0.s8 %v3992
    %v3994 = vlaneseq
    %v3995 = vshrl.u32 %v3994, 7
    %v3996 = vsub.s32 %v3993, %v3995
    %v3997 = vrot.slane %v3989, %v3996
    %v3999 = vunpack.c.l.s4 1983009808
    %v4000 = vunpack.c.0.s8 %v3999
    %v4001 = vlaneseq
    %v4002 = vshrl.u32 %v4001, 7
    %v4003 = vsub.s32 %v4000, %v4002
    %v4004 = vrot.slane %v3990, %v4003
    %v4005 = vcombine.low %v3981, %v3997
    %v4006 = vcombine.high %v3981, %v3997
    %v4008 = vunpack.c.l.s4 1934713408
    %v4009 = vunpack.c.0.s8 %v4008
    %v4010 = vlaneseq
    %v4011 = vshrl.u32 %v4010, 7
    %v4012 = vsub.s32 %v4009, %v4011
    %v4013 = vrot.slane %v4005, %v4012
    %v4015 = vunpack.c.l.s4 1934713408
    %v4016 = vunpack.c.0.s8 %v4015
    %v4017 = vlaneseq
    %v4018 = vshrl.u32 %v4017, 7
    %v4019 = vsub.s32 %v4016, %v4018
    %v4020 = vrot.slane %v4006, %v4019
    %v4021 = vcombine.low %v3988, %v4004
    %v4022 = vcombine.high %v3988, %v4004
    %v4024 = vunpack.c.l.s4 1934713408
    %v4025 = vunpack.c.0.s8 %v4024
    %v4026 = vlaneseq
    %v4027 = vshrl.u32 %v4026, 7
    %v4028 = vsub.s32 %v4025, %v4027
    %v4029 = vrot.slane %v4021, %v4028
    %v4031 = vunpack.c.l.s4 1934713408
    %v4032 = vunpack.c.0.s8 %v4031
    %v4033 = vlaneseq
    %v4034 = vshrl.u32 %v4033, 7
    %v4035 = vsub.s32 %v4032, %v4034
    %v4036 = vrot.slane %v4022, %v4035
    %v4037 = vcombine.high %v4013, 0.0
    %v4038 = vcombine.high %v4020, 0.0
    %v4039 = vcombine.high %v4029, 0.0
    %v4040 = vcombine.high %v4036, 0.0
    %v4041 = vcombine.low %v3952, %v3960
    %v4042 = vcombine.high %v3952, %v3960
    %v4044 = vunpack.c.l.s4 1983009808
    %v4045 = vunpack.c.0.s8 %v4044
    %v4046 = vlaneseq
    %v4047 = vshrl.u32 %v4046, 7
    %v4048 = vsub.s32 %v4045, %v4047
    %v4049 = vrot.slane %v4041, %v4048
    %v4051 = vunpack.c.l.s4 1983009808
    %v4052 = vunpack.c.0.s8 %v4051
    %v4053 = vlaneseq
    %v4054 = vshrl.u32 %v4053, 7
    %v4055 = vsub.s32 %v4052, %v4054
    %v4056 = vrot.slane %v4042, %v4055
    %v4057 = vcombine.low %v3956, %v3964
    %v4058 = vcombine.high %v3956, %v3964
    %v4060 = vunpack.c.l.s4 1983009808
    %v4061 = vunpack.c.0.s8 %v4060
    %v4062 = vlaneseq
    %v4063 = vshrl.u32 %v4062, 7
    %v4064 = vsub.s32 %v4061, %v4063
    %v4065 = vrot.slane %v4057, %v4064
    %v4067 = vunpack.c.l.s4 1983009808
    %v4068 = vunpack.c.0.s8 %v4067
    %v4069 = vlaneseq
    %v4070 = vshrl.u32 %v4069, 7
    %v4071 = vsub.s32 %v4068, %v4070
    %v4072 = vrot.slane %v4058, %v4071
    %v4073 = vcombine.low %v4049, %v4065
    %v4074 = vcombine.high %v4049, %v4065
    %v4076 = vunpack.c.l.s4 1934713408
    %v4077 = vunpack.c.0.s8 %v4076
    %v4078 = vlaneseq
    %v4079 = vshrl.u32 %v4078, 7
    %v4080 = vsub.s32 %v4077, %v4079
    %v4081 = vrot.slane %v4073, %v4080
    %v4083 = vunpack.c.l.s4 1934713408
    %v4084 = vunpack.c.0.s8 %v4083
    %v4085 = vlaneseq
    %v4086 = vshrl.u32 %v4085, 7
    %v4087 = vsub.s32 %v4084, %v4086
    %v4088 = vrot.slane %v4074, %v4087
    %v4089 = vcombine.low %v4056, %v4072
    %v4090 = vcombine.high %v4056, %v4072
    %v4092 = vunpack.c.l.s4 1934713408
    %v4093 = vunpack.c.0.s8 %v4092
    %v4094 = vlaneseq
    %v4095 = vshrl.u32 %v4094, 7
    %v4096 = vsub.s32 %v4093, %v4095
    %v4097 = vrot.slane %v4089, %v4096
    %v4099 = vunpack.c.l.s4 1934713408
    %v4100 = vunpack.c.0.s8 %v4099
    %v4101 = vlaneseq
    %v4102 = vshrl.u32 %v4101, 7
    %v4103 = vsub.s32 %v4100, %v4102
    %v4104 = vrot.slane %v4090, %v4103
    %v4105 = vcombine.high %v4081, 0.0
    %v4106 = vcombine.high %v4088, 0.0
    %v4107 = vcombine.high %v4097, 0.0
    %v4108 = vcombine.high %v4104, 0.0
    %4110 = vrot.lane.b32.xlu0 %v4037, 16
    %v4111 = vpop.permute.xlu0 %4110
    %4114 = vrot.lane.b32.xlu0 %v4020, 32
    %v4115 = vpop.permute.xlu0 %4114
    %4118 = vrot.lane.b32.xlu0 %v4038, 48
    %v4119 = vpop.permute.xlu0 %4118
    %4122 = vrot.lane.b32.xlu0 %v4029, 64
    %v4123 = vpop.permute.xlu0 %4122
    %4126 = vrot.lane.b32.xlu0 %v4039, 80
    %v4127 = vpop.permute.xlu0 %4126
    %4130 = vrot.lane.b32.xlu0 %v4036, 96
    %v4131 = vpop.permute.xlu0 %4130
    %4134 = vrot.lane.b32.xlu0 %v4040, 112
    %v4135 = vpop.permute.xlu0 %4134
    %4138 = vrot.lane.b32.xlu0 %v4105, 16
    %v4139 = vpop.permute.xlu0 %4138
    %4142 = vrot.lane.b32.xlu0 %v4088, 32
    %v4143 = vpop.permute.xlu0 %4142
    %4146 = vrot.lane.b32.xlu0 %v4106, 48
    %v4147 = vpop.permute.xlu0 %4146
    %4150 = vrot.lane.b32.xlu0 %v4097, 64
    %v4151 = vpop.permute.xlu0 %4150
    %4154 = vrot.lane.b32.xlu0 %v4107, 80
    %v4155 = vpop.permute.xlu0 %4154
    %4158 = vrot.lane.b32.xlu0 %v4104, 96
    %v4159 = vpop.permute.xlu0 %4158
    %4162 = vrot.lane.b32.xlu0 %v4108, 112
    %v4163 = vpop.permute.xlu0 %4162
    %v4165 = vsel %vm213, %v4013, %v4111
    %v4166 = vsel %vm215, %v4165, %v4115
    %v4167 = vsel %vm217, %v4166, %v4119
    %v4168 = vsel %vm219, %v4167, %v4123
    %v4169 = vsel %vm221, %v4168, %v4127
    %v4170 = vsel %vm223, %v4169, %v4131
    %v4171 = vsel %vm225, %v4170, %v4135
    %v4172 = vsel %vm213, %v4081, %v4139
    %v4173 = vsel %vm215, %v4172, %v4143
    %v4174 = vsel %vm217, %v4173, %v4147
    %v4175 = vsel %vm219, %v4174, %v4151
    %v4176 = vsel %vm221, %v4175, %v4155
    %v4177 = vsel %vm223, %v4176, %v4159
    %v4178 = vsel %vm225, %v4177, %v4163
    %v4181 = vrot.slane %v4171, 4
    %v4182 = vrot.slane %v4178, 4
    %4185 = vst [vmem:[#allocation2 + $0x30] sm:$0xf0] %v4181
    %4186 = vst [vmem:[#allocation2 + $0x38] sm:$0xf0] %v4182
    %v4187 = vld [vmem:[%s2274 + $0x4] sm:$0xff]
    %v4188 = vld [vmem:[%s2274 + $0xc] sm:$0xff]
    %v4189 = vld [vmem:[%s2274 + $0x1c] sm:$0xff]
    %v4190 = vld [vmem:[%s2274 + $0x24] sm:$0xff]
    %v4191 = vld [vmem:[%s2274 + $0x34] sm:$0xff]
    %v4192 = vld [vmem:[%s2274 + $0x3c] sm:$0xff]
    %v4193 = vld [vmem:[%s2274 + $0x4c] sm:$0xff]
    %v4194 = vld [vmem:[%s2274 + $0x54] sm:$0xff]
    %4203 = vrot.lane.b32.xlu0 %v4187, 124
    %v4204 = vpop.permute.xlu0 %4203
    %4205 = vrot.lane.b32.xlu0 %v4188, 124
    %v4206 = vpop.permute.xlu0 %4205
    %4207 = vrot.lane.b32.xlu0 %v4189, 124
    %v4208 = vpop.permute.xlu0 %4207
    %4209 = vrot.lane.b32.xlu0 %v4190, 124
    %v4210 = vpop.permute.xlu0 %4209
    %4211 = vrot.lane.b32.xlu0 %v4191, 124
    %v4212 = vpop.permute.xlu0 %4211
    %4213 = vrot.lane.b32.xlu0 %v4192, 124
    %v4214 = vpop.permute.xlu0 %4213
    %4215 = vrot.lane.b32.xlu0 %v4193, 124
    %v4216 = vpop.permute.xlu0 %4215
    %4217 = vrot.lane.b32.xlu0 %v4194, 124
    %v4218 = vpop.permute.xlu0 %4217
    %v4227 = vcombine.low %v4204, %v4212
    %v4228 = vcombine.high %v4204, %v4212
    %v4230 = vunpack.c.l.s4 1983009808
    %v4231 = vunpack.c.0.s8 %v4230
    %v4232 = vlaneseq
    %v4233 = vshrl.u32 %v4232, 7
    %v4234 = vsub.s32 %v4231, %v4233
    %v4235 = vrot.slane %v4227, %v4234
    %v4237 = vunpack.c.l.s4 1983009808
    %v4238 = vunpack.c.0.s8 %v4237
    %v4239 = vlaneseq
    %v4240 = vshrl.u32 %v4239, 7
    %v4241 = vsub.s32 %v4238, %v4240
    %v4242 = vrot.slane %v4228, %v4241
    %v4243 = vcombine.low %v4208, %v4216
    %v4244 = vcombine.high %v4208, %v4216
    %v4246 = vunpack.c.l.s4 1983009808
    %v4247 = vunpack.c.0.s8 %v4246
    %v4248 = vlaneseq
    %v4249 = vshrl.u32 %v4248, 7
    %v4250 = vsub.s32 %v4247, %v4249
    %v4251 = vrot.slane %v4243, %v4250
    %v4253 = vunpack.c.l.s4 1983009808
    %v4254 = vunpack.c.0.s8 %v4253
    %v4255 = vlaneseq
    %v4256 = vshrl.u32 %v4255, 7
    %v4257 = vsub.s32 %v4254, %v4256
    %v4258 = vrot.slane %v4244, %v4257
    %v4259 = vcombine.low %v4235, %v4251
    %v4260 = vcombine.high %v4235, %v4251
    %v4262 = vunpack.c.l.s4 1934713408
    %v4263 = vunpack.c.0.s8 %v4262
    %v4264 = vlaneseq
    %v4265 = vshrl.u32 %v4264, 7
    %v4266 = vsub.s32 %v4263, %v4265
    %v4267 = vrot.slane %v4259, %v4266
    %v4269 = vunpack.c.l.s4 1934713408
    %v4270 = vunpack.c.0.s8 %v4269
    %v4271 = vlaneseq
    %v4272 = vshrl.u32 %v4271, 7
    %v4273 = vsub.s32 %v4270, %v4272
    %v4274 = vrot.slane %v4260, %v4273
    %v4275 = vcombine.low %v4242, %v4258
    %v4276 = vcombine.high %v4242, %v4258
    %v4278 = vunpack.c.l.s4 1934713408
    %v4279 = vunpack.c.0.s8 %v4278
    %v4280 = vlaneseq
    %v4281 = vshrl.u32 %v4280, 7
    %v4282 = vsub.s32 %v4279, %v4281
    %v4283 = vrot.slane %v4275, %v4282
    %v4285 = vunpack.c.l.s4 1934713408
    %v4286 = vunpack.c.0.s8 %v4285
    %v4287 = vlaneseq
    %v4288 = vshrl.u32 %v4287, 7
    %v4289 = vsub.s32 %v4286, %v4288
    %v4290 = vrot.slane %v4276, %v4289
    %v4291 = vcombine.high %v4267, 0.0
    %v4292 = vcombine.high %v4274, 0.0
    %v4293 = vcombine.high %v4283, 0.0
    %v4294 = vcombine.high %v4290, 0.0
    %v4295 = vcombine.low %v4206, %v4214
    %v4296 = vcombine.high %v4206, %v4214
    %v4298 = vunpack.c.l.s4 1983009808
    %v4299 = vunpack.c.0.s8 %v4298
    %v4300 = vlaneseq
    %v4301 = vshrl.u32 %v4300, 7
    %v4302 = vsub.s32 %v4299, %v4301
    %v4303 = vrot.slane %v4295, %v4302
    %v4305 = vunpack.c.l.s4 1983009808
    %v4306 = vunpack.c.0.s8 %v4305
    %v4307 = vlaneseq
    %v4308 = vshrl.u32 %v4307, 7
    %v4309 = vsub.s32 %v4306, %v4308
    %v4310 = vrot.slane %v4296, %v4309
    %v4311 = vcombine.low %v4210, %v4218
    %v4312 = vcombine.high %v4210, %v4218
    %v4314 = vunpack.c.l.s4 1983009808
    %v4315 = vunpack.c.0.s8 %v4314
    %v4316 = vlaneseq
    %v4317 = vshrl.u32 %v4316, 7
    %v4318 = vsub.s32 %v4315, %v4317
    %v4319 = vrot.slane %v4311, %v4318
    %v4321 = vunpack.c.l.s4 1983009808
    %v4322 = vunpack.c.0.s8 %v4321
    %v4323 = vlaneseq
    %v4324 = vshrl.u32 %v4323, 7
    %v4325 = vsub.s32 %v4322, %v4324
    %v4326 = vrot.slane %v4312, %v4325
    %v4327 = vcombine.low %v4303, %v4319
    %v4328 = vcombine.high %v4303, %v4319
    %v4330 = vunpack.c.l.s4 1934713408
    %v4331 = vunpack.c.0.s8 %v4330
    %v4332 = vlaneseq
    %v4333 = vshrl.u32 %v4332, 7
    %v4334 = vsub.s32 %v4331, %v4333
    %v4335 = vrot.slane %v4327, %v4334
    %v4337 = vunpack.c.l.s4 1934713408
    %v4338 = vunpack.c.0.s8 %v4337
    %v4339 = vlaneseq
    %v4340 = vshrl.u32 %v4339, 7
    %v4341 = vsub.s32 %v4338, %v4340
    %v4342 = vrot.slane %v4328, %v4341
    %v4343 = vcombine.low %v4310, %v4326
    %v4344 = vcombine.high %v4310, %v4326
    %v4346 = vunpack.c.l.s4 1934713408
    %v4347 = vunpack.c.0.s8 %v4346
    %v4348 = vlaneseq
    %v4349 = vshrl.u32 %v4348, 7
    %v4350 = vsub.s32 %v4347, %v4349
    %v4351 = vrot.slane %v4343, %v4350
    %v4353 = vunpack.c.l.s4 1934713408
    %v4354 = vunpack.c.0.s8 %v4353
    %v4355 = vlaneseq
    %v4356 = vshrl.u32 %v4355, 7
    %v4357 = vsub.s32 %v4354, %v4356
    %v4358 = vrot.slane %v4344, %v4357
    %v4359 = vcombine.high %v4335, 0.0
    %v4360 = vcombine.high %v4342, 0.0
    %v4361 = vcombine.high %v4351, 0.0
    %v4362 = vcombine.high %v4358, 0.0
    %4364 = vrot.lane.b32.xlu0 %v4291, 16
    %v4365 = vpop.permute.xlu0 %4364
    %4368 = vrot.lane.b32.xlu0 %v4274, 32
    %v4369 = vpop.permute.xlu0 %4368
    %4372 = vrot.lane.b32.xlu0 %v4292, 48
    %v4373 = vpop.permute.xlu0 %4372
    %4376 = vrot.lane.b32.xlu0 %v4283, 64
    %v4377 = vpop.permute.xlu0 %4376
    %4380 = vrot.lane.b32.xlu0 %v4293, 80
    %v4381 = vpop.permute.xlu0 %4380
    %4384 = vrot.lane.b32.xlu0 %v4290, 96
    %v4385 = vpop.permute.xlu0 %4384
    %4388 = vrot.lane.b32.xlu0 %v4294, 112
    %v4389 = vpop.permute.xlu0 %4388
    %4392 = vrot.lane.b32.xlu0 %v4359, 16
    %v4393 = vpop.permute.xlu0 %4392
    %4396 = vrot.lane.b32.xlu0 %v4342, 32
    %v4397 = vpop.permute.xlu0 %4396
    %4400 = vrot.lane.b32.xlu0 %v4360, 48
    %v4401 = vpop.permute.xlu0 %4400
    %4404 = vrot.lane.b32.xlu0 %v4351, 64
    %v4405 = vpop.permute.xlu0 %4404
    %4408 = vrot.lane.b32.xlu0 %v4361, 80
    %v4409 = vpop.permute.xlu0 %4408
    %4412 = vrot.lane.b32.xlu0 %v4358, 96
    %v4413 = vpop.permute.xlu0 %4412
    %4416 = vrot.lane.b32.xlu0 %v4362, 112
    %v4417 = vpop.permute.xlu0 %4416
    %v4419 = vsel %vm213, %v4267, %v4365
    %v4420 = vsel %vm215, %v4419, %v4369
    %v4421 = vsel %vm217, %v4420, %v4373
    %v4422 = vsel %vm219, %v4421, %v4377
    %v4423 = vsel %vm221, %v4422, %v4381
    %v4424 = vsel %vm223, %v4423, %v4385
    %v4425 = vsel %vm225, %v4424, %v4389
    %v4426 = vsel %vm213, %v4335, %v4393
    %v4427 = vsel %vm215, %v4426, %v4397
    %v4428 = vsel %vm217, %v4427, %v4401
    %v4429 = vsel %vm219, %v4428, %v4405
    %v4430 = vsel %vm221, %v4429, %v4409
    %v4431 = vsel %vm223, %v4430, %v4413
    %v4432 = vsel %vm225, %v4431, %v4417
    %4433 = vst [vmem:[#allocation2 + $0x40] sm:$0xf] %v4425
    %4434 = vst [vmem:[#allocation2 + $0x48] sm:$0xf] %v4432
    %v4435 = vld [vmem:[#allocation2] sm:$0xff]
    %v4436 = vld [vmem:[#allocation2 + $0x8] sm:$0xff]
    %v4437 = vld [vmem:[#allocation2 + $0x10] sm:$0xff]
    %v4438 = vld [vmem:[#allocation2 + $0x18] sm:$0xff]
    %v4439 = vld [vmem:[#allocation2 + $0x20] sm:$0xff]
    %v4440 = vld [vmem:[#allocation2 + $0x28] sm:$0xff]
    %v4441 = vld [vmem:[#allocation2 + $0x30] sm:$0xff]
    %v4442 = vld [vmem:[#allocation2 + $0x38] sm:$0xff]
    %v4443 = vld [vmem:[#allocation2 + $0x40] sm:$0xf]
    %v4444 = vld [vmem:[#allocation2 + $0x48] sm:$0xf]
    %v4446 = vsel %vm2194, %v4443, 0
    %v4449 = vsel %vm2194, %v4444, 0
    %4451 = vmatprep.subr.mxu0 0.0
    %4452 = vmatpush1.msra.mxu0 0.0
    %4453 = vmatprep.subr.mxu0 0.0
    %4454 = vmatpush1.msra.mxu0 0.0
    %4455 = vmatprep.subr.mxu0 0.0
    %4456 = vmatpush1.msra.mxu0 0.0
    %4457 = vmatprep.subr.mxu0 0.0
    %4458 = vmatpush1.msra.mxu0 0.0
    %4459 = vmatprep.subr.mxu0 0.0
    %4460 = vmatpush1.msra.mxu0 0.0
    %4461 = vmatprep.subr.mxu0 0.0
    %4462 = vmatpush1.msra.mxu0 0.0
    %4463 = vmatprep.subr.mxu0 0.0
    %4464 = vmatpush1.msra.mxu0 0.0
    %4465 = vmatprep.subr.mxu0 0.0
    %4466 = vmatpush1.msra.mxu0 0.0
    %4467 = vmatprep.subr.mxu0 0.0
    %4468 = vmatpush1.msra.mxu0 0.0
    %4469 = vmatprep.subr.mxu0 0.0
    %4470 = vmatpush1.msra.mxu0 0.0
    %4471 = vmatprep.subr.mxu0 0.0
    %4472 = vmatpush1.msra.mxu0 0.0
    %4473 = vmatprep.subr.mxu0 %v4449
    %4474 = vmatpush1.msra.mxu0 %v4446
    %4475 = vmatprep.subr.mxu0 %v4442
    %4476 = vmatpush1.msra.mxu0 %v4441
    %4477 = vmatprep.subr.mxu0 %v4440
    %4478 = vmatpush1.msra.mxu0 %v4439
    %4479 = vmatprep.subr.mxu0 %v4438
    %4480 = vmatpush1.msra.mxu0 %v4437
    %4481 = vmatprep.subr.mxu0 %v4436
    %4482 = vmatpush1.msra.mxu0 %v4435
    %4483 = vmatprep.subr.mxu0 0.0
    %4484 = vmatpush2.msra.mxu0 0.0
    %4485 = vmatprep.subr.mxu0 0.0
    %4486 = vmatpush2.msra.mxu0 0.0
    %4487 = vmatprep.subr.mxu0 0.0
    %4488 = vmatpush2.msra.mxu0 0.0
    %4489 = vmatprep.subr.mxu0 0.0
    %4490 = vmatpush2.msra.mxu0 0.0
    %4491 = vmatprep.subr.mxu0 0.0
    %4492 = vmatpush2.msra.mxu0 0.0
    %4493 = vmatprep.subr.mxu0 0.0
    %4494 = vmatpush2.msra.mxu0 0.0
    %4495 = vmatprep.subr.mxu0 0.0
    %4496 = vmatpush2.msra.mxu0 0.0
    %4497 = vmatprep.subr.mxu0 0.0
    %4498 = vmatpush2.msra.mxu0 0.0
    %4499 = vmatprep.subr.mxu0 0.0
    %4500 = vmatpush2.msra.mxu0 0.0
    %4501 = vmatprep.subr.mxu0 0.0
    %4502 = vmatpush2.msra.mxu0 0.0
    %4503 = vmatprep.subr.mxu0 0.0
    %4504 = vmatpush2.msra.mxu0 0.0
    %4505 = vmatprep.subr.mxu0 0.0
    %4506 = vmatpush2.msra.mxu0 0.0
    %4507 = vmatprep.subr.mxu0 0.0
    %4508 = vmatpush2.msra.mxu0 0.0
    %4509 = vmatprep.subr.mxu0 0.0
    %4510 = vmatpush2.msra.mxu0 0.0
    %4511 = vmatprep.subr.mxu0 0.0
    %4512 = vmatpush2.msra.mxu0 0.0
    %4513 = vmatprep.subr.mxu0 0.0
    %4514 = vmatpush2.msra.mxu0 0.0
    %4515 = vmatprep.mubr.f32.mxu0 0.0
    %4516 = vmatmul.mubr.f32.gmra.mxu0 %v2192
    %v4517 = vpop.f32.mrf.mxu0
    %v4518 = vadd.f32 0.0, %v4517
    %v4519 = vpop.f32.mrf.mxu0
    %v4520 = vadd.f32 0.0, %v4519
    %4521 = vdwg.mxu0
    %s4522 = scalar_lea.vmem [#allocation3], 16
    %4523 = vst [vmem:[%s4522] sm:$0xff] %v4518
    %4524 = vst [vmem:[%s4522 + $0x8] sm:$0xff] %v4520
    // Predicated region
    $region10: #{tpu_custom_call.1} parent=1 // pred_check
      _
    $region11: #{tpu_custom_call.1} parent=1 // pred_check_branch
      %4526 = sbr.rel (0) target = $region13
    $region12: #{tpu_custom_call.1} parent=1 // pred_region
      %s4528 = ssub.s32 512, 512
      %4529 = vsyncadd [#allocation4], %s4528
      %s4530 = sshll.u32 [#allocation3], 4
      %s4531 = int_to_ptr.vmem [resolvable:$true] %s4530
      %4536 = dma.vmem_to_hbm [thread:$0]  %s4531, 512, %s2, [#allocation4], 256, 256, 16
    $region13: #{tpu_custom_call.1} parent=1 // pred_fallthru
      _
    // Predicated region
    $region14: #{tpu_custom_call.1} parent=1 // pred_check
      _
    $region15: #{tpu_custom_call.1} parent=1 // pred_check_branch
      %4538 = sbr.rel (0) target = $region17
    $region16: #{tpu_custom_call.1} parent=1 // pred_region
      %4539 = dma.done [#allocation4], 512
    $region17: #{tpu_custom_call.1} parent=1 // pred_fallthru
      _
    %4540 = vsyncpa [#allocation4], 1

</llo_original>
